<compile_context>
chip_gen: v6e
topology: v6e:2x2x1
jax: 0.10.0
libtpu: 0.0.40
codegen_flags: <defaults>
</compile_context>

<pallas_src>
import jax
import jax.numpy as jnp
from jax import lax
from jax.experimental import pallas as pl
from jax.experimental.pallas import tpu as pltpu

INPUT_SIZE = 28    # features per timestep
SEQ_LEN = 28       # timesteps
HIDDEN = 64
NUM_CLASSES = 10
OUT_PAD = 128      # lane-dense classifier width (slice back to 10 in wrapper)


def lstm_kernel(x_ref, wih_ref, whh_ref, b_ref, wout_ref, bout_ref,
                out_ref, gx_ref):
    """Full LSTM recurrence + Linear + Softmax.

    x_ref:    (T*B, I)       float32   time-major, batch padded to mult. of 8
    wih_ref:  (I, 4H)        float32   gate order [i, f, o, g]
    whh_ref:  (H, 4H)        bfloat16  gate order [i, f, o, g]
    b_ref:    (1, 4H)        float32   fused b_ih + b_hh, order [i, f, o, g]
    wout_ref: (H, OUT_PAD)   float32   zero-padded beyond NUM_CLASSES
    bout_ref: (1, OUT_PAD)   float32   -1e30-padded beyond NUM_CLASSES
    out_ref:  (B, OUT_PAD)   float32   softmax probabilities
    gx_ref:   (T*B, 4H)      float32   VMEM scratch for hoisted x-projection
    """
    H = whh_ref.shape[0]
    B = out_ref.shape[0]
    T = x_ref.shape[0] // B

    # (1) Hoisted input projection for all timesteps: one big MXU matmul,
    #     bias folded in. No recurrent dependency -> off the critical chain.
    gx_ref[...] = (
        jnp.dot(x_ref[...], wih_ref[...], preferred_element_type=jnp.float32)
        + b_ref[...]
    )

    # (2) Recurrent weights stay vreg-resident across the whole loop (bf16).
    whh = whh_ref[...]

    def step(t, carry):
        h, c = carry
        row = pl.multiple_of(t * B, 8)            # sublane-aligned slice start
        gates = (
            jnp.dot(h.astype(whh.dtype), whh, preferred_element_type=jnp.float32)
            + gx_ref[pl.ds(row, B), :]
        )                                          # (B, 4H), order [i, f, o, g]
        sig = jax.nn.sigmoid(gates[:, : 3 * H])    # i, f, o in one shot
        i_g = sig[:, 0 * H:1 * H]
        f_g = sig[:, 1 * H:2 * H]
        o_g = sig[:, 2 * H:3 * H]
        g_g = jnp.tanh(gates[:, 3 * H:])
        c_new = f_g * c + i_g * g_g
        h_new = o_g * jnp.tanh(c_new)
        return (h_new, c_new)

    h0 = jnp.zeros((B, H), jnp.float32)
    c0 = jnp.zeros((B, H), jnp.float32)
    # (3) Fully unrolled: T is static and the per-step body is tiny.
    h_last, _ = lax.fori_loop(0, T, step, (h0, c0), unroll=True)

    # (4) Lane-dense classifier + softmax. Padded classes carry a -1e30 bias
    #     so exp() underflows to exactly 0 and the softmax matches dim=1 over
    #     the real 10 classes.
    logits = (
        jnp.dot(h_last, wout_ref[...], preferred_element_type=jnp.float32)
        + bout_ref[...]
    )
    m = jnp.max(logits, axis=1, keepdims=True)
    e = jnp.exp(logits - m)
    out_ref[...] = e / jnp.sum(e, axis=1, keepdims=True)


def _reorder_gates(w, axis=0):
    """PyTorch gate order [i, f, g, o] -> kernel order [i, f, o, g]."""
    i, f, g, o = jnp.split(w, 4, axis=axis)
    return jnp.concatenate([i, f, o, g], axis=axis)


def init_params(key):
    """Deterministic init mimicking PyTorch's uniform(-1/sqrt(H), 1/sqrt(H))."""
    k = 1.0 / jnp.sqrt(jnp.float32(HIDDEN))
    keys = jax.random.split(key, 6)
    # PyTorch shapes: weight_ih (4H, I), weight_hh (4H, H), bias_* (4H,)
    w_ih = jax.random.uniform(keys[0], (4 * HIDDEN, INPUT_SIZE), jnp.float32, -k, k)
    w_hh = jax.random.uniform(keys[1], (4 * HIDDEN, HIDDEN), jnp.float32, -k, k)
    b_ih = jax.random.uniform(keys[2], (4 * HIDDEN,), jnp.float32, -k, k)
    b_hh = jax.random.uniform(keys[3], (4 * HIDDEN,), jnp.float32, -k, k)
    w_out = jax.random.uniform(keys[4], (NUM_CLASSES, HIDDEN), jnp.float32, -k, k)
    b_out = jax.random.uniform(keys[5], (NUM_CLASSES,), jnp.float32, -k, k)

    # Reorder gate blocks consistently across w_ih / w_hh / fused bias.
    w_ih = _reorder_gates(w_ih, axis=0)
    w_hh = _reorder_gates(w_hh, axis=0)
    b = _reorder_gates(b_ih + b_hh, axis=0)

    # Lane-dense classifier padding (zeros for weights, -1e30 for bias).
    w_out_p = jnp.pad(w_out.T, ((0, 0), (0, OUT_PAD - NUM_CLASSES)))
    b_out_p = jnp.pad(b_out.reshape(1, -1),
                      ((0, 0), (0, OUT_PAD - NUM_CLASSES)),
                      constant_values=-1e30)

    return {
        # pre-transposed for right-multiplication inside the kernel
        "w_ih": w_ih.T,                          # (I, 4H) f32
        "w_hh": w_hh.T.astype(jnp.bfloat16),     # (H, 4H) bf16 (MXU inputs only)
        "b":    b.reshape(1, -1),                # (1, 4H) f32, fused bias
        "w_out": w_out_p,                        # (H, OUT_PAD) f32
        "b_out": b_out_p,                        # (1, OUT_PAD) f32
    }


@jax.jit
def lstm_forward(x, params):
    # Equivalent of x.view(-1, 28, 28) in the PyTorch forward.
    x = x.reshape(-1, SEQ_LEN, INPUT_SIZE).astype(jnp.float32)
    B = x.shape[0]
    B_pad = max(8, ((B + 7) // 8) * 8)           # fill sublanes
    x = jnp.pad(x, ((0, B_pad - B), (0, 0), (0, 0)))
    x_tmajor = jnp.transpose(x, (1, 0, 2))       # (T, B_pad, I)
    x_flat = x_tmajor.reshape(SEQ_LEN * B_pad, INPUT_SIZE)

    vmem = pl.BlockSpec(memory_space=pltpu.MemorySpace.VMEM)
    out = pl.pallas_call(
        lstm_kernel,
        out_shape=jax.ShapeDtypeStruct((B_pad, OUT_PAD), jnp.float32),
        in_specs=[vmem] * 6,
        out_specs=vmem,
        scratch_shapes=[pltpu.VMEM((SEQ_LEN * B_pad, 4 * HIDDEN), jnp.float32)],
    )(
        x_flat,
        params["w_ih"],
        params["w_hh"],
        params["b"],
        params["w_out"],
        params["b_out"],
    )
    return out[:B, :NUM_CLASSES]


if __name__ == "__main__":
    key = jax.random.PRNGKey(0)
    k_params, k_x = jax.random.split(key)

    params = init_params(k_params)
    # MNIST-like input: (batch=2, channels=1, 28, 28) NCHW; the forward views
    # it as (batch, 28, 28) sequences of 28 rows.
    x = jax.random.normal(k_x, (2, 1, 28, 28), dtype=jnp.float32)

    probs = lstm_forward(x, params)
    jax.block_until_ready(probs)

    assert probs.shape == (2, NUM_CLASSES)
    assert bool(jnp.all(jnp.isfinite(probs)))
    # softmax rows sum to 1
    assert bool(jnp.allclose(jnp.sum(probs, axis=1), 1.0, atol=1e-5))
    print("KERNEL_OK")
</pallas_src>

<mosaic_0001>
module attributes {stable_mosaic.version = 11 : i64} {
  func.func @lstm_kernel(%arg0: memref<224x28xf32, #tpu.memory_space<vmem>>, %arg1: memref<28x256xf32, #tpu.memory_space<vmem>>, %arg2: memref<64x256xbf16, #tpu.memory_space<vmem>>, %arg3: memref<1x256xf32, #tpu.memory_space<vmem>>, %arg4: memref<64x128xf32, #tpu.memory_space<vmem>>, %arg5: memref<1x128xf32, #tpu.memory_space<vmem>>, %arg6: memref<8x128xf32, #tpu.memory_space<vmem>>, %arg7: memref<224x256xf32, #tpu.memory_space<vmem>>) attributes {dimension_semantics = [], scalar_prefetch = 0 : i64, scratch_operands = 1 : i64, tpu.core_type = #tpu.core_type<tc>} {
    %c0 = arith.constant 0 : index
    %c0_0 = arith.constant 0 : index
    %0 = vector.load %arg0[%c0, %c0_0] : memref<224x28xf32, #tpu.memory_space<vmem>>, vector<224x28xf32>
    %c0_1 = arith.constant 0 : index
    %c0_2 = arith.constant 0 : index
    %1 = vector.load %arg1[%c0_1, %c0_2] : memref<28x256xf32, #tpu.memory_space<vmem>>, vector<28x256xf32>
    %cst = arith.constant dense<0.000000e+00> : vector<224x256xf32>
    %2 = tpu.matmul %0, %1, %cst {dimension_numbers = #tpu.dot_dimension_numbers<[1], [0], [0], [1], [0, 0, 1, 1], [], []>} : vector<224x28xf32>, vector<28x256xf32>, vector<224x256xf32> -> vector<224x256xf32>
    %c0_3 = arith.constant 0 : index
    %c0_4 = arith.constant 0 : index
    %3 = vector.load %arg3[%c0_3, %c0_4] : memref<1x256xf32, #tpu.memory_space<vmem>>, vector<1x256xf32>
    %4 = vector.broadcast %3 : vector<1x256xf32> to vector<224x256xf32>
    %5 = arith.addf %2, %4 : vector<224x256xf32>
    %c0_5 = arith.constant 0 : index
    %c0_6 = arith.constant 0 : index
    %6 = vector.load %arg7[%c0_5, %c0_6] : memref<224x256xf32, #tpu.memory_space<vmem>>, vector<224x256xf32>
    tpu.vector_store %arg7[%c0_5, %c0_6], %5 {strides = array<i32>} : memref<224x256xf32, #tpu.memory_space<vmem>>, vector<224x256xf32>,
    %c0_7 = arith.constant 0 : index
    %c0_8 = arith.constant 0 : index
    %7 = vector.load %arg2[%c0_7, %c0_8] : memref<64x256xbf16, #tpu.memory_space<vmem>>, vector<64x256xbf16>
    %cst_9 = arith.constant 0.000000e+00 : f32
    %8 = vector.broadcast %cst_9 : f32 to vector<8x64xf32>
    %cst_10 = arith.constant 0.000000e+00 : f32
    %9 = vector.broadcast %cst_10 : f32 to vector<8x64xf32>
    %c0_i32 = arith.constant 0 : i32
    %c8_i32 = arith.constant 8 : i32
    %10 = arith.muli %c0_i32, %c8_i32 : i32
    %11 = tpu.assume_multiple %10, 8 : i32
    %12 = arith.truncf %8 : vector<8x64xf32> to vector<8x64xbf16>
    %cst_11 = arith.constant dense<0.000000e+00> : vector<8x256xf32>
    %13 = tpu.matmul %12, %7, %cst_11 {dimension_numbers = #tpu.dot_dimension_numbers<[1], [0], [0], [1], [0, 0, 1, 1], [], []>} : vector<8x64xbf16>, vector<64x256xbf16>, vector<8x256xf32> -> vector<8x256xf32>
    %14 = arith.index_cast %11 : i32 to index
    %c0_12 = arith.constant 0 : index
    %15 = vector.load %arg7[%14, %c0_12] : memref<224x256xf32, #tpu.memory_space<vmem>>, vector<8x256xf32>
    %16 = arith.addf %13, %15 : vector<8x256xf32>
    %17 = vector.extract_strided_slice %16 {offsets = [0, 0], sizes = [8, 192], strides = [1, 1]} : vector<8x256xf32> to vector<8x192xf32>
    %18 = arith.negf %17 : vector<8x192xf32>
    %19 = math.exp %18 : vector<8x192xf32>
    %cst_13 = arith.constant 1.000000e+00 : f32
    %20 = vector.broadcast %cst_13 : f32 to vector<8x192xf32>
    %21 = arith.addf %20, %19 : vector<8x192xf32>
    %22 = arith.divf %20, %21 : vector<8x192xf32>
    %23 = vector.extract_strided_slice %22 {offsets = [0, 0], sizes = [8, 64], strides = [1, 1]} : vector<8x192xf32> to vector<8x64xf32>
    %24 = vector.extract_strided_slice %22 {offsets = [0, 64], sizes = [8, 64], strides = [1, 1]} : vector<8x192xf32> to vector<8x64xf32>
    %25 = vector.extract_strided_slice %22 {offsets = [0, 128], sizes = [8, 64], strides = [1, 1]} : vector<8x192xf32> to vector<8x64xf32>
    %26 = vector.extract_strided_slice %16 {offsets = [0, 192], sizes = [8, 64], strides = [1, 1]} : vector<8x256xf32> to vector<8x64xf32>
    %27 = math.tanh %26 : vector<8x64xf32>
    %28 = arith.mulf %24, %9 : vector<8x64xf32>
    %29 = arith.mulf %23, %27 : vector<8x64xf32>
    %30 = arith.addf %28, %29 : vector<8x64xf32>
    %31 = math.tanh %30 : vector<8x64xf32>
    %32 = arith.mulf %25, %31 : vector<8x64xf32>
    %c1_i32 = arith.constant 1 : i32
    %c8_i32_14 = arith.constant 8 : i32
    %33 = arith.muli %c1_i32, %c8_i32_14 : i32
    %34 = tpu.assume_multiple %33, 8 : i32
    %35 = arith.truncf %32 : vector<8x64xf32> to vector<8x64xbf16>
    %cst_15 = arith.constant dense<0.000000e+00> : vector<8x256xf32>
    %36 = tpu.matmul %35, %7, %cst_15 {dimension_numbers = #tpu.dot_dimension_numbers<[1], [0], [0], [1], [0, 0, 1, 1], [], []>} : vector<8x64xbf16>, vector<64x256xbf16>, vector<8x256xf32> -> vector<8x256xf32>
    %37 = arith.index_cast %34 : i32 to index
    %c0_16 = arith.constant 0 : index
    %38 = vector.load %arg7[%37, %c0_16] : memref<224x256xf32, #tpu.memory_space<vmem>>, vector<8x256xf32>
    %39 = arith.addf %36, %38 : vector<8x256xf32>
    %40 = vector.extract_strided_slice %39 {offsets = [0, 0], sizes = [8, 192], strides = [1, 1]} : vector<8x256xf32> to vector<8x192xf32>
    %41 = arith.negf %40 : vector<8x192xf32>
    %42 = math.exp %41 : vector<8x192xf32>
    %cst_17 = arith.constant 1.000000e+00 : f32
    %43 = vector.broadcast %cst_17 : f32 to vector<8x192xf32>
    %44 = arith.addf %43, %42 : vector<8x192xf32>
    %45 = arith.divf %43, %44 : vector<8x192xf32>
    %46 = vector.extract_strided_slice %45 {offsets = [0, 0], sizes = [8, 64], strides = [1, 1]} : vector<8x192xf32> to vector<8x64xf32>
    %47 = vector.extract_strided_slice %45 {offsets = [0, 64], sizes = [8, 64], strides = [1, 1]} : vector<8x192xf32> to vector<8x64xf32>
    %48 = vector.extract_strided_slice %45 {offsets = [0, 128], sizes = [8, 64], strides = [1, 1]} : vector<8x192xf32> to vector<8x64xf32>
    %49 = vector.extract_strided_slice %39 {offsets = [0, 192], sizes = [8, 64], strides = [1, 1]} : vector<8x256xf32> to vector<8x64xf32>
    %50 = math.tanh %49 : vector<8x64xf32>
    %51 = arith.mulf %47, %30 : vector<8x64xf32>
    %52 = arith.mulf %46, %50 : vector<8x64xf32>
    %53 = arith.addf %51, %52 : vector<8x64xf32>
    %54 = math.tanh %53 : vector<8x64xf32>
    %55 = arith.mulf %48, %54 : vector<8x64xf32>
    %c2_i32 = arith.constant 2 : i32
    %c8_i32_18 = arith.constant 8 : i32
    %56 = arith.muli %c2_i32, %c8_i32_18 : i32
    %57 = tpu.assume_multiple %56, 8 : i32
    %58 = arith.truncf %55 : vector<8x64xf32> to vector<8x64xbf16>
    %cst_19 = arith.constant dense<0.000000e+00> : vector<8x256xf32>
    %59 = tpu.matmul %58, %7, %cst_19 {dimension_numbers = #tpu.dot_dimension_numbers<[1], [0], [0], [1], [0, 0, 1, 1], [], []>} : vector<8x64xbf16>, vector<64x256xbf16>, vector<8x256xf32> -> vector<8x256xf32>
    %60 = arith.index_cast %57 : i32 to index
    %c0_20 = arith.constant 0 : index
    %61 = vector.load %arg7[%60, %c0_20] : memref<224x256xf32, #tpu.memory_space<vmem>>, vector<8x256xf32>
    %62 = arith.addf %59, %61 : vector<8x256xf32>
    %63 = vector.extract_strided_slice %62 {offsets = [0, 0], sizes = [8, 192], strides = [1, 1]} : vector<8x256xf32> to vector<8x192xf32>
    %64 = arith.negf %63 : vector<8x192xf32>
    %65 = math.exp %64 : vector<8x192xf32>
    %cst_21 = arith.constant 1.000000e+00 : f32
    %66 = vector.broadcast %cst_21 : f32 to vector<8x192xf32>
    %67 = arith.addf %66, %65 : vector<8x192xf32>
    %68 = arith.divf %66, %67 : vector<8x192xf32>
    %69 = vector.extract_strided_slice %68 {offsets = [0, 0], sizes = [8, 64], strides = [1, 1]} : vector<8x192xf32> to vector<8x64xf32>
    %70 = vector.extract_strided_slice %68 {offsets = [0, 64], sizes = [8, 64], strides = [1, 1]} : vector<8x192xf32> to vector<8x64xf32>
    %71 = vector.extract_strided_slice %68 {offsets = [0, 128], sizes = [8, 64], strides = [1, 1]} : vector<8x192xf32> to vector<8x64xf32>
    %72 = vector.extract_strided_slice %62 {offsets = [0, 192], sizes = [8, 64], strides = [1, 1]} : vector<8x256xf32> to vector<8x64xf32>
    %73 = math.tanh %72 : vector<8x64xf32>
    %74 = arith.mulf %70, %53 : vector<8x64xf32>
    %75 = arith.mulf %69, %73 : vector<8x64xf32>
    %76 = arith.addf %74, %75 : vector<8x64xf32>
    %77 = math.tanh %76 : vector<8x64xf32>
    %78 = arith.mulf %71, %77 : vector<8x64xf32>
    %c3_i32 = arith.constant 3 : i32
    %c8_i32_22 = arith.constant 8 : i32
    %79 = arith.muli %c3_i32, %c8_i32_22 : i32
    %80 = tpu.assume_multiple %79, 8 : i32
    %81 = arith.truncf %78 : vector<8x64xf32> to vector<8x64xbf16>
    %cst_23 = arith.constant dense<0.000000e+00> : vector<8x256xf32>
    %82 = tpu.matmul %81, %7, %cst_23 {dimension_numbers = #tpu.dot_dimension_numbers<[1], [0], [0], [1], [0, 0, 1, 1], [], []>} : vector<8x64xbf16>, vector<64x256xbf16>, vector<8x256xf32> -> vector<8x256xf32>
    %83 = arith.index_cast %80 : i32 to index
    %c0_24 = arith.constant 0 : index
    %84 = vector.load %arg7[%83, %c0_24] : memref<224x256xf32, #tpu.memory_space<vmem>>, vector<8x256xf32>
    %85 = arith.addf %82, %84 : vector<8x256xf32>
    %86 = vector.extract_strided_slice %85 {offsets = [0, 0], sizes = [8, 192], strides = [1, 1]} : vector<8x256xf32> to vector<8x192xf32>
    %87 = arith.negf %86 : vector<8x192xf32>
    %88 = math.exp %87 : vector<8x192xf32>
    %cst_25 = arith.constant 1.000000e+00 : f32
    %89 = vector.broadcast %cst_25 : f32 to vector<8x192xf32>
    %90 = arith.addf %89, %88 : vector<8x192xf32>
    %91 = arith.divf %89, %90 : vector<8x192xf32>
    %92 = vector.extract_strided_slice %91 {offsets = [0, 0], sizes = [8, 64], strides = [1, 1]} : vector<8x192xf32> to vector<8x64xf32>
    %93 = vector.extract_strided_slice %91 {offsets = [0, 64], sizes = [8, 64], strides = [1, 1]} : vector<8x192xf32> to vector<8x64xf32>
    %94 = vector.extract_strided_slice %91 {offsets = [0, 128], sizes = [8, 64], strides = [1, 1]} : vector<8x192xf32> to vector<8x64xf32>
    %95 = vector.extract_strided_slice %85 {offsets = [0, 192], sizes = [8, 64], strides = [1, 1]} : vector<8x256xf32> to vector<8x64xf32>
    %96 = math.tanh %95 : vector<8x64xf32>
    %97 = arith.mulf %93, %76 : vector<8x64xf32>
    %98 = arith.mulf %92, %96 : vector<8x64xf32>
    %99 = arith.addf %97, %98 : vector<8x64xf32>
    %100 = math.tanh %99 : vector<8x64xf32>
    %101 = arith.mulf %94, %100 : vector<8x64xf32>
    %c4_i32 = arith.constant 4 : i32
    %c8_i32_26 = arith.constant 8 : i32
    %102 = arith.muli %c4_i32, %c8_i32_26 : i32
    %103 = tpu.assume_multiple %102, 8 : i32
    %104 = arith.truncf %101 : vector<8x64xf32> to vector<8x64xbf16>
    %cst_27 = arith.constant dense<0.000000e+00> : vector<8x256xf32>
    %105 = tpu.matmul %104, %7, %cst_27 {dimension_numbers = #tpu.dot_dimension_numbers<[1], [0], [0], [1], [0, 0, 1, 1], [], []>} : vector<8x64xbf16>, vector<64x256xbf16>, vector<8x256xf32> -> vector<8x256xf32>
    %106 = arith.index_cast %103 : i32 to index
    %c0_28 = arith.constant 0 : index
    %107 = vector.load %arg7[%106, %c0_28] : memref<224x256xf32, #tpu.memory_space<vmem>>, vector<8x256xf32>
    %108 = arith.addf %105, %107 : vector<8x256xf32>
    %109 = vector.extract_strided_slice %108 {offsets = [0, 0], sizes = [8, 192], strides = [1, 1]} : vector<8x256xf32> to vector<8x192xf32>
    %110 = arith.negf %109 : vector<8x192xf32>
    %111 = math.exp %110 : vector<8x192xf32>
    %cst_29 = arith.constant 1.000000e+00 : f32
    %112 = vector.broadcast %cst_29 : f32 to vector<8x192xf32>
    %113 = arith.addf %112, %111 : vector<8x192xf32>
    %114 = arith.divf %112, %113 : vector<8x192xf32>
    %115 = vector.extract_strided_slice %114 {offsets = [0, 0], sizes = [8, 64], strides = [1, 1]} : vector<8x192xf32> to vector<8x64xf32>
    %116 = vector.extract_strided_slice %114 {offsets = [0, 64], sizes = [8, 64], strides = [1, 1]} : vector<8x192xf32> to vector<8x64xf32>
    %117 = vector.extract_strided_slice %114 {offsets = [0, 128], sizes = [8, 64], strides = [1, 1]} : vector<8x192xf32> to vector<8x64xf32>
    %118 = vector.extract_strided_slice %108 {offsets = [0, 192], sizes = [8, 64], strides = [1, 1]} : vector<8x256xf32> to vector<8x64xf32>
    %119 = math.tanh %118 : vector<8x64xf32>
    %120 = arith.mulf %116, %99 : vector<8x64xf32>
    %121 = arith.mulf %115, %119 : vector<8x64xf32>
    %122 = arith.addf %120, %121 : vector<8x64xf32>
    %123 = math.tanh %122 : vector<8x64xf32>
    %124 = arith.mulf %117, %123 : vector<8x64xf32>
    %c5_i32 = arith.constant 5 : i32
    %c8_i32_30 = arith.constant 8 : i32
    %125 = arith.muli %c5_i32, %c8_i32_30 : i32
    %126 = tpu.assume_multiple %125, 8 : i32
    %127 = arith.truncf %124 : vector<8x64xf32> to vector<8x64xbf16>
    %cst_31 = arith.constant dense<0.000000e+00> : vector<8x256xf32>
    %128 = tpu.matmul %127, %7, %cst_31 {dimension_numbers = #tpu.dot_dimension_numbers<[1], [0], [0], [1], [0, 0, 1, 1], [], []>} : vector<8x64xbf16>, vector<64x256xbf16>, vector<8x256xf32> -> vector<8x256xf32>
    %129 = arith.index_cast %126 : i32 to index
    %c0_32 = arith.constant 0 : index
    %130 = vector.load %arg7[%129, %c0_32] : memref<224x256xf32, #tpu.memory_space<vmem>>, vector<8x256xf32>
    %131 = arith.addf %128, %130 : vector<8x256xf32>
    %132 = vector.extract_strided_slice %131 {offsets = [0, 0], sizes = [8, 192], strides = [1, 1]} : vector<8x256xf32> to vector<8x192xf32>
    %133 = arith.negf %132 : vector<8x192xf32>
    %134 = math.exp %133 : vector<8x192xf32>
    %cst_33 = arith.constant 1.000000e+00 : f32
    %135 = vector.broadcast %cst_33 : f32 to vector<8x192xf32>
    %136 = arith.addf %135, %134 : vector<8x192xf32>
    %137 = arith.divf %135, %136 : vector<8x192xf32>
    %138 = vector.extract_strided_slice %137 {offsets = [0, 0], sizes = [8, 64], strides = [1, 1]} : vector<8x192xf32> to vector<8x64xf32>
    %139 = vector.extract_strided_slice %137 {offsets = [0, 64], sizes = [8, 64], strides = [1, 1]} : vector<8x192xf32> to vector<8x64xf32>
    %140 = vector.extract_strided_slice %137 {offsets = [0, 128], sizes = [8, 64], strides = [1, 1]} : vector<8x192xf32> to vector<8x64xf32>
    %141 = vector.extract_strided_slice %131 {offsets = [0, 192], sizes = [8, 64], strides = [1, 1]} : vector<8x256xf32> to vector<8x64xf32>
    %142 = math.tanh %141 : vector<8x64xf32>
    %143 = arith.mulf %139, %122 : vector<8x64xf32>
    %144 = arith.mulf %138, %142 : vector<8x64xf32>
    %145 = arith.addf %143, %144 : vector<8x64xf32>
    %146 = math.tanh %145 : vector<8x64xf32>
    %147 = arith.mulf %140, %146 : vector<8x64xf32>
    %c6_i32 = arith.constant 6 : i32
    %c8_i32_34 = arith.constant 8 : i32
    %148 = arith.muli %c6_i32, %c8_i32_34 : i32
    %149 = tpu.assume_multiple %148, 8 : i32
    %150 = arith.truncf %147 : vector<8x64xf32> to vector<8x64xbf16>
    %cst_35 = arith.constant dense<0.000000e+00> : vector<8x256xf32>
    %151 = tpu.matmul %150, %7, %cst_35 {dimension_numbers = #tpu.dot_dimension_numbers<[1], [0], [0], [1], [0, 0, 1, 1], [], []>} : vector<8x64xbf16>, vector<64x256xbf16>, vector<8x256xf32> -> vector<8x256xf32>
    %152 = arith.index_cast %149 : i32 to index
    %c0_36 = arith.constant 0 : index
    %153 = vector.load %arg7[%152, %c0_36] : memref<224x256xf32, #tpu.memory_space<vmem>>, vector<8x256xf32>
    %154 = arith.addf %151, %153 : vector<8x256xf32>
    %155 = vector.extract_strided_slice %154 {offsets = [0, 0], sizes = [8, 192], strides = [1, 1]} : vector<8x256xf32> to vector<8x192xf32>
    %156 = arith.negf %155 : vector<8x192xf32>
    %157 = math.exp %156 : vector<8x192xf32>
    %cst_37 = arith.constant 1.000000e+00 : f32
    %158 = vector.broadcast %cst_37 : f32 to vector<8x192xf32>
    %159 = arith.addf %158, %157 : vector<8x192xf32>
    %160 = arith.divf %158, %159 : vector<8x192xf32>
    %161 = vector.extract_strided_slice %160 {offsets = [0, 0], sizes = [8, 64], strides = [1, 1]} : vector<8x192xf32> to vector<8x64xf32>
    %162 = vector.extract_strided_slice %160 {offsets = [0, 64], sizes = [8, 64], strides = [1, 1]} : vector<8x192xf32> to vector<8x64xf32>
    %163 = vector.extract_strided_slice %160 {offsets = [0, 128], sizes = [8, 64], strides = [1, 1]} : vector<8x192xf32> to vector<8x64xf32>
    %164 = vector.extract_strided_slice %154 {offsets = [0, 192], sizes = [8, 64], strides = [1, 1]} : vector<8x256xf32> to vector<8x64xf32>
    %165 = math.tanh %164 : vector<8x64xf32>
    %166 = arith.mulf %162, %145 : vector<8x64xf32>
    %167 = arith.mulf %161, %165 : vector<8x64xf32>
    %168 = arith.addf %166, %167 : vector<8x64xf32>
    %169 = math.tanh %168 : vector<8x64xf32>
    %170 = arith.mulf %163, %169 : vector<8x64xf32>
    %c7_i32 = arith.constant 7 : i32
    %c8_i32_38 = arith.constant 8 : i32
    %171 = arith.muli %c7_i32, %c8_i32_38 : i32
    %172 = tpu.assume_multiple %171, 8 : i32
    %173 = arith.truncf %170 : vector<8x64xf32> to vector<8x64xbf16>
    %cst_39 = arith.constant dense<0.000000e+00> : vector<8x256xf32>
    %174 = tpu.matmul %173, %7, %cst_39 {dimension_numbers = #tpu.dot_dimension_numbers<[1], [0], [0], [1], [0, 0, 1, 1], [], []>} : vector<8x64xbf16>, vector<64x256xbf16>, vector<8x256xf32> -> vector<8x256xf32>
    %175 = arith.index_cast %172 : i32 to index
    %c0_40 = arith.constant 0 : index
    %176 = vector.load %arg7[%175, %c0_40] : memref<224x256xf32, #tpu.memory_space<vmem>>, vector<8x256xf32>
    %177 = arith.addf %174, %176 : vector<8x256xf32>
    %178 = vector.extract_strided_slice %177 {offsets = [0, 0], sizes = [8, 192], strides = [1, 1]} : vector<8x256xf32> to vector<8x192xf32>
    %179 = arith.negf %178 : vector<8x192xf32>
    %180 = math.exp %179 : vector<8x192xf32>
    %cst_41 = arith.constant 1.000000e+00 : f32
    %181 = vector.broadcast %cst_41 : f32 to vector<8x192xf32>
    %182 = arith.addf %181, %180 : vector<8x192xf32>
    %183 = arith.divf %181, %182 : vector<8x192xf32>
    %184 = vector.extract_strided_slice %183 {offsets = [0, 0], sizes = [8, 64], strides = [1, 1]} : vector<8x192xf32> to vector<8x64xf32>
    %185 = vector.extract_strided_slice %183 {offsets = [0, 64], sizes = [8, 64], strides = [1, 1]} : vector<8x192xf32> to vector<8x64xf32>
    %186 = vector.extract_strided_slice %183 {offsets = [0, 128], sizes = [8, 64], strides = [1, 1]} : vector<8x192xf32> to vector<8x64xf32>
    %187 = vector.extract_strided_slice %177 {offsets = [0, 192], sizes = [8, 64], strides = [1, 1]} : vector<8x256xf32> to vector<8x64xf32>
    %188 = math.tanh %187 : vector<8x64xf32>
    %189 = arith.mulf %185, %168 : vector<8x64xf32>
    %190 = arith.mulf %184, %188 : vector<8x64xf32>
    %191 = arith.addf %189, %190 : vector<8x64xf32>
    %192 = math.tanh %191 : vector<8x64xf32>
    %193 = arith.mulf %186, %192 : vector<8x64xf32>
    %c8_i32_42 = arith.constant 8 : i32
    %c8_i32_43 = arith.constant 8 : i32
    %194 = arith.muli %c8_i32_42, %c8_i32_43 : i32
    %195 = tpu.assume_multiple %194, 8 : i32
    %196 = arith.truncf %193 : vector<8x64xf32> to vector<8x64xbf16>
    %cst_44 = arith.constant dense<0.000000e+00> : vector<8x256xf32>
    %197 = tpu.matmul %196, %7, %cst_44 {dimension_numbers = #tpu.dot_dimension_numbers<[1], [0], [0], [1], [0, 0, 1, 1], [], []>} : vector<8x64xbf16>, vector<64x256xbf16>, vector<8x256xf32> -> vector<8x256xf32>
    %198 = arith.index_cast %195 : i32 to index
    %c0_45 = arith.constant 0 : index
    %199 = vector.load %arg7[%198, %c0_45] : memref<224x256xf32, #tpu.memory_space<vmem>>, vector<8x256xf32>
    %200 = arith.addf %197, %199 : vector<8x256xf32>
    %201 = vector.extract_strided_slice %200 {offsets = [0, 0], sizes = [8, 192], strides = [1, 1]} : vector<8x256xf32> to vector<8x192xf32>
    %202 = arith.negf %201 : vector<8x192xf32>
    %203 = math.exp %202 : vector<8x192xf32>
    %cst_46 = arith.constant 1.000000e+00 : f32
    %204 = vector.broadcast %cst_46 : f32 to vector<8x192xf32>
    %205 = arith.addf %204, %203 : vector<8x192xf32>
    %206 = arith.divf %204, %205 : vector<8x192xf32>
    %207 = vector.extract_strided_slice %206 {offsets = [0, 0], sizes = [8, 64], strides = [1, 1]} : vector<8x192xf32> to vector<8x64xf32>
    %208 = vector.extract_strided_slice %206 {offsets = [0, 64], sizes = [8, 64], strides = [1, 1]} : vector<8x192xf32> to vector<8x64xf32>
    %209 = vector.extract_strided_slice %206 {offsets = [0, 128], sizes = [8, 64], strides = [1, 1]} : vector<8x192xf32> to vector<8x64xf32>
    %210 = vector.extract_strided_slice %200 {offsets = [0, 192], sizes = [8, 64], strides = [1, 1]} : vector<8x256xf32> to vector<8x64xf32>
    %211 = math.tanh %210 : vector<8x64xf32>
    %212 = arith.mulf %208, %191 : vector<8x64xf32>
    %213 = arith.mulf %207, %211 : vector<8x64xf32>
    %214 = arith.addf %212, %213 : vector<8x64xf32>
    %215 = math.tanh %214 : vector<8x64xf32>
    %216 = arith.mulf %209, %215 : vector<8x64xf32>
    %c9_i32 = arith.constant 9 : i32
    %c8_i32_47 = arith.constant 8 : i32
    %217 = arith.muli %c9_i32, %c8_i32_47 : i32
    %218 = tpu.assume_multiple %217, 8 : i32
    %219 = arith.truncf %216 : vector<8x64xf32> to vector<8x64xbf16>
    %cst_48 = arith.constant dense<0.000000e+00> : vector<8x256xf32>
    %220 = tpu.matmul %219, %7, %cst_48 {dimension_numbers = #tpu.dot_dimension_numbers<[1], [0], [0], [1], [0, 0, 1, 1], [], []>} : vector<8x64xbf16>, vector<64x256xbf16>, vector<8x256xf32> -> vector<8x256xf32>
    %221 = arith.index_cast %218 : i32 to index
    %c0_49 = arith.constant 0 : index
    %222 = vector.load %arg7[%221, %c0_49] : memref<224x256xf32, #tpu.memory_space<vmem>>, vector<8x256xf32>
    %223 = arith.addf %220, %222 : vector<8x256xf32>
    %224 = vector.extract_strided_slice %223 {offsets = [0, 0], sizes = [8, 192], strides = [1, 1]} : vector<8x256xf32> to vector<8x192xf32>
    %225 = arith.negf %224 : vector<8x192xf32>
    %226 = math.exp %225 : vector<8x192xf32>
    %cst_50 = arith.constant 1.000000e+00 : f32
    %227 = vector.broadcast %cst_50 : f32 to vector<8x192xf32>
    %228 = arith.addf %227, %226 : vector<8x192xf32>
    %229 = arith.divf %227, %228 : vector<8x192xf32>
    %230 = vector.extract_strided_slice %229 {offsets = [0, 0], sizes = [8, 64], strides = [1, 1]} : vector<8x192xf32> to vector<8x64xf32>
    %231 = vector.extract_strided_slice %229 {offsets = [0, 64], sizes = [8, 64], strides = [1, 1]} : vector<8x192xf32> to vector<8x64xf32>
    %232 = vector.extract_strided_slice %229 {offsets = [0, 128], sizes = [8, 64], strides = [1, 1]} : vector<8x192xf32> to vector<8x64xf32>
    %233 = vector.extract_strided_slice %223 {offsets = [0, 192], sizes = [8, 64], strides = [1, 1]} : vector<8x256xf32> to vector<8x64xf32>
    %234 = math.tanh %233 : vector<8x64xf32>
    %235 = arith.mulf %231, %214 : vector<8x64xf32>
    %236 = arith.mulf %230, %234 : vector<8x64xf32>
    %237 = arith.addf %235, %236 : vector<8x64xf32>
    %238 = math.tanh %237 : vector<8x64xf32>
    %239 = arith.mulf %232, %238 : vector<8x64xf32>
    %c10_i32 = arith.constant 10 : i32
    %c8_i32_51 = arith.constant 8 : i32
    %240 = arith.muli %c10_i32, %c8_i32_51 : i32
    %241 = tpu.assume_multiple %240, 8 : i32
    %242 = arith.truncf %239 : vector<8x64xf32> to vector<8x64xbf16>
    %cst_52 = arith.constant dense<0.000000e+00> : vector<8x256xf32>
    %243 = tpu.matmul %242, %7, %cst_52 {dimension_numbers = #tpu.dot_dimension_numbers<[1], [0], [0], [1], [0, 0, 1, 1], [], []>} : vector<8x64xbf16>, vector<64x256xbf16>, vector<8x256xf32> -> vector<8x256xf32>
    %244 = arith.index_cast %241 : i32 to index
    %c0_53 = arith.constant 0 : index
    %245 = vector.load %arg7[%244, %c0_53] : memref<224x256xf32, #tpu.memory_space<vmem>>, vector<8x256xf32>
    %246 = arith.addf %243, %245 : vector<8x256xf32>
    %247 = vector.extract_strided_slice %246 {offsets = [0, 0], sizes = [8, 192], strides = [1, 1]} : vector<8x256xf32> to vector<8x192xf32>
    %248 = arith.negf %247 : vector<8x192xf32>
    %249 = math.exp %248 : vector<8x192xf32>
    %cst_54 = arith.constant 1.000000e+00 : f32
    %250 = vector.broadcast %cst_54 : f32 to vector<8x192xf32>
    %251 = arith.addf %250, %249 : vector<8x192xf32>
    %252 = arith.divf %250, %251 : vector<8x192xf32>
    %253 = vector.extract_strided_slice %252 {offsets = [0, 0], sizes = [8, 64], strides = [1, 1]} : vector<8x192xf32> to vector<8x64xf32>
    %254 = vector.extract_strided_slice %252 {offsets = [0, 64], sizes = [8, 64], strides = [1, 1]} : vector<8x192xf32> to vector<8x64xf32>
    %255 = vector.extract_strided_slice %252 {offsets = [0, 128], sizes = [8, 64], strides = [1, 1]} : vector<8x192xf32> to vector<8x64xf32>
    %256 = vector.extract_strided_slice %246 {offsets = [0, 192], sizes = [8, 64], strides = [1, 1]} : vector<8x256xf32> to vector<8x64xf32>
    %257 = math.tanh %256 : vector<8x64xf32>
    %258 = arith.mulf %254, %237 : vector<8x64xf32>
    %259 = arith.mulf %253, %257 : vector<8x64xf32>
    %260 = arith.addf %258, %259 : vector<8x64xf32>
    %261 = math.tanh %260 : vector<8x64xf32>
    %262 = arith.mulf %255, %261 : vector<8x64xf32>
    %c11_i32 = arith.constant 11 : i32
    %c8_i32_55 = arith.constant 8 : i32
    %263 = arith.muli %c11_i32, %c8_i32_55 : i32
    %264 = tpu.assume_multiple %263, 8 : i32
    %265 = arith.truncf %262 : vector<8x64xf32> to vector<8x64xbf16>
    %cst_56 = arith.constant dense<0.000000e+00> : vector<8x256xf32>
    %266 = tpu.matmul %265, %7, %cst_56 {dimension_numbers = #tpu.dot_dimension_numbers<[1], [0], [0], [1], [0, 0, 1, 1], [], []>} : vector<8x64xbf16>, vector<64x256xbf16>, vector<8x256xf32> -> vector<8x256xf32>
    %267 = arith.index_cast %264 : i32 to index
    %c0_57 = arith.constant 0 : index
    %268 = vector.load %arg7[%267, %c0_57] : memref<224x256xf32, #tpu.memory_space<vmem>>, vector<8x256xf32>
    %269 = arith.addf %266, %268 : vector<8x256xf32>
    %270 = vector.extract_strided_slice %269 {offsets = [0, 0], sizes = [8, 192], strides = [1, 1]} : vector<8x256xf32> to vector<8x192xf32>
    %271 = arith.negf %270 : vector<8x192xf32>
    %272 = math.exp %271 : vector<8x192xf32>
    %cst_58 = arith.constant 1.000000e+00 : f32
    %273 = vector.broadcast %cst_58 : f32 to vector<8x192xf32>
    %274 = arith.addf %273, %272 : vector<8x192xf32>
    %275 = arith.divf %273, %274 : vector<8x192xf32>
    %276 = vector.extract_strided_slice %275 {offsets = [0, 0], sizes = [8, 64], strides = [1, 1]} : vector<8x192xf32> to vector<8x64xf32>
    %277 = vector.extract_strided_slice %275 {offsets = [0, 64], sizes = [8, 64], strides = [1, 1]} : vector<8x192xf32> to vector<8x64xf32>
    %278 = vector.extract_strided_slice %275 {offsets = [0, 128], sizes = [8, 64], strides = [1, 1]} : vector<8x192xf32> to vector<8x64xf32>
    %279 = vector.extract_strided_slice %269 {offsets = [0, 192], sizes = [8, 64], strides = [1, 1]} : vector<8x256xf32> to vector<8x64xf32>
    %280 = math.tanh %279 : vector<8x64xf32>
    %281 = arith.mulf %277, %260 : vector<8x64xf32>
    %282 = arith.mulf %276, %280 : vector<8x64xf32>
    %283 = arith.addf %281, %282 : vector<8x64xf32>
    %284 = math.tanh %283 : vector<8x64xf32>
    %285 = arith.mulf %278, %284 : vector<8x64xf32>
    %c12_i32 = arith.constant 12 : i32
    %c8_i32_59 = arith.constant 8 : i32
    %286 = arith.muli %c12_i32, %c8_i32_59 : i32
    %287 = tpu.assume_multiple %286, 8 : i32
    %288 = arith.truncf %285 : vector<8x64xf32> to vector<8x64xbf16>
    %cst_60 = arith.constant dense<0.000000e+00> : vector<8x256xf32>
    %289 = tpu.matmul %288, %7, %cst_60 {dimension_numbers = #tpu.dot_dimension_numbers<[1], [0], [0], [1], [0, 0, 1, 1], [], []>} : vector<8x64xbf16>, vector<64x256xbf16>, vector<8x256xf32> -> vector<8x256xf32>
    %290 = arith.index_cast %287 : i32 to index
    %c0_61 = arith.constant 0 : index
    %291 = vector.load %arg7[%290, %c0_61] : memref<224x256xf32, #tpu.memory_space<vmem>>, vector<8x256xf32>
    %292 = arith.addf %289, %291 : vector<8x256xf32>
    %293 = vector.extract_strided_slice %292 {offsets = [0, 0], sizes = [8, 192], strides = [1, 1]} : vector<8x256xf32> to vector<8x192xf32>
    %294 = arith.negf %293 : vector<8x192xf32>
    %295 = math.exp %294 : vector<8x192xf32>
    %cst_62 = arith.constant 1.000000e+00 : f32
    %296 = vector.broadcast %cst_62 : f32 to vector<8x192xf32>
    %297 = arith.addf %296, %295 : vector<8x192xf32>
    %298 = arith.divf %296, %297 : vector<8x192xf32>
    %299 = vector.extract_strided_slice %298 {offsets = [0, 0], sizes = [8, 64], strides = [1, 1]} : vector<8x192xf32> to vector<8x64xf32>
    %300 = vector.extract_strided_slice %298 {offsets = [0, 64], sizes = [8, 64], strides = [1, 1]} : vector<8x192xf32> to vector<8x64xf32>
    %301 = vector.extract_strided_slice %298 {offsets = [0, 128], sizes = [8, 64], strides = [1, 1]} : vector<8x192xf32> to vector<8x64xf32>
    %302 = vector.extract_strided_slice %292 {offsets = [0, 192], sizes = [8, 64], strides = [1, 1]} : vector<8x256xf32> to vector<8x64xf32>
    %303 = math.tanh %302 : vector<8x64xf32>
    %304 = arith.mulf %300, %283 : vector<8x64xf32>
    %305 = arith.mulf %299, %303 : vector<8x64xf32>
    %306 = arith.addf %304, %305 : vector<8x64xf32>
    %307 = math.tanh %306 : vector<8x64xf32>
    %308 = arith.mulf %301, %307 : vector<8x64xf32>
    %c13_i32 = arith.constant 13 : i32
    %c8_i32_63 = arith.constant 8 : i32
    %309 = arith.muli %c13_i32, %c8_i32_63 : i32
    %310 = tpu.assume_multiple %309, 8 : i32
    %311 = arith.truncf %308 : vector<8x64xf32> to vector<8x64xbf16>
    %cst_64 = arith.constant dense<0.000000e+00> : vector<8x256xf32>
    %312 = tpu.matmul %311, %7, %cst_64 {dimension_numbers = #tpu.dot_dimension_numbers<[1], [0], [0], [1], [0, 0, 1, 1], [], []>} : vector<8x64xbf16>, vector<64x256xbf16>, vector<8x256xf32> -> vector<8x256xf32>
    %313 = arith.index_cast %310 : i32 to index
    %c0_65 = arith.constant 0 : index
    %314 = vector.load %arg7[%313, %c0_65] : memref<224x256xf32, #tpu.memory_space<vmem>>, vector<8x256xf32>
    %315 = arith.addf %312, %314 : vector<8x256xf32>
    %316 = vector.extract_strided_slice %315 {offsets = [0, 0], sizes = [8, 192], strides = [1, 1]} : vector<8x256xf32> to vector<8x192xf32>
    %317 = arith.negf %316 : vector<8x192xf32>
    %318 = math.exp %317 : vector<8x192xf32>
    %cst_66 = arith.constant 1.000000e+00 : f32
    %319 = vector.broadcast %cst_66 : f32 to vector<8x192xf32>
    %320 = arith.addf %319, %318 : vector<8x192xf32>
    %321 = arith.divf %319, %320 : vector<8x192xf32>
    %322 = vector.extract_strided_slice %321 {offsets = [0, 0], sizes = [8, 64], strides = [1, 1]} : vector<8x192xf32> to vector<8x64xf32>
    %323 = vector.extract_strided_slice %321 {offsets = [0, 64], sizes = [8, 64], strides = [1, 1]} : vector<8x192xf32> to vector<8x64xf32>
    %324 = vector.extract_strided_slice %321 {offsets = [0, 128], sizes = [8, 64], strides = [1, 1]} : vector<8x192xf32> to vector<8x64xf32>
    %325 = vector.extract_strided_slice %315 {offsets = [0, 192], sizes = [8, 64], strides = [1, 1]} : vector<8x256xf32> to vector<8x64xf32>
    %326 = math.tanh %325 : vector<8x64xf32>
    %327 = arith.mulf %323, %306 : vector<8x64xf32>
    %328 = arith.mulf %322, %326 : vector<8x64xf32>
    %329 = arith.addf %327, %328 : vector<8x64xf32>
    %330 = math.tanh %329 : vector<8x64xf32>
    %331 = arith.mulf %324, %330 : vector<8x64xf32>
    %c14_i32 = arith.constant 14 : i32
    %c8_i32_67 = arith.constant 8 : i32
    %332 = arith.muli %c14_i32, %c8_i32_67 : i32
    %333 = tpu.assume_multiple %332, 8 : i32
    %334 = arith.truncf %331 : vector<8x64xf32> to vector<8x64xbf16>
    %cst_68 = arith.constant dense<0.000000e+00> : vector<8x256xf32>
    %335 = tpu.matmul %334, %7, %cst_68 {dimension_numbers = #tpu.dot_dimension_numbers<[1], [0], [0], [1], [0, 0, 1, 1], [], []>} : vector<8x64xbf16>, vector<64x256xbf16>, vector<8x256xf32> -> vector<8x256xf32>
    %336 = arith.index_cast %333 : i32 to index
    %c0_69 = arith.constant 0 : index
    %337 = vector.load %arg7[%336, %c0_69] : memref<224x256xf32, #tpu.memory_space<vmem>>, vector<8x256xf32>
    %338 = arith.addf %335, %337 : vector<8x256xf32>
    %339 = vector.extract_strided_slice %338 {offsets = [0, 0], sizes = [8, 192], strides = [1, 1]} : vector<8x256xf32> to vector<8x192xf32>
    %340 = arith.negf %339 : vector<8x192xf32>
    %341 = math.exp %340 : vector<8x192xf32>
    %cst_70 = arith.constant 1.000000e+00 : f32
    %342 = vector.broadcast %cst_70 : f32 to vector<8x192xf32>
    %343 = arith.addf %342, %341 : vector<8x192xf32>
    %344 = arith.divf %342, %343 : vector<8x192xf32>
    %345 = vector.extract_strided_slice %344 {offsets = [0, 0], sizes = [8, 64], strides = [1, 1]} : vector<8x192xf32> to vector<8x64xf32>
    %346 = vector.extract_strided_slice %344 {offsets = [0, 64], sizes = [8, 64], strides = [1, 1]} : vector<8x192xf32> to vector<8x64xf32>
    %347 = vector.extract_strided_slice %344 {offsets = [0, 128], sizes = [8, 64], strides = [1, 1]} : vector<8x192xf32> to vector<8x64xf32>
    %348 = vector.extract_strided_slice %338 {offsets = [0, 192], sizes = [8, 64], strides = [1, 1]} : vector<8x256xf32> to vector<8x64xf32>
    %349 = math.tanh %348 : vector<8x64xf32>
    %350 = arith.mulf %346, %329 : vector<8x64xf32>
    %351 = arith.mulf %345, %349 : vector<8x64xf32>
    %352 = arith.addf %350, %351 : vector<8x64xf32>
    %353 = math.tanh %352 : vector<8x64xf32>
    %354 = arith.mulf %347, %353 : vector<8x64xf32>
    %c15_i32 = arith.constant 15 : i32
    %c8_i32_71 = arith.constant 8 : i32
    %355 = arith.muli %c15_i32, %c8_i32_71 : i32
    %356 = tpu.assume_multiple %355, 8 : i32
    %357 = arith.truncf %354 : vector<8x64xf32> to vector<8x64xbf16>
    %cst_72 = arith.constant dense<0.000000e+00> : vector<8x256xf32>
    %358 = tpu.matmul %357, %7, %cst_72 {dimension_numbers = #tpu.dot_dimension_numbers<[1], [0], [0], [1], [0, 0, 1, 1], [], []>} : vector<8x64xbf16>, vector<64x256xbf16>, vector<8x256xf32> -> vector<8x256xf32>
    %359 = arith.index_cast %356 : i32 to index
    %c0_73 = arith.constant 0 : index
    %360 = vector.load %arg7[%359, %c0_73] : memref<224x256xf32, #tpu.memory_space<vmem>>, vector<8x256xf32>
    %361 = arith.addf %358, %360 : vector<8x256xf32>
    %362 = vector.extract_strided_slice %361 {offsets = [0, 0], sizes = [8, 192], strides = [1, 1]} : vector<8x256xf32> to vector<8x192xf32>
    %363 = arith.negf %362 : vector<8x192xf32>
    %364 = math.exp %363 : vector<8x192xf32>
    %cst_74 = arith.constant 1.000000e+00 : f32
    %365 = vector.broadcast %cst_74 : f32 to vector<8x192xf32>
    %366 = arith.addf %365, %364 : vector<8x192xf32>
    %367 = arith.divf %365, %366 : vector<8x192xf32>
    %368 = vector.extract_strided_slice %367 {offsets = [0, 0], sizes = [8, 64], strides = [1, 1]} : vector<8x192xf32> to vector<8x64xf32>
    %369 = vector.extract_strided_slice %367 {offsets = [0, 64], sizes = [8, 64], strides = [1, 1]} : vector<8x192xf32> to vector<8x64xf32>
    %370 = vector.extract_strided_slice %367 {offsets = [0, 128], sizes = [8, 64], strides = [1, 1]} : vector<8x192xf32> to vector<8x64xf32>
    %371 = vector.extract_strided_slice %361 {offsets = [0, 192], sizes = [8, 64], strides = [1, 1]} : vector<8x256xf32> to vector<8x64xf32>
    %372 = math.tanh %371 : vector<8x64xf32>
    %373 = arith.mulf %369, %352 : vector<8x64xf32>
    %374 = arith.mulf %368, %372 : vector<8x64xf32>
    %375 = arith.addf %373, %374 : vector<8x64xf32>
    %376 = math.tanh %375 : vector<8x64xf32>
    %377 = arith.mulf %370, %376 : vector<8x64xf32>
    %c16_i32 = arith.constant 16 : i32
    %c8_i32_75 = arith.constant 8 : i32
    %378 = arith.muli %c16_i32, %c8_i32_75 : i32
    %379 = tpu.assume_multiple %378, 8 : i32
    %380 = arith.truncf %377 : vector<8x64xf32> to vector<8x64xbf16>
    %cst_76 = arith.constant dense<0.000000e+00> : vector<8x256xf32>
    %381 = tpu.matmul %380, %7, %cst_76 {dimension_numbers = #tpu.dot_dimension_numbers<[1], [0], [0], [1], [0, 0, 1, 1], [], []>} : vector<8x64xbf16>, vector<64x256xbf16>, vector<8x256xf32> -> vector<8x256xf32>
    %382 = arith.index_cast %379 : i32 to index
    %c0_77 = arith.constant 0 : index
    %383 = vector.load %arg7[%382, %c0_77] : memref<224x256xf32, #tpu.memory_space<vmem>>, vector<8x256xf32>
    %384 = arith.addf %381, %383 : vector<8x256xf32>
    %385 = vector.extract_strided_slice %384 {offsets = [0, 0], sizes = [8, 192], strides = [1, 1]} : vector<8x256xf32> to vector<8x192xf32>
    %386 = arith.negf %385 : vector<8x192xf32>
    %387 = math.exp %386 : vector<8x192xf32>
    %cst_78 = arith.constant 1.000000e+00 : f32
    %388 = vector.broadcast %cst_78 : f32 to vector<8x192xf32>
    %389 = arith.addf %388, %387 : vector<8x192xf32>
    %390 = arith.divf %388, %389 : vector<8x192xf32>
    %391 = vector.extract_strided_slice %390 {offsets = [0, 0], sizes = [8, 64], strides = [1, 1]} : vector<8x192xf32> to vector<8x64xf32>
    %392 = vector.extract_strided_slice %390 {offsets = [0, 64], sizes = [8, 64], strides = [1, 1]} : vector<8x192xf32> to vector<8x64xf32>
    %393 = vector.extract_strided_slice %390 {offsets = [0, 128], sizes = [8, 64], strides = [1, 1]} : vector<8x192xf32> to vector<8x64xf32>
    %394 = vector.extract_strided_slice %384 {offsets = [0, 192], sizes = [8, 64], strides = [1, 1]} : vector<8x256xf32> to vector<8x64xf32>
    %395 = math.tanh %394 : vector<8x64xf32>
    %396 = arith.mulf %392, %375 : vector<8x64xf32>
    %397 = arith.mulf %391, %395 : vector<8x64xf32>
    %398 = arith.addf %396, %397 : vector<8x64xf32>
    %399 = math.tanh %398 : vector<8x64xf32>
    %400 = arith.mulf %393, %399 : vector<8x64xf32>
    %c17_i32 = arith.constant 17 : i32
    %c8_i32_79 = arith.constant 8 : i32
    %401 = arith.muli %c17_i32, %c8_i32_79 : i32
    %402 = tpu.assume_multiple %401, 8 : i32
    %403 = arith.truncf %400 : vector<8x64xf32> to vector<8x64xbf16>
    %cst_80 = arith.constant dense<0.000000e+00> : vector<8x256xf32>
    %404 = tpu.matmul %403, %7, %cst_80 {dimension_numbers = #tpu.dot_dimension_numbers<[1], [0], [0], [1], [0, 0, 1, 1], [], []>} : vector<8x64xbf16>, vector<64x256xbf16>, vector<8x256xf32> -> vector<8x256xf32>
    %405 = arith.index_cast %402 : i32 to index
    %c0_81 = arith.constant 0 : index
    %406 = vector.load %arg7[%405, %c0_81] : memref<224x256xf32, #tpu.memory_space<vmem>>, vector<8x256xf32>
    %407 = arith.addf %404, %406 : vector<8x256xf32>
    %408 = vector.extract_strided_slice %407 {offsets = [0, 0], sizes = [8, 192], strides = [1, 1]} : vector<8x256xf32> to vector<8x192xf32>
    %409 = arith.negf %408 : vector<8x192xf32>
    %410 = math.exp %409 : vector<8x192xf32>
    %cst_82 = arith.constant 1.000000e+00 : f32
    %411 = vector.broadcast %cst_82 : f32 to vector<8x192xf32>
    %412 = arith.addf %411, %410 : vector<8x192xf32>
    %413 = arith.divf %411, %412 : vector<8x192xf32>
    %414 = vector.extract_strided_slice %413 {offsets = [0, 0], sizes = [8, 64], strides = [1, 1]} : vector<8x192xf32> to vector<8x64xf32>
    %415 = vector.extract_strided_slice %413 {offsets = [0, 64], sizes = [8, 64], strides = [1, 1]} : vector<8x192xf32> to vector<8x64xf32>
    %416 = vector.extract_strided_slice %413 {offsets = [0, 128], sizes = [8, 64], strides = [1, 1]} : vector<8x192xf32> to vector<8x64xf32>
    %417 = vector.extract_strided_slice %407 {offsets = [0, 192], sizes = [8, 64], strides = [1, 1]} : vector<8x256xf32> to vector<8x64xf32>
    %418 = math.tanh %417 : vector<8x64xf32>
    %419 = arith.mulf %415, %398 : vector<8x64xf32>
    %420 = arith.mulf %414, %418 : vector<8x64xf32>
    %421 = arith.addf %419, %420 : vector<8x64xf32>
    %422 = math.tanh %421 : vector<8x64xf32>
    %423 = arith.mulf %416, %422 : vector<8x64xf32>
    %c18_i32 = arith.constant 18 : i32
    %c8_i32_83 = arith.constant 8 : i32
    %424 = arith.muli %c18_i32, %c8_i32_83 : i32
    %425 = tpu.assume_multiple %424, 8 : i32
    %426 = arith.truncf %423 : vector<8x64xf32> to vector<8x64xbf16>
    %cst_84 = arith.constant dense<0.000000e+00> : vector<8x256xf32>
    %427 = tpu.matmul %426, %7, %cst_84 {dimension_numbers = #tpu.dot_dimension_numbers<[1], [0], [0], [1], [0, 0, 1, 1], [], []>} : vector<8x64xbf16>, vector<64x256xbf16>, vector<8x256xf32> -> vector<8x256xf32>
    %428 = arith.index_cast %425 : i32 to index
    %c0_85 = arith.constant 0 : index
    %429 = vector.load %arg7[%428, %c0_85] : memref<224x256xf32, #tpu.memory_space<vmem>>, vector<8x256xf32>
    %430 = arith.addf %427, %429 : vector<8x256xf32>
    %431 = vector.extract_strided_slice %430 {offsets = [0, 0], sizes = [8, 192], strides = [1, 1]} : vector<8x256xf32> to vector<8x192xf32>
    %432 = arith.negf %431 : vector<8x192xf32>
    %433 = math.exp %432 : vector<8x192xf32>
    %cst_86 = arith.constant 1.000000e+00 : f32
    %434 = vector.broadcast %cst_86 : f32 to vector<8x192xf32>
    %435 = arith.addf %434, %433 : vector<8x192xf32>
    %436 = arith.divf %434, %435 : vector<8x192xf32>
    %437 = vector.extract_strided_slice %436 {offsets = [0, 0], sizes = [8, 64], strides = [1, 1]} : vector<8x192xf32> to vector<8x64xf32>
    %438 = vector.extract_strided_slice %436 {offsets = [0, 64], sizes = [8, 64], strides = [1, 1]} : vector<8x192xf32> to vector<8x64xf32>
    %439 = vector.extract_strided_slice %436 {offsets = [0, 128], sizes = [8, 64], strides = [1, 1]} : vector<8x192xf32> to vector<8x64xf32>
    %440 = vector.extract_strided_slice %430 {offsets = [0, 192], sizes = [8, 64], strides = [1, 1]} : vector<8x256xf32> to vector<8x64xf32>
    %441 = math.tanh %440 : vector<8x64xf32>
    %442 = arith.mulf %438, %421 : vector<8x64xf32>
    %443 = arith.mulf %437, %441 : vector<8x64xf32>
    %444 = arith.addf %442, %443 : vector<8x64xf32>
    %445 = math.tanh %444 : vector<8x64xf32>
    %446 = arith.mulf %439, %445 : vector<8x64xf32>
    %c19_i32 = arith.constant 19 : i32
    %c8_i32_87 = arith.constant 8 : i32
    %447 = arith.muli %c19_i32, %c8_i32_87 : i32
    %448 = tpu.assume_multiple %447, 8 : i32
    %449 = arith.truncf %446 : vector<8x64xf32> to vector<8x64xbf16>
    %cst_88 = arith.constant dense<0.000000e+00> : vector<8x256xf32>
    %450 = tpu.matmul %449, %7, %cst_88 {dimension_numbers = #tpu.dot_dimension_numbers<[1], [0], [0], [1], [0, 0, 1, 1], [], []>} : vector<8x64xbf16>, vector<64x256xbf16>, vector<8x256xf32> -> vector<8x256xf32>
    %451 = arith.index_cast %448 : i32 to index
    %c0_89 = arith.constant 0 : index
    %452 = vector.load %arg7[%451, %c0_89] : memref<224x256xf32, #tpu.memory_space<vmem>>, vector<8x256xf32>
    %453 = arith.addf %450, %452 : vector<8x256xf32>
    %454 = vector.extract_strided_slice %453 {offsets = [0, 0], sizes = [8, 192], strides = [1, 1]} : vector<8x256xf32> to vector<8x192xf32>
    %455 = arith.negf %454 : vector<8x192xf32>
    %456 = math.exp %455 : vector<8x192xf32>
    %cst_90 = arith.constant 1.000000e+00 : f32
    %457 = vector.broadcast %cst_90 : f32 to vector<8x192xf32>
    %458 = arith.addf %457, %456 : vector<8x192xf32>
    %459 = arith.divf %457, %458 : vector<8x192xf32>
    %460 = vector.extract_strided_slice %459 {offsets = [0, 0], sizes = [8, 64], strides = [1, 1]} : vector<8x192xf32> to vector<8x64xf32>
    %461 = vector.extract_strided_slice %459 {offsets = [0, 64], sizes = [8, 64], strides = [1, 1]} : vector<8x192xf32> to vector<8x64xf32>
    %462 = vector.extract_strided_slice %459 {offsets = [0, 128], sizes = [8, 64], strides = [1, 1]} : vector<8x192xf32> to vector<8x64xf32>
    %463 = vector.extract_strided_slice %453 {offsets = [0, 192], sizes = [8, 64], strides = [1, 1]} : vector<8x256xf32> to vector<8x64xf32>
    %464 = math.tanh %463 : vector<8x64xf32>
    %465 = arith.mulf %461, %444 : vector<8x64xf32>
    %466 = arith.mulf %460, %464 : vector<8x64xf32>
    %467 = arith.addf %465, %466 : vector<8x64xf32>
    %468 = math.tanh %467 : vector<8x64xf32>
    %469 = arith.mulf %462, %468 : vector<8x64xf32>
    %c20_i32 = arith.constant 20 : i32
    %c8_i32_91 = arith.constant 8 : i32
    %470 = arith.muli %c20_i32, %c8_i32_91 : i32
    %471 = tpu.assume_multiple %470, 8 : i32
    %472 = arith.truncf %469 : vector<8x64xf32> to vector<8x64xbf16>
    %cst_92 = arith.constant dense<0.000000e+00> : vector<8x256xf32>
    %473 = tpu.matmul %472, %7, %cst_92 {dimension_numbers = #tpu.dot_dimension_numbers<[1], [0], [0], [1], [0, 0, 1, 1], [], []>} : vector<8x64xbf16>, vector<64x256xbf16>, vector<8x256xf32> -> vector<8x256xf32>
    %474 = arith.index_cast %471 : i32 to index
    %c0_93 = arith.constant 0 : index
    %475 = vector.load %arg7[%474, %c0_93] : memref<224x256xf32, #tpu.memory_space<vmem>>, vector<8x256xf32>
    %476 = arith.addf %473, %475 : vector<8x256xf32>
    %477 = vector.extract_strided_slice %476 {offsets = [0, 0], sizes = [8, 192], strides = [1, 1]} : vector<8x256xf32> to vector<8x192xf32>
    %478 = arith.negf %477 : vector<8x192xf32>
    %479 = math.exp %478 : vector<8x192xf32>
    %cst_94 = arith.constant 1.000000e+00 : f32
    %480 = vector.broadcast %cst_94 : f32 to vector<8x192xf32>
    %481 = arith.addf %480, %479 : vector<8x192xf32>
    %482 = arith.divf %480, %481 : vector<8x192xf32>
    %483 = vector.extract_strided_slice %482 {offsets = [0, 0], sizes = [8, 64], strides = [1, 1]} : vector<8x192xf32> to vector<8x64xf32>
    %484 = vector.extract_strided_slice %482 {offsets = [0, 64], sizes = [8, 64], strides = [1, 1]} : vector<8x192xf32> to vector<8x64xf32>
    %485 = vector.extract_strided_slice %482 {offsets = [0, 128], sizes = [8, 64], strides = [1, 1]} : vector<8x192xf32> to vector<8x64xf32>
    %486 = vector.extract_strided_slice %476 {offsets = [0, 192], sizes = [8, 64], strides = [1, 1]} : vector<8x256xf32> to vector<8x64xf32>
    %487 = math.tanh %486 : vector<8x64xf32>
    %488 = arith.mulf %484, %467 : vector<8x64xf32>
    %489 = arith.mulf %483, %487 : vector<8x64xf32>
    %490 = arith.addf %488, %489 : vector<8x64xf32>
    %491 = math.tanh %490 : vector<8x64xf32>
    %492 = arith.mulf %485, %491 : vector<8x64xf32>
    %c21_i32 = arith.constant 21 : i32
    %c8_i32_95 = arith.constant 8 : i32
    %493 = arith.muli %c21_i32, %c8_i32_95 : i32
    %494 = tpu.assume_multiple %493, 8 : i32
    %495 = arith.truncf %492 : vector<8x64xf32> to vector<8x64xbf16>
    %cst_96 = arith.constant dense<0.000000e+00> : vector<8x256xf32>
    %496 = tpu.matmul %495, %7, %cst_96 {dimension_numbers = #tpu.dot_dimension_numbers<[1], [0], [0], [1], [0, 0, 1, 1], [], []>} : vector<8x64xbf16>, vector<64x256xbf16>, vector<8x256xf32> -> vector<8x256xf32>
    %497 = arith.index_cast %494 : i32 to index
    %c0_97 = arith.constant 0 : index
    %498 = vector.load %arg7[%497, %c0_97] : memref<224x256xf32, #tpu.memory_space<vmem>>, vector<8x256xf32>
    %499 = arith.addf %496, %498 : vector<8x256xf32>
    %500 = vector.extract_strided_slice %499 {offsets = [0, 0], sizes = [8, 192], strides = [1, 1]} : vector<8x256xf32> to vector<8x192xf32>
    %501 = arith.negf %500 : vector<8x192xf32>
    %502 = math.exp %501 : vector<8x192xf32>
    %cst_98 = arith.constant 1.000000e+00 : f32
    %503 = vector.broadcast %cst_98 : f32 to vector<8x192xf32>
    %504 = arith.addf %503, %502 : vector<8x192xf32>
    %505 = arith.divf %503, %504 : vector<8x192xf32>
    %506 = vector.extract_strided_slice %505 {offsets = [0, 0], sizes = [8, 64], strides = [1, 1]} : vector<8x192xf32> to vector<8x64xf32>
    %507 = vector.extract_strided_slice %505 {offsets = [0, 64], sizes = [8, 64], strides = [1, 1]} : vector<8x192xf32> to vector<8x64xf32>
    %508 = vector.extract_strided_slice %505 {offsets = [0, 128], sizes = [8, 64], strides = [1, 1]} : vector<8x192xf32> to vector<8x64xf32>
    %509 = vector.extract_strided_slice %499 {offsets = [0, 192], sizes = [8, 64], strides = [1, 1]} : vector<8x256xf32> to vector<8x64xf32>
    %510 = math.tanh %509 : vector<8x64xf32>
    %511 = arith.mulf %507, %490 : vector<8x64xf32>
    %512 = arith.mulf %506, %510 : vector<8x64xf32>
    %513 = arith.addf %511, %512 : vector<8x64xf32>
    %514 = math.tanh %513 : vector<8x64xf32>
    %515 = arith.mulf %508, %514 : vector<8x64xf32>
    %c22_i32 = arith.constant 22 : i32
    %c8_i32_99 = arith.constant 8 : i32
    %516 = arith.muli %c22_i32, %c8_i32_99 : i32
    %517 = tpu.assume_multiple %516, 8 : i32
    %518 = arith.truncf %515 : vector<8x64xf32> to vector<8x64xbf16>
    %cst_100 = arith.constant dense<0.000000e+00> : vector<8x256xf32>
    %519 = tpu.matmul %518, %7, %cst_100 {dimension_numbers = #tpu.dot_dimension_numbers<[1], [0], [0], [1], [0, 0, 1, 1], [], []>} : vector<8x64xbf16>, vector<64x256xbf16>, vector<8x256xf32> -> vector<8x256xf32>
    %520 = arith.index_cast %517 : i32 to index
    %c0_101 = arith.constant 0 : index
    %521 = vector.load %arg7[%520, %c0_101] : memref<224x256xf32, #tpu.memory_space<vmem>>, vector<8x256xf32>
    %522 = arith.addf %519, %521 : vector<8x256xf32>
    %523 = vector.extract_strided_slice %522 {offsets = [0, 0], sizes = [8, 192], strides = [1, 1]} : vector<8x256xf32> to vector<8x192xf32>
    %524 = arith.negf %523 : vector<8x192xf32>
    %525 = math.exp %524 : vector<8x192xf32>
    %cst_102 = arith.constant 1.000000e+00 : f32
    %526 = vector.broadcast %cst_102 : f32 to vector<8x192xf32>
    %527 = arith.addf %526, %525 : vector<8x192xf32>
    %528 = arith.divf %526, %527 : vector<8x192xf32>
    %529 = vector.extract_strided_slice %528 {offsets = [0, 0], sizes = [8, 64], strides = [1, 1]} : vector<8x192xf32> to vector<8x64xf32>
    %530 = vector.extract_strided_slice %528 {offsets = [0, 64], sizes = [8, 64], strides = [1, 1]} : vector<8x192xf32> to vector<8x64xf32>
    %531 = vector.extract_strided_slice %528 {offsets = [0, 128], sizes = [8, 64], strides = [1, 1]} : vector<8x192xf32> to vector<8x64xf32>
    %532 = vector.extract_strided_slice %522 {offsets = [0, 192], sizes = [8, 64], strides = [1, 1]} : vector<8x256xf32> to vector<8x64xf32>
    %533 = math.tanh %532 : vector<8x64xf32>
    %534 = arith.mulf %530, %513 : vector<8x64xf32>
    %535 = arith.mulf %529, %533 : vector<8x64xf32>
    %536 = arith.addf %534, %535 : vector<8x64xf32>
    %537 = math.tanh %536 : vector<8x64xf32>
    %538 = arith.mulf %531, %537 : vector<8x64xf32>
    %c23_i32 = arith.constant 23 : i32
    %c8_i32_103 = arith.constant 8 : i32
    %539 = arith.muli %c23_i32, %c8_i32_103 : i32
    %540 = tpu.assume_multiple %539, 8 : i32
    %541 = arith.truncf %538 : vector<8x64xf32> to vector<8x64xbf16>
    %cst_104 = arith.constant dense<0.000000e+00> : vector<8x256xf32>
    %542 = tpu.matmul %541, %7, %cst_104 {dimension_numbers = #tpu.dot_dimension_numbers<[1], [0], [0], [1], [0, 0, 1, 1], [], []>} : vector<8x64xbf16>, vector<64x256xbf16>, vector<8x256xf32> -> vector<8x256xf32>
    %543 = arith.index_cast %540 : i32 to index
    %c0_105 = arith.constant 0 : index
    %544 = vector.load %arg7[%543, %c0_105] : memref<224x256xf32, #tpu.memory_space<vmem>>, vector<8x256xf32>
    %545 = arith.addf %542, %544 : vector<8x256xf32>
    %546 = vector.extract_strided_slice %545 {offsets = [0, 0], sizes = [8, 192], strides = [1, 1]} : vector<8x256xf32> to vector<8x192xf32>
    %547 = arith.negf %546 : vector<8x192xf32>
    %548 = math.exp %547 : vector<8x192xf32>
    %cst_106 = arith.constant 1.000000e+00 : f32
    %549 = vector.broadcast %cst_106 : f32 to vector<8x192xf32>
    %550 = arith.addf %549, %548 : vector<8x192xf32>
    %551 = arith.divf %549, %550 : vector<8x192xf32>
    %552 = vector.extract_strided_slice %551 {offsets = [0, 0], sizes = [8, 64], strides = [1, 1]} : vector<8x192xf32> to vector<8x64xf32>
    %553 = vector.extract_strided_slice %551 {offsets = [0, 64], sizes = [8, 64], strides = [1, 1]} : vector<8x192xf32> to vector<8x64xf32>
    %554 = vector.extract_strided_slice %551 {offsets = [0, 128], sizes = [8, 64], strides = [1, 1]} : vector<8x192xf32> to vector<8x64xf32>
    %555 = vector.extract_strided_slice %545 {offsets = [0, 192], sizes = [8, 64], strides = [1, 1]} : vector<8x256xf32> to vector<8x64xf32>
    %556 = math.tanh %555 : vector<8x64xf32>
    %557 = arith.mulf %553, %536 : vector<8x64xf32>
    %558 = arith.mulf %552, %556 : vector<8x64xf32>
    %559 = arith.addf %557, %558 : vector<8x64xf32>
    %560 = math.tanh %559 : vector<8x64xf32>
    %561 = arith.mulf %554, %560 : vector<8x64xf32>
    %c24_i32 = arith.constant 24 : i32
    %c8_i32_107 = arith.constant 8 : i32
    %562 = arith.muli %c24_i32, %c8_i32_107 : i32
    %563 = tpu.assume_multiple %562, 8 : i32
    %564 = arith.truncf %561 : vector<8x64xf32> to vector<8x64xbf16>
    %cst_108 = arith.constant dense<0.000000e+00> : vector<8x256xf32>
    %565 = tpu.matmul %564, %7, %cst_108 {dimension_numbers = #tpu.dot_dimension_numbers<[1], [0], [0], [1], [0, 0, 1, 1], [], []>} : vector<8x64xbf16>, vector<64x256xbf16>, vector<8x256xf32> -> vector<8x256xf32>
    %566 = arith.index_cast %563 : i32 to index
    %c0_109 = arith.constant 0 : index
    %567 = vector.load %arg7[%566, %c0_109] : memref<224x256xf32, #tpu.memory_space<vmem>>, vector<8x256xf32>
    %568 = arith.addf %565, %567 : vector<8x256xf32>
    %569 = vector.extract_strided_slice %568 {offsets = [0, 0], sizes = [8, 192], strides = [1, 1]} : vector<8x256xf32> to vector<8x192xf32>
    %570 = arith.negf %569 : vector<8x192xf32>
    %571 = math.exp %570 : vector<8x192xf32>
    %cst_110 = arith.constant 1.000000e+00 : f32
    %572 = vector.broadcast %cst_110 : f32 to vector<8x192xf32>
    %573 = arith.addf %572, %571 : vector<8x192xf32>
    %574 = arith.divf %572, %573 : vector<8x192xf32>
    %575 = vector.extract_strided_slice %574 {offsets = [0, 0], sizes = [8, 64], strides = [1, 1]} : vector<8x192xf32> to vector<8x64xf32>
    %576 = vector.extract_strided_slice %574 {offsets = [0, 64], sizes = [8, 64], strides = [1, 1]} : vector<8x192xf32> to vector<8x64xf32>
    %577 = vector.extract_strided_slice %574 {offsets = [0, 128], sizes = [8, 64], strides = [1, 1]} : vector<8x192xf32> to vector<8x64xf32>
    %578 = vector.extract_strided_slice %568 {offsets = [0, 192], sizes = [8, 64], strides = [1, 1]} : vector<8x256xf32> to vector<8x64xf32>
    %579 = math.tanh %578 : vector<8x64xf32>
    %580 = arith.mulf %576, %559 : vector<8x64xf32>
    %581 = arith.mulf %575, %579 : vector<8x64xf32>
    %582 = arith.addf %580, %581 : vector<8x64xf32>
    %583 = math.tanh %582 : vector<8x64xf32>
    %584 = arith.mulf %577, %583 : vector<8x64xf32>
    %c25_i32 = arith.constant 25 : i32
    %c8_i32_111 = arith.constant 8 : i32
    %585 = arith.muli %c25_i32, %c8_i32_111 : i32
    %586 = tpu.assume_multiple %585, 8 : i32
    %587 = arith.truncf %584 : vector<8x64xf32> to vector<8x64xbf16>
    %cst_112 = arith.constant dense<0.000000e+00> : vector<8x256xf32>
    %588 = tpu.matmul %587, %7, %cst_112 {dimension_numbers = #tpu.dot_dimension_numbers<[1], [0], [0], [1], [0, 0, 1, 1], [], []>} : vector<8x64xbf16>, vector<64x256xbf16>, vector<8x256xf32> -> vector<8x256xf32>
    %589 = arith.index_cast %586 : i32 to index
    %c0_113 = arith.constant 0 : index
    %590 = vector.load %arg7[%589, %c0_113] : memref<224x256xf32, #tpu.memory_space<vmem>>, vector<8x256xf32>
    %591 = arith.addf %588, %590 : vector<8x256xf32>
    %592 = vector.extract_strided_slice %591 {offsets = [0, 0], sizes = [8, 192], strides = [1, 1]} : vector<8x256xf32> to vector<8x192xf32>
    %593 = arith.negf %592 : vector<8x192xf32>
    %594 = math.exp %593 : vector<8x192xf32>
    %cst_114 = arith.constant 1.000000e+00 : f32
    %595 = vector.broadcast %cst_114 : f32 to vector<8x192xf32>
    %596 = arith.addf %595, %594 : vector<8x192xf32>
    %597 = arith.divf %595, %596 : vector<8x192xf32>
    %598 = vector.extract_strided_slice %597 {offsets = [0, 0], sizes = [8, 64], strides = [1, 1]} : vector<8x192xf32> to vector<8x64xf32>
    %599 = vector.extract_strided_slice %597 {offsets = [0, 64], sizes = [8, 64], strides = [1, 1]} : vector<8x192xf32> to vector<8x64xf32>
    %600 = vector.extract_strided_slice %597 {offsets = [0, 128], sizes = [8, 64], strides = [1, 1]} : vector<8x192xf32> to vector<8x64xf32>
    %601 = vector.extract_strided_slice %591 {offsets = [0, 192], sizes = [8, 64], strides = [1, 1]} : vector<8x256xf32> to vector<8x64xf32>
    %602 = math.tanh %601 : vector<8x64xf32>
    %603 = arith.mulf %599, %582 : vector<8x64xf32>
    %604 = arith.mulf %598, %602 : vector<8x64xf32>
    %605 = arith.addf %603, %604 : vector<8x64xf32>
    %606 = math.tanh %605 : vector<8x64xf32>
    %607 = arith.mulf %600, %606 : vector<8x64xf32>
    %c26_i32 = arith.constant 26 : i32
    %c8_i32_115 = arith.constant 8 : i32
    %608 = arith.muli %c26_i32, %c8_i32_115 : i32
    %609 = tpu.assume_multiple %608, 8 : i32
    %610 = arith.truncf %607 : vector<8x64xf32> to vector<8x64xbf16>
    %cst_116 = arith.constant dense<0.000000e+00> : vector<8x256xf32>
    %611 = tpu.matmul %610, %7, %cst_116 {dimension_numbers = #tpu.dot_dimension_numbers<[1], [0], [0], [1], [0, 0, 1, 1], [], []>} : vector<8x64xbf16>, vector<64x256xbf16>, vector<8x256xf32> -> vector<8x256xf32>
    %612 = arith.index_cast %609 : i32 to index
    %c0_117 = arith.constant 0 : index
    %613 = vector.load %arg7[%612, %c0_117] : memref<224x256xf32, #tpu.memory_space<vmem>>, vector<8x256xf32>
    %614 = arith.addf %611, %613 : vector<8x256xf32>
    %615 = vector.extract_strided_slice %614 {offsets = [0, 0], sizes = [8, 192], strides = [1, 1]} : vector<8x256xf32> to vector<8x192xf32>
    %616 = arith.negf %615 : vector<8x192xf32>
    %617 = math.exp %616 : vector<8x192xf32>
    %cst_118 = arith.constant 1.000000e+00 : f32
    %618 = vector.broadcast %cst_118 : f32 to vector<8x192xf32>
    %619 = arith.addf %618, %617 : vector<8x192xf32>
    %620 = arith.divf %618, %619 : vector<8x192xf32>
    %621 = vector.extract_strided_slice %620 {offsets = [0, 0], sizes = [8, 64], strides = [1, 1]} : vector<8x192xf32> to vector<8x64xf32>
    %622 = vector.extract_strided_slice %620 {offsets = [0, 64], sizes = [8, 64], strides = [1, 1]} : vector<8x192xf32> to vector<8x64xf32>
    %623 = vector.extract_strided_slice %620 {offsets = [0, 128], sizes = [8, 64], strides = [1, 1]} : vector<8x192xf32> to vector<8x64xf32>
    %624 = vector.extract_strided_slice %614 {offsets = [0, 192], sizes = [8, 64], strides = [1, 1]} : vector<8x256xf32> to vector<8x64xf32>
    %625 = math.tanh %624 : vector<8x64xf32>
    %626 = arith.mulf %622, %605 : vector<8x64xf32>
    %627 = arith.mulf %621, %625 : vector<8x64xf32>
    %628 = arith.addf %626, %627 : vector<8x64xf32>
    %629 = math.tanh %628 : vector<8x64xf32>
    %630 = arith.mulf %623, %629 : vector<8x64xf32>
    %c27_i32 = arith.constant 27 : i32
    %c8_i32_119 = arith.constant 8 : i32
    %631 = arith.muli %c27_i32, %c8_i32_119 : i32
    %632 = tpu.assume_multiple %631, 8 : i32
    %633 = arith.truncf %630 : vector<8x64xf32> to vector<8x64xbf16>
    %cst_120 = arith.constant dense<0.000000e+00> : vector<8x256xf32>
    %634 = tpu.matmul %633, %7, %cst_120 {dimension_numbers = #tpu.dot_dimension_numbers<[1], [0], [0], [1], [0, 0, 1, 1], [], []>} : vector<8x64xbf16>, vector<64x256xbf16>, vector<8x256xf32> -> vector<8x256xf32>
    %635 = arith.index_cast %632 : i32 to index
    %c0_121 = arith.constant 0 : index
    %636 = vector.load %arg7[%635, %c0_121] : memref<224x256xf32, #tpu.memory_space<vmem>>, vector<8x256xf32>
    %637 = arith.addf %634, %636 : vector<8x256xf32>
    %638 = vector.extract_strided_slice %637 {offsets = [0, 0], sizes = [8, 192], strides = [1, 1]} : vector<8x256xf32> to vector<8x192xf32>
    %639 = arith.negf %638 : vector<8x192xf32>
    %640 = math.exp %639 : vector<8x192xf32>
    %cst_122 = arith.constant 1.000000e+00 : f32
    %641 = vector.broadcast %cst_122 : f32 to vector<8x192xf32>
    %642 = arith.addf %641, %640 : vector<8x192xf32>
    %643 = arith.divf %641, %642 : vector<8x192xf32>
    %644 = vector.extract_strided_slice %643 {offsets = [0, 0], sizes = [8, 64], strides = [1, 1]} : vector<8x192xf32> to vector<8x64xf32>
    %645 = vector.extract_strided_slice %643 {offsets = [0, 64], sizes = [8, 64], strides = [1, 1]} : vector<8x192xf32> to vector<8x64xf32>
    %646 = vector.extract_strided_slice %643 {offsets = [0, 128], sizes = [8, 64], strides = [1, 1]} : vector<8x192xf32> to vector<8x64xf32>
    %647 = vector.extract_strided_slice %637 {offsets = [0, 192], sizes = [8, 64], strides = [1, 1]} : vector<8x256xf32> to vector<8x64xf32>
    %648 = math.tanh %647 : vector<8x64xf32>
    %649 = arith.mulf %645, %628 : vector<8x64xf32>
    %650 = arith.mulf %644, %648 : vector<8x64xf32>
    %651 = arith.addf %649, %650 : vector<8x64xf32>
    %652 = math.tanh %651 : vector<8x64xf32>
    %653 = arith.mulf %646, %652 : vector<8x64xf32>
    %c28_i32 = arith.constant 28 : i32
    %c0_123 = arith.constant 0 : index
    %c0_124 = arith.constant 0 : index
    %654 = vector.load %arg4[%c0_123, %c0_124] : memref<64x128xf32, #tpu.memory_space<vmem>>, vector<64x128xf32>
    %cst_125 = arith.constant dense<0.000000e+00> : vector<8x128xf32>
    %655 = tpu.matmul %653, %654, %cst_125 {dimension_numbers = #tpu.dot_dimension_numbers<[1], [0], [0], [1], [0, 0, 1, 1], [], []>} : vector<8x64xf32>, vector<64x128xf32>, vector<8x128xf32> -> vector<8x128xf32>
    %c0_126 = arith.constant 0 : index
    %c0_127 = arith.constant 0 : index
    %656 = vector.load %arg5[%c0_126, %c0_127] : memref<1x128xf32, #tpu.memory_space<vmem>>, vector<1x128xf32>
    %657 = vector.broadcast %656 : vector<1x128xf32> to vector<8x128xf32>
    %658 = arith.addf %655, %657 : vector<8x128xf32>
    %cst_128 = arith.constant dense<0xFF800000> : vector<8xf32>
    %659 = vector.multi_reduction <maximumf>, %658, %cst_128 [1] : vector<8x128xf32> to vector<8xf32>
    %660 = vector.shape_cast %659 : vector<8xf32> to vector<8x1xf32>
    %661 = vector.broadcast %660 : vector<8x1xf32> to vector<8x128xf32>
    %662 = arith.subf %658, %661 : vector<8x128xf32>
    %663 = math.exp %662 : vector<8x128xf32>
    %cst_129 = arith.constant dense<0.000000e+00> : vector<8xf32>
    %664 = vector.multi_reduction <add>, %663, %cst_129 [1] : vector<8x128xf32> to vector<8xf32>
    %665 = vector.shape_cast %664 : vector<8xf32> to vector<8x1xf32>
    %666 = vector.broadcast %665 : vector<8x1xf32> to vector<8x128xf32>
    %667 = arith.divf %663, %666 : vector<8x128xf32>
    %c0_130 = arith.constant 0 : index
    %c0_131 = arith.constant 0 : index
    %668 = vector.load %arg6[%c0_130, %c0_131] : memref<8x128xf32, #tpu.memory_space<vmem>>, vector<8x128xf32>
    tpu.vector_store %arg6[%c0_130, %c0_131], %667 {strides = array<i32>} : memref<8x128xf32, #tpu.memory_space<vmem>>, vector<8x128xf32>,
    return
  }
}

</mosaic_0001>

<llo_original>
// kernel: lstm_forward.1
$region0: #{lstm_forward.1}
  #allocation0 [shape = 'u32[]', space=smem, size = 0x4, offset = 0x4, fixed_abs, tag = 'smem constant byte address 0x4 - core index']
  #allocation1 [shape = 'u32[144,128]{1,0:T(1,128)}', space=vmem, size = 0x12000, scoped, tag = 'internal scratch']
  #allocation2 [shape = 'f32[224,256]{1,0:T(8,128)}', space=vmem, size = 0x38000, scoped, tag = 'scratch operand']
  %s0 = inlined_call_operand.vmem [shape: f32[224,28], index: 0, kind: input, shape index: {}]
  %s1 = inlined_call_operand.vmem [shape: f32[28,256], index: 1, kind: input, shape index: {}]
  %s2 = inlined_call_operand.vmem [shape: bf16[64,256], index: 2, kind: input, shape index: {}]
  %s3 = inlined_call_operand.vmem [shape: f32[1,256], index: 3, kind: input, shape index: {}]
  %s4 = inlined_call_operand.vmem [shape: f32[64,128], index: 4, kind: input, shape index: {}]
  %s5 = inlined_call_operand.vmem [shape: f32[1,128], index: 5, kind: input, shape index: {}]
  %s6 = inlined_call_operand.vmem [shape: f32[8,128], index: 6, kind: output, shape index: {}]
  %s7 = sld [smem:[#allocation0]]
  $region34: #{lstm_forward.1} parent=0
    _
  %s9 = ssub.s32 1, %s7
  %s10 = scalar_select 0, %s9, %s7
  // Predicated region
  $region2: #{lstm_forward.1} parent=0 // pred_check
    _
  $region3: #{lstm_forward.1} parent=0 // pred_check_branch
    %12 = sbr.rel (0) target = $region5
  $region4: #{lstm_forward.1} parent=0 // pred_region
    _
  $region5: #{lstm_forward.1} parent=0 // pred_fallthru
    _
  // Predicated region
  $region6: #{lstm_forward.1} parent=0 // pred_check
    _
  $region7: #{lstm_forward.1} parent=0 // pred_check_branch
    %14 = sbr.rel (0) target = $region9
  $region8: #{lstm_forward.1} parent=0 // pred_region
    _
  $region9: #{lstm_forward.1} parent=0 // pred_fallthru
    _
  // Predicated region
  $region10: #{lstm_forward.1} parent=0 // pred_check
    _
  $region11: #{lstm_forward.1} parent=0 // pred_check_branch
    %16 = sbr.rel (0) target = $region13
  $region12: #{lstm_forward.1} parent=0 // pred_region
    _
  $region13: #{lstm_forward.1} parent=0 // pred_fallthru
    _
  // Predicated region
  $region14: #{lstm_forward.1} parent=0 // pred_check
    _
  $region15: #{lstm_forward.1} parent=0 // pred_check_branch
    %18 = sbr.rel (0) target = $region17
  $region16: #{lstm_forward.1} parent=0 // pred_region
    _
  $region17: #{lstm_forward.1} parent=0 // pred_fallthru
    _
  // Predicated region
  $region18: #{lstm_forward.1} parent=0 // pred_check
    _
  $region19: #{lstm_forward.1} parent=0 // pred_check_branch
    %20 = sbr.rel (0) target = $region21
  $region20: #{lstm_forward.1} parent=0 // pred_region
    _
  $region21: #{lstm_forward.1} parent=0 // pred_fallthru
    _
  // Predicated region
  $region22: #{lstm_forward.1} parent=0 // pred_check
    _
  $region23: #{lstm_forward.1} parent=0 // pred_check_branch
    %22 = sbr.rel (0) target = $region25
  $region24: #{lstm_forward.1} parent=0 // pred_region
    _
  $region25: #{lstm_forward.1} parent=0 // pred_fallthru
    _
  %v24 = vld [vmem:[%s0] sm:$0xff]
  %v25 = vld [vmem:[%s0 + $0x8] sm:$0xff]
  %v26 = vld [vmem:[%s0 + $0x10] sm:$0xff]
  %v27 = vld [vmem:[%s0 + $0x18] sm:$0xff]
  %v28 = vld [vmem:[%s0 + $0x20] sm:$0xff]
  %v29 = vld [vmem:[%s0 + $0x28] sm:$0xff]
  %v30 = vld [vmem:[%s0 + $0x30] sm:$0xff]
  %v31 = vld [vmem:[%s0 + $0x38] sm:$0xff]
  %v32 = vld [vmem:[%s0 + $0x40] sm:$0xff]
  %v33 = vld [vmem:[%s0 + $0x48] sm:$0xff]
  %v34 = vld [vmem:[%s0 + $0x50] sm:$0xff]
  %v35 = vld [vmem:[%s0 + $0x58] sm:$0xff]
  %v36 = vld [vmem:[%s0 + $0x60] sm:$0xff]
  %v37 = vld [vmem:[%s0 + $0x68] sm:$0xff]
  %v38 = vld [vmem:[%s0 + $0x70] sm:$0xff]
  %v39 = vld [vmem:[%s0 + $0x78] sm:$0xff]
  %v40 = vld [vmem:[%s0 + $0x80] sm:$0xff]
  %v41 = vld [vmem:[%s0 + $0x88] sm:$0xff]
  %v42 = vld [vmem:[%s0 + $0x90] sm:$0xff]
  %v43 = vld [vmem:[%s0 + $0x98] sm:$0xff]
  %v44 = vld [vmem:[%s0 + $0xa0] sm:$0xff]
  %v45 = vld [vmem:[%s0 + $0xa8] sm:$0xff]
  %v46 = vld [vmem:[%s0 + $0xb0] sm:$0xff]
  %v47 = vld [vmem:[%s0 + $0xb8] sm:$0xff]
  %v48 = vld [vmem:[%s0 + $0xc0] sm:$0xff]
  %v49 = vld [vmem:[%s0 + $0xc8] sm:$0xff]
  %v50 = vld [vmem:[%s0 + $0xd0] sm:$0xff]
  %v51 = vld [vmem:[%s0 + $0xd8] sm:$0xff]
  %v52 = vld [vmem:[%s1] sm:$0xff]
  %v53 = vld [vmem:[%s1 + $0x8] sm:$0xff]
  %v54 = vld [vmem:[%s1 + $0x10] sm:$0xff]
  %v55 = vld [vmem:[%s1 + $0x18] sm:$0xff]
  %v56 = vld [vmem:[%s1 + $0x20] sm:$0xff]
  %v57 = vld [vmem:[%s1 + $0x28] sm:$0xff]
  %v58 = vld [vmem:[%s1 + $0x30] sm:$0xf]
  %v59 = vld [vmem:[%s1 + $0x38] sm:$0xf]
  %v60 = vld [vmem:[%s3] sm:$0x3]
  %v62 = vlaneseq
  %v63 = vshrl.u32 %v62, 7
  %v64 = vsub.s32 0, %v63
  %v65 = vrot.slane %v60, %v64
  %v66 = vlaneseq
  %v67 = vshrl.u32 %v66, 7
  %v68 = vsub.s32 1, %v67
  %v69 = vrot.slane %v60, %v68
  %vm72 = vcmask 228352
  %v74 = vsel %vm72, %v24, 0
  %v77 = vsel %vm72, %v25, 0
  %v80 = vsel %vm72, %v26, 0
  %v83 = vsel %vm72, %v27, 0
  %v86 = vsel %vm72, %v28, 0
  %v89 = vsel %vm72, %v29, 0
  %v92 = vsel %vm72, %v30, 0
  %v95 = vsel %vm72, %v31, 0
  %v98 = vsel %vm72, %v32, 0
  %v101 = vsel %vm72, %v33, 0
  %v104 = vsel %vm72, %v34, 0
  %v107 = vsel %vm72, %v35, 0
  %v110 = vsel %vm72, %v36, 0
  %v113 = vsel %vm72, %v37, 0
  %v116 = vsel %vm72, %v38, 0
  %v119 = vsel %vm72, %v39, 0
  %v122 = vsel %vm72, %v40, 0
  %v125 = vsel %vm72, %v41, 0
  %v128 = vsel %vm72, %v42, 0
  %v131 = vsel %vm72, %v43, 0
  %v134 = vsel %vm72, %v44, 0
  %v137 = vsel %vm72, %v45, 0
  %v140 = vsel %vm72, %v46, 0
  %v143 = vsel %vm72, %v47, 0
  %v146 = vsel %vm72, %v48, 0
  %v149 = vsel %vm72, %v49, 0
  %v152 = vsel %vm72, %v50, 0
  %v155 = vsel %vm72, %v51, 0
  %vm157 = vcmask 1043456
  %v159 = vsel %vm157, %v58, 0
  %v162 = vsel %vm157, %v59, 0
  %164 = vmatprep.subr.mxu0 0.0
  %165 = vmatpush1.msra.mxu0 0.0
  %166 = vmatprep.subr.mxu0 0.0
  %167 = vmatpush1.msra.mxu0 0.0
  %168 = vmatprep.subr.mxu0 0.0
  %169 = vmatpush1.msra.mxu0 0.0
  %170 = vmatprep.subr.mxu0 0.0
  %171 = vmatpush1.msra.mxu0 0.0
  %172 = vmatprep.subr.mxu0 0.0
  %173 = vmatpush1.msra.mxu0 0.0
  %174 = vmatprep.subr.mxu0 0.0
  %175 = vmatpush1.msra.mxu0 0.0
  %176 = vmatprep.subr.mxu0 0.0
  %177 = vmatpush1.msra.mxu0 0.0
  %178 = vmatprep.subr.mxu0 0.0
  %179 = vmatpush1.msra.mxu0 0.0
  %180 = vmatprep.subr.mxu0 0.0
  %181 = vmatpush1.msra.mxu0 0.0
  %182 = vmatprep.subr.mxu0 0.0
  %183 = vmatpush1.msra.mxu0 0.0
  %184 = vmatprep.subr.mxu0 0.0
  %185 = vmatpush1.msra.mxu0 0.0
  %186 = vmatprep.subr.mxu0 0.0
  %187 = vmatpush1.msra.mxu0 0.0
  %188 = vmatprep.subr.mxu0 %v162
  %189 = vmatpush1.msra.mxu0 %v159
  %190 = vmatprep.subr.mxu0 %v57
  %191 = vmatpush1.msra.mxu0 %v56
  %192 = vmatprep.subr.mxu0 %v55
  %193 = vmatpush1.msra.mxu0 %v54
  %194 = vmatprep.subr.mxu0 %v53
  %195 = vmatpush1.msra.mxu0 %v52
  %196 = vmatprep.subr.mxu0 0.0
  %197 = vmatpush2.msra.mxu0 0.0
  %198 = vmatprep.subr.mxu0 0.0
  %199 = vmatpush2.msra.mxu0 0.0
  %200 = vmatprep.subr.mxu0 0.0
  %201 = vmatpush2.msra.mxu0 0.0
  %202 = vmatprep.subr.mxu0 0.0
  %203 = vmatpush2.msra.mxu0 0.0
  %204 = vmatprep.subr.mxu0 0.0
  %205 = vmatpush2.msra.mxu0 0.0
  %206 = vmatprep.subr.mxu0 0.0
  %207 = vmatpush2.msra.mxu0 0.0
  %208 = vmatprep.subr.mxu0 0.0
  %209 = vmatpush2.msra.mxu0 0.0
  %210 = vmatprep.subr.mxu0 0.0
  %211 = vmatpush2.msra.mxu0 0.0
  %212 = vmatprep.subr.mxu0 0.0
  %213 = vmatpush2.msra.mxu0 0.0
  %214 = vmatprep.subr.mxu0 0.0
  %215 = vmatpush2.msra.mxu0 0.0
  %216 = vmatprep.subr.mxu0 0.0
  %217 = vmatpush2.msra.mxu0 0.0
  %218 = vmatprep.subr.mxu0 0.0
  %219 = vmatpush2.msra.mxu0 0.0
  %220 = vmatprep.subr.mxu0 0.0
  %221 = vmatpush2.msra.mxu0 0.0
  %222 = vmatprep.subr.mxu0 0.0
  %223 = vmatpush2.msra.mxu0 0.0
  %224 = vmatprep.subr.mxu0 0.0
  %225 = vmatpush2.msra.mxu0 0.0
  %226 = vmatprep.subr.mxu0 0.0
  %227 = vmatpush2.msra.mxu0 0.0
  %228 = vmatprep.mubr.f32.mxu0 0.0
  %229 = vmatmul.mubr.f32.gmra.mxu0 %v74
  %v230 = vpop.f32.mrf.mxu0
  %v231 = vadd.f32 %v65, %v230
  %v232 = vpop.f32.mrf.mxu0
  %v233 = vadd.f32 %v69, %v232
  %234 = vmatprep.mubr.f32.mxu0 0.0
  %235 = vmatmul.mubr.f32.gmra.mxu0 %v77
  %v236 = vpop.f32.mrf.mxu0
  %v237 = vadd.f32 %v65, %v236
  %v238 = vpop.f32.mrf.mxu0
  %v239 = vadd.f32 %v69, %v238
  %240 = vmatprep.mubr.f32.mxu0 0.0
  %241 = vmatmul.mubr.f32.gmra.mxu0 %v80
  %v242 = vpop.f32.mrf.mxu0
  %v243 = vadd.f32 %v65, %v242
  %v244 = vpop.f32.mrf.mxu0
  %v245 = vadd.f32 %v69, %v244
  %246 = vmatprep.mubr.f32.mxu0 0.0
  %247 = vmatmul.mubr.f32.gmra.mxu0 %v83
  %v248 = vpop.f32.mrf.mxu0
  %v249 = vadd.f32 %v65, %v248
  %v250 = vpop.f32.mrf.mxu0
  %v251 = vadd.f32 %v69, %v250
  %252 = vmatprep.mubr.f32.mxu0 0.0
  %253 = vmatmul.mubr.f32.gmra.mxu0 %v86
  %v254 = vpop.f32.mrf.mxu0
  %v255 = vadd.f32 %v65, %v254
  %v256 = vpop.f32.mrf.mxu0
  %v257 = vadd.f32 %v69, %v256
  %258 = vmatprep.mubr.f32.mxu0 0.0
  %259 = vmatmul.mubr.f32.gmra.mxu0 %v89
  %v260 = vpop.f32.mrf.mxu0
  %v261 = vadd.f32 %v65, %v260
  %v262 = vpop.f32.mrf.mxu0
  %v263 = vadd.f32 %v69, %v262
  %264 = vmatprep.mubr.f32.mxu0 0.0
  %265 = vmatmul.mubr.f32.gmra.mxu0 %v92
  %v266 = vpop.f32.mrf.mxu0
  %v267 = vadd.f32 %v65, %v266
  %v268 = vpop.f32.mrf.mxu0
  %v269 = vadd.f32 %v69, %v268
  %270 = vmatprep.mubr.f32.mxu0 0.0
  %271 = vmatmul.mubr.f32.gmra.mxu0 %v95
  %v272 = vpop.f32.mrf.mxu0
  %v273 = vadd.f32 %v65, %v272
  %v274 = vpop.f32.mrf.mxu0
  %v275 = vadd.f32 %v69, %v274
  %276 = vmatprep.mubr.f32.mxu0 0.0
  %277 = vmatmul.mubr.f32.gmra.mxu0 %v98
  %v278 = vpop.f32.mrf.mxu0
  %v279 = vadd.f32 %v65, %v278
  %v280 = vpop.f32.mrf.mxu0
  %v281 = vadd.f32 %v69, %v280
  %282 = vmatprep.mubr.f32.mxu0 0.0
  %283 = vmatmul.mubr.f32.gmra.mxu0 %v101
  %v284 = vpop.f32.mrf.mxu0
  %v285 = vadd.f32 %v65, %v284
  %v286 = vpop.f32.mrf.mxu0
  %v287 = vadd.f32 %v69, %v286
  %288 = vmatprep.mubr.f32.mxu0 0.0
  %289 = vmatmul.mubr.f32.gmra.mxu0 %v104
  %v290 = vpop.f32.mrf.mxu0
  %v291 = vadd.f32 %v65, %v290
  %v292 = vpop.f32.mrf.mxu0
  %v293 = vadd.f32 %v69, %v292
  %294 = vmatprep.mubr.f32.mxu0 0.0
  %295 = vmatmul.mubr.f32.gmra.mxu0 %v107
  %v296 = vpop.f32.mrf.mxu0
  %v297 = vadd.f32 %v65, %v296
  %v298 = vpop.f32.mrf.mxu0
  %v299 = vadd.f32 %v69, %v298
  %300 = vmatprep.mubr.f32.mxu0 0.0
  %301 = vmatmul.mubr.f32.gmra.mxu0 %v110
  %v302 = vpop.f32.mrf.mxu0
  %v303 = vadd.f32 %v65, %v302
  %v304 = vpop.f32.mrf.mxu0
  %v305 = vadd.f32 %v69, %v304
  %306 = vmatprep.mubr.f32.mxu0 0.0
  %307 = vmatmul.mubr.f32.gmra.mxu0 %v113
  %v308 = vpop.f32.mrf.mxu0
  %v309 = vadd.f32 %v65, %v308
  %v310 = vpop.f32.mrf.mxu0
  %v311 = vadd.f32 %v69, %v310
  %312 = vmatprep.mubr.f32.mxu0 0.0
  %313 = vmatmul.mubr.f32.gmra.mxu0 %v116
  %v314 = vpop.f32.mrf.mxu0
  %v315 = vadd.f32 %v65, %v314
  %v316 = vpop.f32.mrf.mxu0
  %v317 = vadd.f32 %v69, %v316
  %318 = vmatprep.mubr.f32.mxu0 0.0
  %319 = vmatmul.mubr.f32.gmra.mxu0 %v119
  %v320 = vpop.f32.mrf.mxu0
  %v321 = vadd.f32 %v65, %v320
  %v322 = vpop.f32.mrf.mxu0
  %v323 = vadd.f32 %v69, %v322
  %324 = vmatprep.mubr.f32.mxu0 0.0
  %325 = vmatmul.mubr.f32.gmra.mxu0 %v122
  %v326 = vpop.f32.mrf.mxu0
  %v327 = vadd.f32 %v65, %v326
  %v328 = vpop.f32.mrf.mxu0
  %v329 = vadd.f32 %v69, %v328
  %330 = vmatprep.mubr.f32.mxu0 0.0
  %331 = vmatmul.mubr.f32.gmra.mxu0 %v125
  %v332 = vpop.f32.mrf.mxu0
  %v333 = vadd.f32 %v65, %v332
  %v334 = vpop.f32.mrf.mxu0
  %v335 = vadd.f32 %v69, %v334
  %336 = vmatprep.mubr.f32.mxu0 0.0
  %337 = vmatmul.mubr.f32.gmra.mxu0 %v128
  %v338 = vpop.f32.mrf.mxu0
  %v339 = vadd.f32 %v65, %v338
  %v340 = vpop.f32.mrf.mxu0
  %v341 = vadd.f32 %v69, %v340
  %342 = vmatprep.mubr.f32.mxu0 0.0
  %343 = vmatmul.mubr.f32.gmra.mxu0 %v131
  %v344 = vpop.f32.mrf.mxu0
  %v345 = vadd.f32 %v65, %v344
  %v346 = vpop.f32.mrf.mxu0
  %v347 = vadd.f32 %v69, %v346
  %348 = vmatprep.mubr.f32.mxu0 0.0
  %349 = vmatmul.mubr.f32.gmra.mxu0 %v134
  %v350 = vpop.f32.mrf.mxu0
  %v351 = vadd.f32 %v65, %v350
  %v352 = vpop.f32.mrf.mxu0
  %v353 = vadd.f32 %v69, %v352
  %354 = vmatprep.mubr.f32.mxu0 0.0
  %355 = vmatmul.mubr.f32.gmra.mxu0 %v137
  %v356 = vpop.f32.mrf.mxu0
  %v357 = vadd.f32 %v65, %v356
  %v358 = vpop.f32.mrf.mxu0
  %v359 = vadd.f32 %v69, %v358
  %360 = vmatprep.mubr.f32.mxu0 0.0
  %361 = vmatmul.mubr.f32.gmra.mxu0 %v140
  %v362 = vpop.f32.mrf.mxu0
  %v363 = vadd.f32 %v65, %v362
  %v364 = vpop.f32.mrf.mxu0
  %v365 = vadd.f32 %v69, %v364
  %366 = vmatprep.mubr.f32.mxu0 0.0
  %367 = vmatmul.mubr.f32.gmra.mxu0 %v143
  %v368 = vpop.f32.mrf.mxu0
  %v369 = vadd.f32 %v65, %v368
  %v370 = vpop.f32.mrf.mxu0
  %v371 = vadd.f32 %v69, %v370
  %372 = vmatprep.mubr.f32.mxu0 0.0
  %373 = vmatmul.mubr.f32.gmra.mxu0 %v146
  %v374 = vpop.f32.mrf.mxu0
  %v375 = vadd.f32 %v65, %v374
  %v376 = vpop.f32.mrf.mxu0
  %v377 = vadd.f32 %v69, %v376
  %378 = vmatprep.mubr.f32.mxu0 0.0
  %379 = vmatmul.mubr.f32.gmra.mxu0 %v149
  %v380 = vpop.f32.mrf.mxu0
  %v381 = vadd.f32 %v65, %v380
  %v382 = vpop.f32.mrf.mxu0
  %v383 = vadd.f32 %v69, %v382
  %384 = vmatprep.mubr.f32.mxu0 0.0
  %385 = vmatmul.mubr.f32.gmra.mxu0 %v152
  %v386 = vpop.f32.mrf.mxu0
  %v387 = vadd.f32 %v65, %v386
  %v388 = vpop.f32.mrf.mxu0
  %v389 = vadd.f32 %v69, %v388
  %390 = vmatprep.mubr.f32.mxu0 0.0
  %391 = vmatmul.mubr.f32.gmra.mxu0 %v155
  %v392 = vpop.f32.mrf.mxu0
  %v393 = vadd.f32 %v65, %v392
  %v394 = vpop.f32.mrf.mxu0
  %v395 = vadd.f32 %v69, %v394
  %396 = vdwg.mxu0
  %397 = vst [vmem:[#allocation2] sm:$0xff] %v231
  %398 = vst [vmem:[#allocation2 + $0x8] sm:$0xff] %v233
  %399 = vst [vmem:[#allocation2 + $0x10] sm:$0xff] %v237
  %400 = vst [vmem:[#allocation2 + $0x18] sm:$0xff] %v239
  %401 = vst [vmem:[#allocation2 + $0x20] sm:$0xff] %v243
  %402 = vst [vmem:[#allocation2 + $0x28] sm:$0xff] %v245
  %403 = vst [vmem:[#allocation2 + $0x30] sm:$0xff] %v249
  %404 = vst [vmem:[#allocation2 + $0x38] sm:$0xff] %v251
  %405 = vst [vmem:[#allocation2 + $0x40] sm:$0xff] %v255
  %406 = vst [vmem:[#allocation2 + $0x48] sm:$0xff] %v257
  %407 = vst [vmem:[#allocation2 + $0x50] sm:$0xff] %v261
  %408 = vst [vmem:[#allocation2 + $0x58] sm:$0xff] %v263
  %409 = vst [vmem:[#allocation2 + $0x60] sm:$0xff] %v267
  %410 = vst [vmem:[#allocation2 + $0x68] sm:$0xff] %v269
  %411 = vst [vmem:[#allocation2 + $0x70] sm:$0xff] %v273
  %412 = vst [vmem:[#allocation2 + $0x78] sm:$0xff] %v275
  %413 = vst [vmem:[#allocation2 + $0x80] sm:$0xff] %v279
  %414 = vst [vmem:[#allocation2 + $0x88] sm:$0xff] %v281
  %415 = vst [vmem:[#allocation2 + $0x90] sm:$0xff] %v285
  %416 = vst [vmem:[#allocation2 + $0x98] sm:$0xff] %v287
  %417 = vst [vmem:[#allocation2 + $0xa0] sm:$0xff] %v291
  %418 = vst [vmem:[#allocation2 + $0xa8] sm:$0xff] %v293
  %419 = vst [vmem:[#allocation2 + $0xb0] sm:$0xff] %v297
  %420 = vst [vmem:[#allocation2 + $0xb8] sm:$0xff] %v299
  %421 = vst [vmem:[#allocation2 + $0xc0] sm:$0xff] %v303
  %422 = vst [vmem:[#allocation2 + $0xc8] sm:$0xff] %v305
  %423 = vst [vmem:[#allocation2 + $0xd0] sm:$0xff] %v309
  %424 = vst [vmem:[#allocation2 + $0xd8] sm:$0xff] %v311
  %425 = vst [vmem:[#allocation2 + $0xe0] sm:$0xff] %v315
  %426 = vst [vmem:[#allocation2 + $0xe8] sm:$0xff] %v317
  %427 = vst [vmem:[#allocation2 + $0xf0] sm:$0xff] %v321
  %428 = vst [vmem:[#allocation2 + $0xf8] sm:$0xff] %v323
  %429 = vst [vmem:[#allocation2 + $0x100] sm:$0xff] %v327
  %430 = vst [vmem:[#allocation2 + $0x108] sm:$0xff] %v329
  %431 = vst [vmem:[#allocation2 + $0x110] sm:$0xff] %v333
  %432 = vst [vmem:[#allocation2 + $0x118] sm:$0xff] %v335
  %433 = vst [vmem:[#allocation2 + $0x120] sm:$0xff] %v339
  %434 = vst [vmem:[#allocation2 + $0x128] sm:$0xff] %v341
  %435 = vst [vmem:[#allocation2 + $0x130] sm:$0xff] %v345
  %436 = vst [vmem:[#allocation2 + $0x138] sm:$0xff] %v347
  %437 = vst [vmem:[#allocation2 + $0x140] sm:$0xff] %v351
  %438 = vst [vmem:[#allocation2 + $0x148] sm:$0xff] %v353
  %439 = vst [vmem:[#allocation2 + $0x150] sm:$0xff] %v357
  %440 = vst [vmem:[#allocation2 + $0x158] sm:$0xff] %v359
  %441 = vst [vmem:[#allocation2 + $0x160] sm:$0xff] %v363
  %442 = vst [vmem:[#allocation2 + $0x168] sm:$0xff] %v365
  %443 = vst [vmem:[#allocation2 + $0x170] sm:$0xff] %v369
  %444 = vst [vmem:[#allocation2 + $0x178] sm:$0xff] %v371
  %445 = vst [vmem:[#allocation2 + $0x180] sm:$0xff] %v375
  %446 = vst [vmem:[#allocation2 + $0x188] sm:$0xff] %v377
  %447 = vst [vmem:[#allocation2 + $0x190] sm:$0xff] %v381
  %448 = vst [vmem:[#allocation2 + $0x198] sm:$0xff] %v383
  %449 = vst [vmem:[#allocation2 + $0x1a0] sm:$0xff] %v387
  %450 = vst [vmem:[#allocation2 + $0x1a8] sm:$0xff] %v389
  %451 = vst [vmem:[#allocation2 + $0x1b0] sm:$0xff] %v393
  %452 = vst [vmem:[#allocation2 + $0x1b8] sm:$0xff] %v395
  %v453 = vld [vmem:[%s2] sm:$0xff]
  %v454 = vld [vmem:[%s2 + $0x8] sm:$0xff]
  %v455 = vld [vmem:[%s2 + $0x10] sm:$0xff]
  %v456 = vld [vmem:[%s2 + $0x18] sm:$0xff]
  %v457 = vld [vmem:[%s2 + $0x20] sm:$0xff]
  %v458 = vld [vmem:[%s2 + $0x28] sm:$0xff]
  %v459 = vld [vmem:[%s2 + $0x30] sm:$0xff]
  %v460 = vld [vmem:[%s2 + $0x38] sm:$0xff]
  %s461 = smul.u32 0, 2
  %s462 = smul.addr %s461, 8
  %s463 = scalar_lea.vmem [#allocation2], %s462
  %v464 = vld [vmem:[%s463] sm:$0xff]
  %v465 = vld [vmem:[%s463 + $0x8] sm:$0xff]
  %v474 = vunpack.c.l.b16 %v453
  %v475 = vunpack.c.h.b16 %v453
  %v476 = vunpack.c.l.b16 %v454
  %v477 = vunpack.c.h.b16 %v454
  %v478 = vunpack.c.l.b16 %v455
  %v479 = vunpack.c.h.b16 %v455
  %v480 = vunpack.c.l.b16 %v456
  %v481 = vunpack.c.h.b16 %v456
  %v482 = vunpack.c.l.b16 %v457
  %v483 = vunpack.c.h.b16 %v457
  %v484 = vunpack.c.l.b16 %v458
  %v485 = vunpack.c.h.b16 %v458
  %v486 = vunpack.c.l.b16 %v459
  %v487 = vunpack.c.h.b16 %v459
  %v488 = vunpack.c.l.b16 %v460
  %v489 = vunpack.c.h.b16 %v460
  %v490 = vpack.c.b16 %v476, %v474
  %v491 = vpack.c.b16 %v477, %v475
  %v492 = vpack.c.b16 %v480, %v478
  %v493 = vpack.c.b16 %v481, %v479
  %v494 = vpack.c.b16 %v484, %v482
  %v495 = vpack.c.b16 %v485, %v483
  %v496 = vpack.c.b16 %v488, %v486
  %v497 = vpack.c.b16 %v489, %v487
  %vm506 = vcmask 523264
  %v508 = vsel %vm506, 0, 0
  %510 = vmatprep.subr.bf16.mxu0 0
  %511 = vmatpush1.bf16.msra.mxu0 0
  %512 = vmatprep.subr.bf16.mxu0 0
  %513 = vmatpush1.bf16.msra.mxu0 0
  %514 = vmatprep.subr.bf16.mxu0 0
  %515 = vmatpush1.bf16.msra.mxu0 0
  %516 = vmatprep.subr.bf16.mxu0 0
  %517 = vmatpush1.bf16.msra.mxu0 0
  %518 = vmatprep.subr.bf16.mxu0 %v497
  %519 = vmatpush1.bf16.msra.mxu0 %v496
  %520 = vmatprep.subr.bf16.mxu0 %v495
  %521 = vmatpush1.bf16.msra.mxu0 %v494
  %522 = vmatprep.subr.bf16.mxu0 %v493
  %523 = vmatpush1.bf16.msra.mxu0 %v492
  %524 = vmatprep.subr.bf16.mxu0 %v491
  %525 = vmatpush1.bf16.msra.mxu0 %v490
  %526 = vmatprep.subr.bf16.mxu0 0
  %527 = vmatpush2.bf16.msra.mxu0 0
  %528 = vmatprep.subr.bf16.mxu0 0
  %529 = vmatpush2.bf16.msra.mxu0 0
  %530 = vmatprep.subr.bf16.mxu0 0
  %531 = vmatpush2.bf16.msra.mxu0 0
  %532 = vmatprep.subr.bf16.mxu0 0
  %533 = vmatpush2.bf16.msra.mxu0 0
  %534 = vmatprep.subr.bf16.mxu0 0
  %535 = vmatpush2.bf16.msra.mxu0 0
  %536 = vmatprep.subr.bf16.mxu0 0
  %537 = vmatpush2.bf16.msra.mxu0 0
  %538 = vmatprep.subr.bf16.mxu0 0
  %539 = vmatpush2.bf16.msra.mxu0 0
  %540 = vmatprep.subr.bf16.mxu0 0
  %541 = vmatpush2.bf16.msra.mxu0 0
  %542 = vmatprep.mubr.bf16.mxu0 0
  %543 = vmatmul.mubr.bf16.gmra.mxu0 %v508
  %v544 = vpop.f32.mrf.mxu0
  %v545 = vadd.f32 %v464, %v544
  %v546 = vpop.f32.mrf.mxu0
  %v547 = vadd.f32 %v465, %v546
  %v548 = vpop.f32.mrf.mxu0
  %v549 = vpop.f32.mrf.mxu0
  %550 = vdwg.mxu0
  %v551 = vxor.u32 %v545, 2147483648
  %v552 = vxor.u32 %v547, 2147483648
  %v553 = vmul.f32 %v551, 1.442695
  %v554 = vpow.pop %v553
  %v555 = vmul.f32 %v552, 1.442695
  %v556 = vpow.pop %v555
  %v557 = vadd.f32 %v554, 1.0
  %v558 = vadd.f32 %v556, 1.0
  %v559 = vrcp.pop %v557
  %v560 = vmul.f32 1.0, %v559
  %v561 = vrcp.pop %v558
  %v562 = vmul.f32 1.0, %v561
  %v563 = vtanh.pop %v547
  %v564 = vmul.f32 %v560, 0.0
  %566 = vrot.lane.b32.xlu0 %v563, 64
  %v567 = vpop.permute.xlu0 %566
  %v569 = vmul.f32 %v560, %v567
  %571 = vrot.lane.b32.xlu0 %v569, 64
  %v572 = vpop.permute.xlu0 %571
  %v574 = vadd.f32 %v564, %v572
  %v575 = vtanh.pop %v574
  %577 = vrot.lane.b32.xlu0 %v575, 64
  %v578 = vpop.permute.xlu0 %577
  %v580 = vmul.f32 %v562, %v578
  %v581 = vpack.c.bf16 %v580, %v580
  %s582 = smul.u32 1, 2
  %s583 = smul.addr %s582, 8
  %s584 = scalar_lea.vmem [#allocation2], %s583
  %v585 = vld [vmem:[%s584] sm:$0xff]
  %v586 = vld [vmem:[%s584 + $0x8] sm:$0xff]
  %v588 = vsel %vm506, %v581, 0
  %590 = vmatprep.subr.bf16.mxu0 0
  %591 = vmatpush1.bf16.msra.mxu0 0
  %592 = vmatprep.subr.bf16.mxu0 0
  %593 = vmatpush1.bf16.msra.mxu0 0
  %594 = vmatprep.subr.bf16.mxu0 0
  %595 = vmatpush1.bf16.msra.mxu0 0
  %596 = vmatprep.subr.bf16.mxu0 0
  %597 = vmatpush1.bf16.msra.mxu0 0
  %598 = vmatprep.subr.bf16.mxu0 %v497
  %599 = vmatpush1.bf16.msra.mxu0 %v496
  %600 = vmatprep.subr.bf16.mxu0 %v495
  %601 = vmatpush1.bf16.msra.mxu0 %v494
  %602 = vmatprep.subr.bf16.mxu0 %v493
  %603 = vmatpush1.bf16.msra.mxu0 %v492
  %604 = vmatprep.subr.bf16.mxu0 %v491
  %605 = vmatpush1.bf16.msra.mxu0 %v490
  %606 = vmatprep.subr.bf16.mxu0 0
  %607 = vmatpush2.bf16.msra.mxu0 0
  %608 = vmatprep.subr.bf16.mxu0 0
  %609 = vmatpush2.bf16.msra.mxu0 0
  %610 = vmatprep.subr.bf16.mxu0 0
  %611 = vmatpush2.bf16.msra.mxu0 0
  %612 = vmatprep.subr.bf16.mxu0 0
  %613 = vmatpush2.bf16.msra.mxu0 0
  %614 = vmatprep.subr.bf16.mxu0 0
  %615 = vmatpush2.bf16.msra.mxu0 0
  %616 = vmatprep.subr.bf16.mxu0 0
  %617 = vmatpush2.bf16.msra.mxu0 0
  %618 = vmatprep.subr.bf16.mxu0 0
  %619 = vmatpush2.bf16.msra.mxu0 0
  %620 = vmatprep.subr.bf16.mxu0 0
  %621 = vmatpush2.bf16.msra.mxu0 0
  %622 = vmatprep.mubr.bf16.mxu0 0
  %623 = vmatmul.mubr.bf16.gmra.mxu0 %v588
  %v624 = vpop.f32.mrf.mxu0
  %v625 = vadd.f32 %v585, %v624
  %v626 = vpop.f32.mrf.mxu0
  %v627 = vadd.f32 %v586, %v626
  %v628 = vpop.f32.mrf.mxu0
  %v629 = vpop.f32.mrf.mxu0
  %630 = vdwg.mxu0
  %v631 = vxor.u32 %v625, 2147483648
  %v632 = vxor.u32 %v627, 2147483648
  %v633 = vmul.f32 %v631, 1.442695
  %v634 = vpow.pop %v633
  %v635 = vmul.f32 %v632, 1.442695
  %v636 = vpow.pop %v635
  %v637 = vadd.f32 %v634, 1.0
  %v638 = vadd.f32 %v636, 1.0
  %v639 = vrcp.pop %v637
  %v640 = vmul.f32 1.0, %v639
  %v641 = vrcp.pop %v638
  %v642 = vmul.f32 1.0, %v641
  %v643 = vtanh.pop %v627
  %v644 = vmul.f32 %v640, %v574
  %646 = vrot.lane.b32.xlu0 %v643, 64
  %v647 = vpop.permute.xlu0 %646
  %v649 = vmul.f32 %v640, %v647
  %651 = vrot.lane.b32.xlu0 %v649, 64
  %v652 = vpop.permute.xlu0 %651
  %v654 = vadd.f32 %v644, %v652
  %v655 = vtanh.pop %v654
  %657 = vrot.lane.b32.xlu0 %v655, 64
  %v658 = vpop.permute.xlu0 %657
  %v660 = vmul.f32 %v642, %v658
  %v661 = vpack.c.bf16 %v660, %v660
  %s662 = smul.u32 2, 2
  %s663 = smul.addr %s662, 8
  %s664 = scalar_lea.vmem [#allocation2], %s663
  %v665 = vld [vmem:[%s664] sm:$0xff]
  %v666 = vld [vmem:[%s664 + $0x8] sm:$0xff]
  %v668 = vsel %vm506, %v661, 0
  %670 = vmatprep.subr.bf16.mxu0 0
  %671 = vmatpush1.bf16.msra.mxu0 0
  %672 = vmatprep.subr.bf16.mxu0 0
  %673 = vmatpush1.bf16.msra.mxu0 0
  %674 = vmatprep.subr.bf16.mxu0 0
  %675 = vmatpush1.bf16.msra.mxu0 0
  %676 = vmatprep.subr.bf16.mxu0 0
  %677 = vmatpush1.bf16.msra.mxu0 0
  %678 = vmatprep.subr.bf16.mxu0 %v497
  %679 = vmatpush1.bf16.msra.mxu0 %v496
  %680 = vmatprep.subr.bf16.mxu0 %v495
  %681 = vmatpush1.bf16.msra.mxu0 %v494
  %682 = vmatprep.subr.bf16.mxu0 %v493
  %683 = vmatpush1.bf16.msra.mxu0 %v492
  %684 = vmatprep.subr.bf16.mxu0 %v491
  %685 = vmatpush1.bf16.msra.mxu0 %v490
  %686 = vmatprep.subr.bf16.mxu0 0
  %687 = vmatpush2.bf16.msra.mxu0 0
  %688 = vmatprep.subr.bf16.mxu0 0
  %689 = vmatpush2.bf16.msra.mxu0 0
  %690 = vmatprep.subr.bf16.mxu0 0
  %691 = vmatpush2.bf16.msra.mxu0 0
  %692 = vmatprep.subr.bf16.mxu0 0
  %693 = vmatpush2.bf16.msra.mxu0 0
  %694 = vmatprep.subr.bf16.mxu0 0
  %695 = vmatpush2.bf16.msra.mxu0 0
  %696 = vmatprep.subr.bf16.mxu0 0
  %697 = vmatpush2.bf16.msra.mxu0 0
  %698 = vmatprep.subr.bf16.mxu0 0
  %699 = vmatpush2.bf16.msra.mxu0 0
  %700 = vmatprep.subr.bf16.mxu0 0
  %701 = vmatpush2.bf16.msra.mxu0 0
  %702 = vmatprep.mubr.bf16.mxu0 0
  %703 = vmatmul.mubr.bf16.gmra.mxu0 %v668
  %v704 = vpop.f32.mrf.mxu0
  %v705 = vadd.f32 %v665, %v704
  %v706 = vpop.f32.mrf.mxu0
  %v707 = vadd.f32 %v666, %v706
  %v708 = vpop.f32.mrf.mxu0
  %v709 = vpop.f32.mrf.mxu0
  %710 = vdwg.mxu0
  %v711 = vxor.u32 %v705, 2147483648
  %v712 = vxor.u32 %v707, 2147483648
  %v713 = vmul.f32 %v711, 1.442695
  %v714 = vpow.pop %v713
  %v715 = vmul.f32 %v712, 1.442695
  %v716 = vpow.pop %v715
  %v717 = vadd.f32 %v714, 1.0
  %v718 = vadd.f32 %v716, 1.0
  %v719 = vrcp.pop %v717
  %v720 = vmul.f32 1.0, %v719
  %v721 = vrcp.pop %v718
  %v722 = vmul.f32 1.0, %v721
  %v723 = vtanh.pop %v707
  %v724 = vmul.f32 %v720, %v654
  %726 = vrot.lane.b32.xlu0 %v723, 64
  %v727 = vpop.permute.xlu0 %726
  %v729 = vmul.f32 %v720, %v727
  %731 = vrot.lane.b32.xlu0 %v729, 64
  %v732 = vpop.permute.xlu0 %731
  %v734 = vadd.f32 %v724, %v732
  %v735 = vtanh.pop %v734
  %737 = vrot.lane.b32.xlu0 %v735, 64
  %v738 = vpop.permute.xlu0 %737
  %v740 = vmul.f32 %v722, %v738
  %v741 = vpack.c.bf16 %v740, %v740
  %s742 = smul.u32 3, 2
  %s743 = smul.addr %s742, 8
  %s744 = scalar_lea.vmem [#allocation2], %s743
  %v745 = vld [vmem:[%s744] sm:$0xff]
  %v746 = vld [vmem:[%s744 + $0x8] sm:$0xff]
  %v748 = vsel %vm506, %v741, 0
  %750 = vmatprep.subr.bf16.mxu0 0
  %751 = vmatpush1.bf16.msra.mxu0 0
  %752 = vmatprep.subr.bf16.mxu0 0
  %753 = vmatpush1.bf16.msra.mxu0 0
  %754 = vmatprep.subr.bf16.mxu0 0
  %755 = vmatpush1.bf16.msra.mxu0 0
  %756 = vmatprep.subr.bf16.mxu0 0
  %757 = vmatpush1.bf16.msra.mxu0 0
  %758 = vmatprep.subr.bf16.mxu0 %v497
  %759 = vmatpush1.bf16.msra.mxu0 %v496
  %760 = vmatprep.subr.bf16.mxu0 %v495
  %761 = vmatpush1.bf16.msra.mxu0 %v494
  %762 = vmatprep.subr.bf16.mxu0 %v493
  %763 = vmatpush1.bf16.msra.mxu0 %v492
  %764 = vmatprep.subr.bf16.mxu0 %v491
  %765 = vmatpush1.bf16.msra.mxu0 %v490
  %766 = vmatprep.subr.bf16.mxu0 0
  %767 = vmatpush2.bf16.msra.mxu0 0
  %768 = vmatprep.subr.bf16.mxu0 0
  %769 = vmatpush2.bf16.msra.mxu0 0
  %770 = vmatprep.subr.bf16.mxu0 0
  %771 = vmatpush2.bf16.msra.mxu0 0
  %772 = vmatprep.subr.bf16.mxu0 0
  %773 = vmatpush2.bf16.msra.mxu0 0
  %774 = vmatprep.subr.bf16.mxu0 0
  %775 = vmatpush2.bf16.msra.mxu0 0
  %776 = vmatprep.subr.bf16.mxu0 0
  %777 = vmatpush2.bf16.msra.mxu0 0
  %778 = vmatprep.subr.bf16.mxu0 0
  %779 = vmatpush2.bf16.msra.mxu0 0
  %780 = vmatprep.subr.bf16.mxu0 0
  %781 = vmatpush2.bf16.msra.mxu0 0
  %782 = vmatprep.mubr.bf16.mxu0 0
  %783 = vmatmul.mubr.bf16.gmra.mxu0 %v748
  %v784 = vpop.f32.mrf.mxu0
  %v785 = vadd.f32 %v745, %v784
  %v786 = vpop.f32.mrf.mxu0
  %v787 = vadd.f32 %v746, %v786
  %v788 = vpop.f32.mrf.mxu0
  %v789 = vpop.f32.mrf.mxu0
  %790 = vdwg.mxu0
  %v791 = vxor.u32 %v785, 2147483648
  %v792 = vxor.u32 %v787, 2147483648
  %v793 = vmul.f32 %v791, 1.442695
  %v794 = vpow.pop %v793
  %v795 = vmul.f32 %v792, 1.442695
  %v796 = vpow.pop %v795
  %v797 = vadd.f32 %v794, 1.0
  %v798 = vadd.f32 %v796, 1.0
  %v799 = vrcp.pop %v797
  %v800 = vmul.f32 1.0, %v799
  %v801 = vrcp.pop %v798
  %v802 = vmul.f32 1.0, %v801
  %v803 = vtanh.pop %v787
  %v804 = vmul.f32 %v800, %v734
  %806 = vrot.lane.b32.xlu0 %v803, 64
  %v807 = vpop.permute.xlu0 %806
  %v809 = vmul.f32 %v800, %v807
  %811 = vrot.lane.b32.xlu0 %v809, 64
  %v812 = vpop.permute.xlu0 %811
  %v814 = vadd.f32 %v804, %v812
  %v815 = vtanh.pop %v814
  %817 = vrot.lane.b32.xlu0 %v815, 64
  %v818 = vpop.permute.xlu0 %817
  %v820 = vmul.f32 %v802, %v818
  %v821 = vpack.c.bf16 %v820, %v820
  %s822 = smul.u32 4, 2
  %s823 = smul.addr %s822, 8
  %s824 = scalar_lea.vmem [#allocation2], %s823
  %v825 = vld [vmem:[%s824] sm:$0xff]
  %v826 = vld [vmem:[%s824 + $0x8] sm:$0xff]
  %v828 = vsel %vm506, %v821, 0
  %830 = vmatprep.subr.bf16.mxu0 0
  %831 = vmatpush1.bf16.msra.mxu0 0
  %832 = vmatprep.subr.bf16.mxu0 0
  %833 = vmatpush1.bf16.msra.mxu0 0
  %834 = vmatprep.subr.bf16.mxu0 0
  %835 = vmatpush1.bf16.msra.mxu0 0
  %836 = vmatprep.subr.bf16.mxu0 0
  %837 = vmatpush1.bf16.msra.mxu0 0
  %838 = vmatprep.subr.bf16.mxu0 %v497
  %839 = vmatpush1.bf16.msra.mxu0 %v496
  %840 = vmatprep.subr.bf16.mxu0 %v495
  %841 = vmatpush1.bf16.msra.mxu0 %v494
  %842 = vmatprep.subr.bf16.mxu0 %v493
  %843 = vmatpush1.bf16.msra.mxu0 %v492
  %844 = vmatprep.subr.bf16.mxu0 %v491
  %845 = vmatpush1.bf16.msra.mxu0 %v490
  %846 = vmatprep.subr.bf16.mxu0 0
  %847 = vmatpush2.bf16.msra.mxu0 0
  %848 = vmatprep.subr.bf16.mxu0 0
  %849 = vmatpush2.bf16.msra.mxu0 0
  %850 = vmatprep.subr.bf16.mxu0 0
  %851 = vmatpush2.bf16.msra.mxu0 0
  %852 = vmatprep.subr.bf16.mxu0 0
  %853 = vmatpush2.bf16.msra.mxu0 0
  %854 = vmatprep.subr.bf16.mxu0 0
  %855 = vmatpush2.bf16.msra.mxu0 0
  %856 = vmatprep.subr.bf16.mxu0 0
  %857 = vmatpush2.bf16.msra.mxu0 0
  %858 = vmatprep.subr.bf16.mxu0 0
  %859 = vmatpush2.bf16.msra.mxu0 0
  %860 = vmatprep.subr.bf16.mxu0 0
  %861 = vmatpush2.bf16.msra.mxu0 0
  %862 = vmatprep.mubr.bf16.mxu0 0
  %863 = vmatmul.mubr.bf16.gmra.mxu0 %v828
  %v864 = vpop.f32.mrf.mxu0
  %v865 = vadd.f32 %v825, %v864
  %v866 = vpop.f32.mrf.mxu0
  %v867 = vadd.f32 %v826, %v866
  %v868 = vpop.f32.mrf.mxu0
  %v869 = vpop.f32.mrf.mxu0
  %870 = vdwg.mxu0
  %v871 = vxor.u32 %v865, 2147483648
  %v872 = vxor.u32 %v867, 2147483648
  %v873 = vmul.f32 %v871, 1.442695
  %v874 = vpow.pop %v873
  %v875 = vmul.f32 %v872, 1.442695
  %v876 = vpow.pop %v875
  %v877 = vadd.f32 %v874, 1.0
  %v878 = vadd.f32 %v876, 1.0
  %v879 = vrcp.pop %v877
  %v880 = vmul.f32 1.0, %v879
  %v881 = vrcp.pop %v878
  %v882 = vmul.f32 1.0, %v881
  %v883 = vtanh.pop %v867
  %v884 = vmul.f32 %v880, %v814
  %886 = vrot.lane.b32.xlu0 %v883, 64
  %v887 = vpop.permute.xlu0 %886
  %v889 = vmul.f32 %v880, %v887
  %891 = vrot.lane.b32.xlu0 %v889, 64
  %v892 = vpop.permute.xlu0 %891
  %v894 = vadd.f32 %v884, %v892
  %v895 = vtanh.pop %v894
  %897 = vrot.lane.b32.xlu0 %v895, 64
  %v898 = vpop.permute.xlu0 %897
  %v900 = vmul.f32 %v882, %v898
  %v901 = vpack.c.bf16 %v900, %v900
  %s902 = smul.u32 5, 2
  %s903 = smul.addr %s902, 8
  %s904 = scalar_lea.vmem [#allocation2], %s903
  %v905 = vld [vmem:[%s904] sm:$0xff]
  %v906 = vld [vmem:[%s904 + $0x8] sm:$0xff]
  %v908 = vsel %vm506, %v901, 0
  %910 = vmatprep.subr.bf16.mxu0 0
  %911 = vmatpush1.bf16.msra.mxu0 0
  %912 = vmatprep.subr.bf16.mxu0 0
  %913 = vmatpush1.bf16.msra.mxu0 0
  %914 = vmatprep.subr.bf16.mxu0 0
  %915 = vmatpush1.bf16.msra.mxu0 0
  %916 = vmatprep.subr.bf16.mxu0 0
  %917 = vmatpush1.bf16.msra.mxu0 0
  %918 = vmatprep.subr.bf16.mxu0 %v497
  %919 = vmatpush1.bf16.msra.mxu0 %v496
  %920 = vmatprep.subr.bf16.mxu0 %v495
  %921 = vmatpush1.bf16.msra.mxu0 %v494
  %922 = vmatprep.subr.bf16.mxu0 %v493
  %923 = vmatpush1.bf16.msra.mxu0 %v492
  %924 = vmatprep.subr.bf16.mxu0 %v491
  %925 = vmatpush1.bf16.msra.mxu0 %v490
  %926 = vmatprep.subr.bf16.mxu0 0
  %927 = vmatpush2.bf16.msra.mxu0 0
  %928 = vmatprep.subr.bf16.mxu0 0
  %929 = vmatpush2.bf16.msra.mxu0 0
  %930 = vmatprep.subr.bf16.mxu0 0
  %931 = vmatpush2.bf16.msra.mxu0 0
  %932 = vmatprep.subr.bf16.mxu0 0
  %933 = vmatpush2.bf16.msra.mxu0 0
  %934 = vmatprep.subr.bf16.mxu0 0
  %935 = vmatpush2.bf16.msra.mxu0 0
  %936 = vmatprep.subr.bf16.mxu0 0
  %937 = vmatpush2.bf16.msra.mxu0 0
  %938 = vmatprep.subr.bf16.mxu0 0
  %939 = vmatpush2.bf16.msra.mxu0 0
  %940 = vmatprep.subr.bf16.mxu0 0
  %941 = vmatpush2.bf16.msra.mxu0 0
  %942 = vmatprep.mubr.bf16.mxu0 0
  %943 = vmatmul.mubr.bf16.gmra.mxu0 %v908
  %v944 = vpop.f32.mrf.mxu0
  %v945 = vadd.f32 %v905, %v944
  %v946 = vpop.f32.mrf.mxu0
  %v947 = vadd.f32 %v906, %v946
  %v948 = vpop.f32.mrf.mxu0
  %v949 = vpop.f32.mrf.mxu0
  %950 = vdwg.mxu0
  %v951 = vxor.u32 %v945, 2147483648
  %v952 = vxor.u32 %v947, 2147483648
  %v953 = vmul.f32 %v951, 1.442695
  %v954 = vpow.pop %v953
  %v955 = vmul.f32 %v952, 1.442695
  %v956 = vpow.pop %v955
  %v957 = vadd.f32 %v954, 1.0
  %v958 = vadd.f32 %v956, 1.0
  %v959 = vrcp.pop %v957
  %v960 = vmul.f32 1.0, %v959
  %v961 = vrcp.pop %v958
  %v962 = vmul.f32 1.0, %v961
  %v963 = vtanh.pop %v947
  %v964 = vmul.f32 %v960, %v894
  %966 = vrot.lane.b32.xlu0 %v963, 64
  %v967 = vpop.permute.xlu0 %966
  %v969 = vmul.f32 %v960, %v967
  %971 = vrot.lane.b32.xlu0 %v969, 64
  %v972 = vpop.permute.xlu0 %971
  %v974 = vadd.f32 %v964, %v972
  %v975 = vtanh.pop %v974
  %977 = vrot.lane.b32.xlu0 %v975, 64
  %v978 = vpop.permute.xlu0 %977
  %v980 = vmul.f32 %v962, %v978
  %v981 = vpack.c.bf16 %v980, %v980
  %s982 = smul.u32 6, 2
  %s983 = smul.addr %s982, 8
  %s984 = scalar_lea.vmem [#allocation2], %s983
  %v985 = vld [vmem:[%s984] sm:$0xff]
  %v986 = vld [vmem:[%s984 + $0x8] sm:$0xff]
  %v988 = vsel %vm506, %v981, 0
  %990 = vmatprep.subr.bf16.mxu0 0
  %991 = vmatpush1.bf16.msra.mxu0 0
  %992 = vmatprep.subr.bf16.mxu0 0
  %993 = vmatpush1.bf16.msra.mxu0 0
  %994 = vmatprep.subr.bf16.mxu0 0
  %995 = vmatpush1.bf16.msra.mxu0 0
  %996 = vmatprep.subr.bf16.mxu0 0
  %997 = vmatpush1.bf16.msra.mxu0 0
  %998 = vmatprep.subr.bf16.mxu0 %v497
  %999 = vmatpush1.bf16.msra.mxu0 %v496
  %1000 = vmatprep.subr.bf16.mxu0 %v495
  %1001 = vmatpush1.bf16.msra.mxu0 %v494
  %1002 = vmatprep.subr.bf16.mxu0 %v493
  %1003 = vmatpush1.bf16.msra.mxu0 %v492
  %1004 = vmatprep.subr.bf16.mxu0 %v491
  %1005 = vmatpush1.bf16.msra.mxu0 %v490
  %1006 = vmatprep.subr.bf16.mxu0 0
  %1007 = vmatpush2.bf16.msra.mxu0 0
  %1008 = vmatprep.subr.bf16.mxu0 0
  %1009 = vmatpush2.bf16.msra.mxu0 0
  %1010 = vmatprep.subr.bf16.mxu0 0
  %1011 = vmatpush2.bf16.msra.mxu0 0
  %1012 = vmatprep.subr.bf16.mxu0 0
  %1013 = vmatpush2.bf16.msra.mxu0 0
  %1014 = vmatprep.subr.bf16.mxu0 0
  %1015 = vmatpush2.bf16.msra.mxu0 0
  %1016 = vmatprep.subr.bf16.mxu0 0
  %1017 = vmatpush2.bf16.msra.mxu0 0
  %1018 = vmatprep.subr.bf16.mxu0 0
  %1019 = vmatpush2.bf16.msra.mxu0 0
  %1020 = vmatprep.subr.bf16.mxu0 0
  %1021 = vmatpush2.bf16.msra.mxu0 0
  %1022 = vmatprep.mubr.bf16.mxu0 0
  %1023 = vmatmul.mubr.bf16.gmra.mxu0 %v988
  %v1024 = vpop.f32.mrf.mxu0
  %v1025 = vadd.f32 %v985, %v1024
  %v1026 = vpop.f32.mrf.mxu0
  %v1027 = vadd.f32 %v986, %v1026
  %v1028 = vpop.f32.mrf.mxu0
  %v1029 = vpop.f32.mrf.mxu0
  %1030 = vdwg.mxu0
  %v1031 = vxor.u32 %v1025, 2147483648
  %v1032 = vxor.u32 %v1027, 2147483648
  %v1033 = vmul.f32 %v1031, 1.442695
  %v1034 = vpow.pop %v1033
  %v1035 = vmul.f32 %v1032, 1.442695
  %v1036 = vpow.pop %v1035
  %v1037 = vadd.f32 %v1034, 1.0
  %v1038 = vadd.f32 %v1036, 1.0
  %v1039 = vrcp.pop %v1037
  %v1040 = vmul.f32 1.0, %v1039
  %v1041 = vrcp.pop %v1038
  %v1042 = vmul.f32 1.0, %v1041
  %v1043 = vtanh.pop %v1027
  %v1044 = vmul.f32 %v1040, %v974
  %1046 = vrot.lane.b32.xlu0 %v1043, 64
  %v1047 = vpop.permute.xlu0 %1046
  %v1049 = vmul.f32 %v1040, %v1047
  %1051 = vrot.lane.b32.xlu0 %v1049, 64
  %v1052 = vpop.permute.xlu0 %1051
  %v1054 = vadd.f32 %v1044, %v1052
  %v1055 = vtanh.pop %v1054
  %1057 = vrot.lane.b32.xlu0 %v1055, 64
  %v1058 = vpop.permute.xlu0 %1057
  %v1060 = vmul.f32 %v1042, %v1058
  %v1061 = vpack.c.bf16 %v1060, %v1060
  %s1062 = smul.u32 7, 2
  %s1063 = smul.addr %s1062, 8
  %s1064 = scalar_lea.vmem [#allocation2], %s1063
  %v1065 = vld [vmem:[%s1064] sm:$0xff]
  %v1066 = vld [vmem:[%s1064 + $0x8] sm:$0xff]
  %v1068 = vsel %vm506, %v1061, 0
  %1070 = vmatprep.subr.bf16.mxu0 0
  %1071 = vmatpush1.bf16.msra.mxu0 0
  %1072 = vmatprep.subr.bf16.mxu0 0
  %1073 = vmatpush1.bf16.msra.mxu0 0
  %1074 = vmatprep.subr.bf16.mxu0 0
  %1075 = vmatpush1.bf16.msra.mxu0 0
  %1076 = vmatprep.subr.bf16.mxu0 0
  %1077 = vmatpush1.bf16.msra.mxu0 0
  %1078 = vmatprep.subr.bf16.mxu0 %v497
  %1079 = vmatpush1.bf16.msra.mxu0 %v496
  %1080 = vmatprep.subr.bf16.mxu0 %v495
  %1081 = vmatpush1.bf16.msra.mxu0 %v494
  %1082 = vmatprep.subr.bf16.mxu0 %v493
  %1083 = vmatpush1.bf16.msra.mxu0 %v492
  %1084 = vmatprep.subr.bf16.mxu0 %v491
  %1085 = vmatpush1.bf16.msra.mxu0 %v490
  %1086 = vmatprep.subr.bf16.mxu0 0
  %1087 = vmatpush2.bf16.msra.mxu0 0
  %1088 = vmatprep.subr.bf16.mxu0 0
  %1089 = vmatpush2.bf16.msra.mxu0 0
  %1090 = vmatprep.subr.bf16.mxu0 0
  %1091 = vmatpush2.bf16.msra.mxu0 0
  %1092 = vmatprep.subr.bf16.mxu0 0
  %1093 = vmatpush2.bf16.msra.mxu0 0
  %1094 = vmatprep.subr.bf16.mxu0 0
  %1095 = vmatpush2.bf16.msra.mxu0 0
  %1096 = vmatprep.subr.bf16.mxu0 0
  %1097 = vmatpush2.bf16.msra.mxu0 0
  %1098 = vmatprep.subr.bf16.mxu0 0
  %1099 = vmatpush2.bf16.msra.mxu0 0
  %1100 = vmatprep.subr.bf16.mxu0 0
  %1101 = vmatpush2.bf16.msra.mxu0 0
  %1102 = vmatprep.mubr.bf16.mxu0 0
  %1103 = vmatmul.mubr.bf16.gmra.mxu0 %v1068
  %v1104 = vpop.f32.mrf.mxu0
  %v1105 = vadd.f32 %v1065, %v1104
  %v1106 = vpop.f32.mrf.mxu0
  %v1107 = vadd.f32 %v1066, %v1106
  %v1108 = vpop.f32.mrf.mxu0
  %v1109 = vpop.f32.mrf.mxu0
  %1110 = vdwg.mxu0
  %v1111 = vxor.u32 %v1105, 2147483648
  %v1112 = vxor.u32 %v1107, 2147483648
  %v1113 = vmul.f32 %v1111, 1.442695
  %v1114 = vpow.pop %v1113
  %v1115 = vmul.f32 %v1112, 1.442695
  %v1116 = vpow.pop %v1115
  %v1117 = vadd.f32 %v1114, 1.0
  %v1118 = vadd.f32 %v1116, 1.0
  %v1119 = vrcp.pop %v1117
  %v1120 = vmul.f32 1.0, %v1119
  %v1121 = vrcp.pop %v1118
  %v1122 = vmul.f32 1.0, %v1121
  %v1123 = vtanh.pop %v1107
  %v1124 = vmul.f32 %v1120, %v1054
  %1126 = vrot.lane.b32.xlu0 %v1123, 64
  %v1127 = vpop.permute.xlu0 %1126
  %v1129 = vmul.f32 %v1120, %v1127
  %1131 = vrot.lane.b32.xlu0 %v1129, 64
  %v1132 = vpop.permute.xlu0 %1131
  %v1134 = vadd.f32 %v1124, %v1132
  %v1135 = vtanh.pop %v1134
  %1137 = vrot.lane.b32.xlu0 %v1135, 64
  %v1138 = vpop.permute.xlu0 %1137
  %v1140 = vmul.f32 %v1122, %v1138
  %v1141 = vpack.c.bf16 %v1140, %v1140
  %s1142 = smul.u32 8, 2
  %s1143 = smul.addr %s1142, 8
  %s1144 = scalar_lea.vmem [#allocation2], %s1143
  %v1145 = vld [vmem:[%s1144] sm:$0xff]
  %v1146 = vld [vmem:[%s1144 + $0x8] sm:$0xff]
  %v1148 = vsel %vm506, %v1141, 0
  %1150 = vmatprep.subr.bf16.mxu0 0
  %1151 = vmatpush1.bf16.msra.mxu0 0
  %1152 = vmatprep.subr.bf16.mxu0 0
  %1153 = vmatpush1.bf16.msra.mxu0 0
  %1154 = vmatprep.subr.bf16.mxu0 0
  %1155 = vmatpush1.bf16.msra.mxu0 0
  %1156 = vmatprep.subr.bf16.mxu0 0
  %1157 = vmatpush1.bf16.msra.mxu0 0
  %1158 = vmatprep.subr.bf16.mxu0 %v497
  %1159 = vmatpush1.bf16.msra.mxu0 %v496
  %1160 = vmatprep.subr.bf16.mxu0 %v495
  %1161 = vmatpush1.bf16.msra.mxu0 %v494
  %1162 = vmatprep.subr.bf16.mxu0 %v493
  %1163 = vmatpush1.bf16.msra.mxu0 %v492
  %1164 = vmatprep.subr.bf16.mxu0 %v491
  %1165 = vmatpush1.bf16.msra.mxu0 %v490
  %1166 = vmatprep.subr.bf16.mxu0 0
  %1167 = vmatpush2.bf16.msra.mxu0 0
  %1168 = vmatprep.subr.bf16.mxu0 0
  %1169 = vmatpush2.bf16.msra.mxu0 0
  %1170 = vmatprep.subr.bf16.mxu0 0
  %1171 = vmatpush2.bf16.msra.mxu0 0
  %1172 = vmatprep.subr.bf16.mxu0 0
  %1173 = vmatpush2.bf16.msra.mxu0 0
  %1174 = vmatprep.subr.bf16.mxu0 0
  %1175 = vmatpush2.bf16.msra.mxu0 0
  %1176 = vmatprep.subr.bf16.mxu0 0
  %1177 = vmatpush2.bf16.msra.mxu0 0
  %1178 = vmatprep.subr.bf16.mxu0 0
  %1179 = vmatpush2.bf16.msra.mxu0 0
  %1180 = vmatprep.subr.bf16.mxu0 0
  %1181 = vmatpush2.bf16.msra.mxu0 0
  %1182 = vmatprep.mubr.bf16.mxu0 0
  %1183 = vmatmul.mubr.bf16.gmra.mxu0 %v1148
  %v1184 = vpop.f32.mrf.mxu0
  %v1185 = vadd.f32 %v1145, %v1184
  %v1186 = vpop.f32.mrf.mxu0
  %v1187 = vadd.f32 %v1146, %v1186
  %v1188 = vpop.f32.mrf.mxu0
  %v1189 = vpop.f32.mrf.mxu0
  %1190 = vdwg.mxu0
  %v1191 = vxor.u32 %v1185, 2147483648
  %v1192 = vxor.u32 %v1187, 2147483648
  %v1193 = vmul.f32 %v1191, 1.442695
  %v1194 = vpow.pop %v1193
  %v1195 = vmul.f32 %v1192, 1.442695
  %v1196 = vpow.pop %v1195
  %v1197 = vadd.f32 %v1194, 1.0
  %v1198 = vadd.f32 %v1196, 1.0
  %v1199 = vrcp.pop %v1197
  %v1200 = vmul.f32 1.0, %v1199
  %v1201 = vrcp.pop %v1198
  %v1202 = vmul.f32 1.0, %v1201
  %v1203 = vtanh.pop %v1187
  %v1204 = vmul.f32 %v1200, %v1134
  %1206 = vrot.lane.b32.xlu0 %v1203, 64
  %v1207 = vpop.permute.xlu0 %1206
  %v1209 = vmul.f32 %v1200, %v1207
  %1211 = vrot.lane.b32.xlu0 %v1209, 64
  %v1212 = vpop.permute.xlu0 %1211
  %v1214 = vadd.f32 %v1204, %v1212
  %v1215 = vtanh.pop %v1214
  %1217 = vrot.lane.b32.xlu0 %v1215, 64
  %v1218 = vpop.permute.xlu0 %1217
  %v1220 = vmul.f32 %v1202, %v1218
  %v1221 = vpack.c.bf16 %v1220, %v1220
  %s1222 = smul.u32 9, 2
  %s1223 = smul.addr %s1222, 8
  %s1224 = scalar_lea.vmem [#allocation2], %s1223
  %v1225 = vld [vmem:[%s1224] sm:$0xff]
  %v1226 = vld [vmem:[%s1224 + $0x8] sm:$0xff]
  %v1228 = vsel %vm506, %v1221, 0
  %1230 = vmatprep.subr.bf16.mxu0 0
  %1231 = vmatpush1.bf16.msra.mxu0 0
  %1232 = vmatprep.subr.bf16.mxu0 0
  %1233 = vmatpush1.bf16.msra.mxu0 0
  %1234 = vmatprep.subr.bf16.mxu0 0
  %1235 = vmatpush1.bf16.msra.mxu0 0
  %1236 = vmatprep.subr.bf16.mxu0 0
  %1237 = vmatpush1.bf16.msra.mxu0 0
  %1238 = vmatprep.subr.bf16.mxu0 %v497
  %1239 = vmatpush1.bf16.msra.mxu0 %v496
  %1240 = vmatprep.subr.bf16.mxu0 %v495
  %1241 = vmatpush1.bf16.msra.mxu0 %v494
  %1242 = vmatprep.subr.bf16.mxu0 %v493
  %1243 = vmatpush1.bf16.msra.mxu0 %v492
  %1244 = vmatprep.subr.bf16.mxu0 %v491
  %1245 = vmatpush1.bf16.msra.mxu0 %v490
  %1246 = vmatprep.subr.bf16.mxu0 0
  %1247 = vmatpush2.bf16.msra.mxu0 0
  %1248 = vmatprep.subr.bf16.mxu0 0
  %1249 = vmatpush2.bf16.msra.mxu0 0
  %1250 = vmatprep.subr.bf16.mxu0 0
  %1251 = vmatpush2.bf16.msra.mxu0 0
  %1252 = vmatprep.subr.bf16.mxu0 0
  %1253 = vmatpush2.bf16.msra.mxu0 0
  %1254 = vmatprep.subr.bf16.mxu0 0
  %1255 = vmatpush2.bf16.msra.mxu0 0
  %1256 = vmatprep.subr.bf16.mxu0 0
  %1257 = vmatpush2.bf16.msra.mxu0 0
  %1258 = vmatprep.subr.bf16.mxu0 0
  %1259 = vmatpush2.bf16.msra.mxu0 0
  %1260 = vmatprep.subr.bf16.mxu0 0
  %1261 = vmatpush2.bf16.msra.mxu0 0
  %1262 = vmatprep.mubr.bf16.mxu0 0
  %1263 = vmatmul.mubr.bf16.gmra.mxu0 %v1228
  %v1264 = vpop.f32.mrf.mxu0
  %v1265 = vadd.f32 %v1225, %v1264
  %v1266 = vpop.f32.mrf.mxu0
  %v1267 = vadd.f32 %v1226, %v1266
  %v1268 = vpop.f32.mrf.mxu0
  %v1269 = vpop.f32.mrf.mxu0
  %1270 = vdwg.mxu0
  %v1271 = vxor.u32 %v1265, 2147483648
  %v1272 = vxor.u32 %v1267, 2147483648
  %v1273 = vmul.f32 %v1271, 1.442695
  %v1274 = vpow.pop %v1273
  %v1275 = vmul.f32 %v1272, 1.442695
  %v1276 = vpow.pop %v1275
  %v1277 = vadd.f32 %v1274, 1.0
  %v1278 = vadd.f32 %v1276, 1.0
  %v1279 = vrcp.pop %v1277
  %v1280 = vmul.f32 1.0, %v1279
  %v1281 = vrcp.pop %v1278
  %v1282 = vmul.f32 1.0, %v1281
  %v1283 = vtanh.pop %v1267
  %v1284 = vmul.f32 %v1280, %v1214
  %1286 = vrot.lane.b32.xlu0 %v1283, 64
  %v1287 = vpop.permute.xlu0 %1286
  %v1289 = vmul.f32 %v1280, %v1287
  %1291 = vrot.lane.b32.xlu0 %v1289, 64
  %v1292 = vpop.permute.xlu0 %1291
  %v1294 = vadd.f32 %v1284, %v1292
  %v1295 = vtanh.pop %v1294
  %1297 = vrot.lane.b32.xlu0 %v1295, 64
  %v1298 = vpop.permute.xlu0 %1297
  %v1300 = vmul.f32 %v1282, %v1298
  %v1301 = vpack.c.bf16 %v1300, %v1300
  %s1302 = smul.u32 10, 2
  %s1303 = smul.addr %s1302, 8
  %s1304 = scalar_lea.vmem [#allocation2], %s1303
  %v1305 = vld [vmem:[%s1304] sm:$0xff]
  %v1306 = vld [vmem:[%s1304 + $0x8] sm:$0xff]
  %v1308 = vsel %vm506, %v1301, 0
  %1310 = vmatprep.subr.bf16.mxu0 0
  %1311 = vmatpush1.bf16.msra.mxu0 0
  %1312 = vmatprep.subr.bf16.mxu0 0
  %1313 = vmatpush1.bf16.msra.mxu0 0
  %1314 = vmatprep.subr.bf16.mxu0 0
  %1315 = vmatpush1.bf16.msra.mxu0 0
  %1316 = vmatprep.subr.bf16.mxu0 0
  %1317 = vmatpush1.bf16.msra.mxu0 0
  %1318 = vmatprep.subr.bf16.mxu0 %v497
  %1319 = vmatpush1.bf16.msra.mxu0 %v496
  %1320 = vmatprep.subr.bf16.mxu0 %v495
  %1321 = vmatpush1.bf16.msra.mxu0 %v494
  %1322 = vmatprep.subr.bf16.mxu0 %v493
  %1323 = vmatpush1.bf16.msra.mxu0 %v492
  %1324 = vmatprep.subr.bf16.mxu0 %v491
  %1325 = vmatpush1.bf16.msra.mxu0 %v490
  %1326 = vmatprep.subr.bf16.mxu0 0
  %1327 = vmatpush2.bf16.msra.mxu0 0
  %1328 = vmatprep.subr.bf16.mxu0 0
  %1329 = vmatpush2.bf16.msra.mxu0 0
  %1330 = vmatprep.subr.bf16.mxu0 0
  %1331 = vmatpush2.bf16.msra.mxu0 0
  %1332 = vmatprep.subr.bf16.mxu0 0
  %1333 = vmatpush2.bf16.msra.mxu0 0
  %1334 = vmatprep.subr.bf16.mxu0 0
  %1335 = vmatpush2.bf16.msra.mxu0 0
  %1336 = vmatprep.subr.bf16.mxu0 0
  %1337 = vmatpush2.bf16.msra.mxu0 0
  %1338 = vmatprep.subr.bf16.mxu0 0
  %1339 = vmatpush2.bf16.msra.mxu0 0
  %1340 = vmatprep.subr.bf16.mxu0 0
  %1341 = vmatpush2.bf16.msra.mxu0 0
  %1342 = vmatprep.mubr.bf16.mxu0 0
  %1343 = vmatmul.mubr.bf16.gmra.mxu0 %v1308
  %v1344 = vpop.f32.mrf.mxu0
  %v1345 = vadd.f32 %v1305, %v1344
  %v1346 = vpop.f32.mrf.mxu0
  %v1347 = vadd.f32 %v1306, %v1346
  %v1348 = vpop.f32.mrf.mxu0
  %v1349 = vpop.f32.mrf.mxu0
  %1350 = vdwg.mxu0
  %v1351 = vxor.u32 %v1345, 2147483648
  %v1352 = vxor.u32 %v1347, 2147483648
  %v1353 = vmul.f32 %v1351, 1.442695
  %v1354 = vpow.pop %v1353
  %v1355 = vmul.f32 %v1352, 1.442695
  %v1356 = vpow.pop %v1355
  %v1357 = vadd.f32 %v1354, 1.0
  %v1358 = vadd.f32 %v1356, 1.0
  %v1359 = vrcp.pop %v1357
  %v1360 = vmul.f32 1.0, %v1359
  %v1361 = vrcp.pop %v1358
  %v1362 = vmul.f32 1.0, %v1361
  %v1363 = vtanh.pop %v1347
  %v1364 = vmul.f32 %v1360, %v1294
  %1366 = vrot.lane.b32.xlu0 %v1363, 64
  %v1367 = vpop.permute.xlu0 %1366
  %v1369 = vmul.f32 %v1360, %v1367
  %1371 = vrot.lane.b32.xlu0 %v1369, 64
  %v1372 = vpop.permute.xlu0 %1371
  %v1374 = vadd.f32 %v1364, %v1372
  %v1375 = vtanh.pop %v1374
  %1377 = vrot.lane.b32.xlu0 %v1375, 64
  %v1378 = vpop.permute.xlu0 %1377
  %v1380 = vmul.f32 %v1362, %v1378
  %v1381 = vpack.c.bf16 %v1380, %v1380
  %s1382 = smul.u32 11, 2
  %s1383 = smul.addr %s1382, 8
  %s1384 = scalar_lea.vmem [#allocation2], %s1383
  %v1385 = vld [vmem:[%s1384] sm:$0xff]
  %v1386 = vld [vmem:[%s1384 + $0x8] sm:$0xff]
  %v1388 = vsel %vm506, %v1381, 0
  %1390 = vmatprep.subr.bf16.mxu0 0
  %1391 = vmatpush1.bf16.msra.mxu0 0
  %1392 = vmatprep.subr.bf16.mxu0 0
  %1393 = vmatpush1.bf16.msra.mxu0 0
  %1394 = vmatprep.subr.bf16.mxu0 0
  %1395 = vmatpush1.bf16.msra.mxu0 0
  %1396 = vmatprep.subr.bf16.mxu0 0
  %1397 = vmatpush1.bf16.msra.mxu0 0
  %1398 = vmatprep.subr.bf16.mxu0 %v497
  %1399 = vmatpush1.bf16.msra.mxu0 %v496
  %1400 = vmatprep.subr.bf16.mxu0 %v495
  %1401 = vmatpush1.bf16.msra.mxu0 %v494
  %1402 = vmatprep.subr.bf16.mxu0 %v493
  %1403 = vmatpush1.bf16.msra.mxu0 %v492
  %1404 = vmatprep.subr.bf16.mxu0 %v491
  %1405 = vmatpush1.bf16.msra.mxu0 %v490
  %1406 = vmatprep.subr.bf16.mxu0 0
  %1407 = vmatpush2.bf16.msra.mxu0 0
  %1408 = vmatprep.subr.bf16.mxu0 0
  %1409 = vmatpush2.bf16.msra.mxu0 0
  %1410 = vmatprep.subr.bf16.mxu0 0
  %1411 = vmatpush2.bf16.msra.mxu0 0
  %1412 = vmatprep.subr.bf16.mxu0 0
  %1413 = vmatpush2.bf16.msra.mxu0 0
  %1414 = vmatprep.subr.bf16.mxu0 0
  %1415 = vmatpush2.bf16.msra.mxu0 0
  %1416 = vmatprep.subr.bf16.mxu0 0
  %1417 = vmatpush2.bf16.msra.mxu0 0
  %1418 = vmatprep.subr.bf16.mxu0 0
  %1419 = vmatpush2.bf16.msra.mxu0 0
  %1420 = vmatprep.subr.bf16.mxu0 0
  %1421 = vmatpush2.bf16.msra.mxu0 0
  %1422 = vmatprep.mubr.bf16.mxu0 0
  %1423 = vmatmul.mubr.bf16.gmra.mxu0 %v1388
  %v1424 = vpop.f32.mrf.mxu0
  %v1425 = vadd.f32 %v1385, %v1424
  %v1426 = vpop.f32.mrf.mxu0
  %v1427 = vadd.f32 %v1386, %v1426
  %v1428 = vpop.f32.mrf.mxu0
  %v1429 = vpop.f32.mrf.mxu0
  %1430 = vdwg.mxu0
  %v1431 = vxor.u32 %v1425, 2147483648
  %v1432 = vxor.u32 %v1427, 2147483648
  %v1433 = vmul.f32 %v1431, 1.442695
  %v1434 = vpow.pop %v1433
  %v1435 = vmul.f32 %v1432, 1.442695
  %v1436 = vpow.pop %v1435
  %v1437 = vadd.f32 %v1434, 1.0
  %v1438 = vadd.f32 %v1436, 1.0
  %v1439 = vrcp.pop %v1437
  %v1440 = vmul.f32 1.0, %v1439
  %v1441 = vrcp.pop %v1438
  %v1442 = vmul.f32 1.0, %v1441
  %v1443 = vtanh.pop %v1427
  %v1444 = vmul.f32 %v1440, %v1374
  %1446 = vrot.lane.b32.xlu0 %v1443, 64
  %v1447 = vpop.permute.xlu0 %1446
  %v1449 = vmul.f32 %v1440, %v1447
  %1451 = vrot.lane.b32.xlu0 %v1449, 64
  %v1452 = vpop.permute.xlu0 %1451
  %v1454 = vadd.f32 %v1444, %v1452
  %v1455 = vtanh.pop %v1454
  %1457 = vrot.lane.b32.xlu0 %v1455, 64
  %v1458 = vpop.permute.xlu0 %1457
  %v1460 = vmul.f32 %v1442, %v1458
  %v1461 = vpack.c.bf16 %v1460, %v1460
  %s1462 = smul.u32 12, 2
  %s1463 = smul.addr %s1462, 8
  %s1464 = scalar_lea.vmem [#allocation2], %s1463
  %v1465 = vld [vmem:[%s1464] sm:$0xff]
  %v1466 = vld [vmem:[%s1464 + $0x8] sm:$0xff]
  %v1468 = vsel %vm506, %v1461, 0
  %1470 = vmatprep.subr.bf16.mxu0 0
  %1471 = vmatpush1.bf16.msra.mxu0 0
  %1472 = vmatprep.subr.bf16.mxu0 0
  %1473 = vmatpush1.bf16.msra.mxu0 0
  %1474 = vmatprep.subr.bf16.mxu0 0
  %1475 = vmatpush1.bf16.msra.mxu0 0
  %1476 = vmatprep.subr.bf16.mxu0 0
  %1477 = vmatpush1.bf16.msra.mxu0 0
  %1478 = vmatprep.subr.bf16.mxu0 %v497
  %1479 = vmatpush1.bf16.msra.mxu0 %v496
  %1480 = vmatprep.subr.bf16.mxu0 %v495
  %1481 = vmatpush1.bf16.msra.mxu0 %v494
  %1482 = vmatprep.subr.bf16.mxu0 %v493
  %1483 = vmatpush1.bf16.msra.mxu0 %v492
  %1484 = vmatprep.subr.bf16.mxu0 %v491
  %1485 = vmatpush1.bf16.msra.mxu0 %v490
  %1486 = vmatprep.subr.bf16.mxu0 0
  %1487 = vmatpush2.bf16.msra.mxu0 0
  %1488 = vmatprep.subr.bf16.mxu0 0
  %1489 = vmatpush2.bf16.msra.mxu0 0
  %1490 = vmatprep.subr.bf16.mxu0 0
  %1491 = vmatpush2.bf16.msra.mxu0 0
  %1492 = vmatprep.subr.bf16.mxu0 0
  %1493 = vmatpush2.bf16.msra.mxu0 0
  %1494 = vmatprep.subr.bf16.mxu0 0
  %1495 = vmatpush2.bf16.msra.mxu0 0
  %1496 = vmatprep.subr.bf16.mxu0 0
  %1497 = vmatpush2.bf16.msra.mxu0 0
  %1498 = vmatprep.subr.bf16.mxu0 0
  %1499 = vmatpush2.bf16.msra.mxu0 0
  %1500 = vmatprep.subr.bf16.mxu0 0
  %1501 = vmatpush2.bf16.msra.mxu0 0
  %1502 = vmatprep.mubr.bf16.mxu0 0
  %1503 = vmatmul.mubr.bf16.gmra.mxu0 %v1468
  %v1504 = vpop.f32.mrf.mxu0
  %v1505 = vadd.f32 %v1465, %v1504
  %v1506 = vpop.f32.mrf.mxu0
  %v1507 = vadd.f32 %v1466, %v1506
  %v1508 = vpop.f32.mrf.mxu0
  %v1509 = vpop.f32.mrf.mxu0
  %1510 = vdwg.mxu0
  %v1511 = vxor.u32 %v1505, 2147483648
  %v1512 = vxor.u32 %v1507, 2147483648
  %v1513 = vmul.f32 %v1511, 1.442695
  %v1514 = vpow.pop %v1513
  %v1515 = vmul.f32 %v1512, 1.442695
  %v1516 = vpow.pop %v1515
  %v1517 = vadd.f32 %v1514, 1.0
  %v1518 = vadd.f32 %v1516, 1.0
  %v1519 = vrcp.pop %v1517
  %v1520 = vmul.f32 1.0, %v1519
  %v1521 = vrcp.pop %v1518
  %v1522 = vmul.f32 1.0, %v1521
  %v1523 = vtanh.pop %v1507
  %v1524 = vmul.f32 %v1520, %v1454
  %1526 = vrot.lane.b32.xlu0 %v1523, 64
  %v1527 = vpop.permute.xlu0 %1526
  %v1529 = vmul.f32 %v1520, %v1527
  %1531 = vrot.lane.b32.xlu0 %v1529, 64
  %v1532 = vpop.permute.xlu0 %1531
  %v1534 = vadd.f32 %v1524, %v1532
  %v1535 = vtanh.pop %v1534
  %1537 = vrot.lane.b32.xlu0 %v1535, 64
  %v1538 = vpop.permute.xlu0 %1537
  %v1540 = vmul.f32 %v1522, %v1538
  %v1541 = vpack.c.bf16 %v1540, %v1540
  %s1542 = smul.u32 13, 2
  %s1543 = smul.addr %s1542, 8
  %s1544 = scalar_lea.vmem [#allocation2], %s1543
  %v1545 = vld [vmem:[%s1544] sm:$0xff]
  %v1546 = vld [vmem:[%s1544 + $0x8] sm:$0xff]
  %v1548 = vsel %vm506, %v1541, 0
  %1550 = vmatprep.subr.bf16.mxu0 0
  %1551 = vmatpush1.bf16.msra.mxu0 0
  %1552 = vmatprep.subr.bf16.mxu0 0
  %1553 = vmatpush1.bf16.msra.mxu0 0
  %1554 = vmatprep.subr.bf16.mxu0 0
  %1555 = vmatpush1.bf16.msra.mxu0 0
  %1556 = vmatprep.subr.bf16.mxu0 0
  %1557 = vmatpush1.bf16.msra.mxu0 0
  %1558 = vmatprep.subr.bf16.mxu0 %v497
  %1559 = vmatpush1.bf16.msra.mxu0 %v496
  %1560 = vmatprep.subr.bf16.mxu0 %v495
  %1561 = vmatpush1.bf16.msra.mxu0 %v494
  %1562 = vmatprep.subr.bf16.mxu0 %v493
  %1563 = vmatpush1.bf16.msra.mxu0 %v492
  %1564 = vmatprep.subr.bf16.mxu0 %v491
  %1565 = vmatpush1.bf16.msra.mxu0 %v490
  %1566 = vmatprep.subr.bf16.mxu0 0
  %1567 = vmatpush2.bf16.msra.mxu0 0
  %1568 = vmatprep.subr.bf16.mxu0 0
  %1569 = vmatpush2.bf16.msra.mxu0 0
  %1570 = vmatprep.subr.bf16.mxu0 0
  %1571 = vmatpush2.bf16.msra.mxu0 0
  %1572 = vmatprep.subr.bf16.mxu0 0
  %1573 = vmatpush2.bf16.msra.mxu0 0
  %1574 = vmatprep.subr.bf16.mxu0 0
  %1575 = vmatpush2.bf16.msra.mxu0 0
  %1576 = vmatprep.subr.bf16.mxu0 0
  %1577 = vmatpush2.bf16.msra.mxu0 0
  %1578 = vmatprep.subr.bf16.mxu0 0
  %1579 = vmatpush2.bf16.msra.mxu0 0
  %1580 = vmatprep.subr.bf16.mxu0 0
  %1581 = vmatpush2.bf16.msra.mxu0 0
  %1582 = vmatprep.mubr.bf16.mxu0 0
  %1583 = vmatmul.mubr.bf16.gmra.mxu0 %v1548
  %v1584 = vpop.f32.mrf.mxu0
  %v1585 = vadd.f32 %v1545, %v1584
  %v1586 = vpop.f32.mrf.mxu0
  %v1587 = vadd.f32 %v1546, %v1586
  %v1588 = vpop.f32.mrf.mxu0
  %v1589 = vpop.f32.mrf.mxu0
  %1590 = vdwg.mxu0
  %v1591 = vxor.u32 %v1585, 2147483648
  %v1592 = vxor.u32 %v1587, 2147483648
  %v1593 = vmul.f32 %v1591, 1.442695
  %v1594 = vpow.pop %v1593
  %v1595 = vmul.f32 %v1592, 1.442695
  %v1596 = vpow.pop %v1595
  %v1597 = vadd.f32 %v1594, 1.0
  %v1598 = vadd.f32 %v1596, 1.0
  %v1599 = vrcp.pop %v1597
  %v1600 = vmul.f32 1.0, %v1599
  %v1601 = vrcp.pop %v1598
  %v1602 = vmul.f32 1.0, %v1601
  %v1603 = vtanh.pop %v1587
  %v1604 = vmul.f32 %v1600, %v1534
  %1606 = vrot.lane.b32.xlu0 %v1603, 64
  %v1607 = vpop.permute.xlu0 %1606
  %v1609 = vmul.f32 %v1600, %v1607
  %1611 = vrot.lane.b32.xlu0 %v1609, 64
  %v1612 = vpop.permute.xlu0 %1611
  %v1614 = vadd.f32 %v1604, %v1612
  %v1615 = vtanh.pop %v1614
  %1617 = vrot.lane.b32.xlu0 %v1615, 64
  %v1618 = vpop.permute.xlu0 %1617
  %v1620 = vmul.f32 %v1602, %v1618
  %v1621 = vpack.c.bf16 %v1620, %v1620
  %s1622 = smul.u32 14, 2
  %s1623 = smul.addr %s1622, 8
  %s1624 = scalar_lea.vmem [#allocation2], %s1623
  %v1625 = vld [vmem:[%s1624] sm:$0xff]
  %v1626 = vld [vmem:[%s1624 + $0x8] sm:$0xff]
  %v1628 = vsel %vm506, %v1621, 0
  %1630 = vmatprep.subr.bf16.mxu0 0
  %1631 = vmatpush1.bf16.msra.mxu0 0
  %1632 = vmatprep.subr.bf16.mxu0 0
  %1633 = vmatpush1.bf16.msra.mxu0 0
  %1634 = vmatprep.subr.bf16.mxu0 0
  %1635 = vmatpush1.bf16.msra.mxu0 0
  %1636 = vmatprep.subr.bf16.mxu0 0
  %1637 = vmatpush1.bf16.msra.mxu0 0
  %1638 = vmatprep.subr.bf16.mxu0 %v497
  %1639 = vmatpush1.bf16.msra.mxu0 %v496
  %1640 = vmatprep.subr.bf16.mxu0 %v495
  %1641 = vmatpush1.bf16.msra.mxu0 %v494
  %1642 = vmatprep.subr.bf16.mxu0 %v493
  %1643 = vmatpush1.bf16.msra.mxu0 %v492
  %1644 = vmatprep.subr.bf16.mxu0 %v491
  %1645 = vmatpush1.bf16.msra.mxu0 %v490
  %1646 = vmatprep.subr.bf16.mxu0 0
  %1647 = vmatpush2.bf16.msra.mxu0 0
  %1648 = vmatprep.subr.bf16.mxu0 0
  %1649 = vmatpush2.bf16.msra.mxu0 0
  %1650 = vmatprep.subr.bf16.mxu0 0
  %1651 = vmatpush2.bf16.msra.mxu0 0
  %1652 = vmatprep.subr.bf16.mxu0 0
  %1653 = vmatpush2.bf16.msra.mxu0 0
  %1654 = vmatprep.subr.bf16.mxu0 0
  %1655 = vmatpush2.bf16.msra.mxu0 0
  %1656 = vmatprep.subr.bf16.mxu0 0
  %1657 = vmatpush2.bf16.msra.mxu0 0
  %1658 = vmatprep.subr.bf16.mxu0 0
  %1659 = vmatpush2.bf16.msra.mxu0 0
  %1660 = vmatprep.subr.bf16.mxu0 0
  %1661 = vmatpush2.bf16.msra.mxu0 0
  %1662 = vmatprep.mubr.bf16.mxu0 0
  %1663 = vmatmul.mubr.bf16.gmra.mxu0 %v1628
  %v1664 = vpop.f32.mrf.mxu0
  %v1665 = vadd.f32 %v1625, %v1664
  %v1666 = vpop.f32.mrf.mxu0
  %v1667 = vadd.f32 %v1626, %v1666
  %v1668 = vpop.f32.mrf.mxu0
  %v1669 = vpop.f32.mrf.mxu0
  %1670 = vdwg.mxu0
  %v1671 = vxor.u32 %v1665, 2147483648
  %v1672 = vxor.u32 %v1667, 2147483648
  %v1673 = vmul.f32 %v1671, 1.442695
  %v1674 = vpow.pop %v1673
  %v1675 = vmul.f32 %v1672, 1.442695
  %v1676 = vpow.pop %v1675
  %v1677 = vadd.f32 %v1674, 1.0
  %v1678 = vadd.f32 %v1676, 1.0
  %v1679 = vrcp.pop %v1677
  %v1680 = vmul.f32 1.0, %v1679
  %v1681 = vrcp.pop %v1678
  %v1682 = vmul.f32 1.0, %v1681
  %v1683 = vtanh.pop %v1667
  %v1684 = vmul.f32 %v1680, %v1614
  %1686 = vrot.lane.b32.xlu0 %v1683, 64
  %v1687 = vpop.permute.xlu0 %1686
  %v1689 = vmul.f32 %v1680, %v1687
  %1691 = vrot.lane.b32.xlu0 %v1689, 64
  %v1692 = vpop.permute.xlu0 %1691
  %v1694 = vadd.f32 %v1684, %v1692
  %v1695 = vtanh.pop %v1694
  %1697 = vrot.lane.b32.xlu0 %v1695, 64
  %v1698 = vpop.permute.xlu0 %1697
  %v1700 = vmul.f32 %v1682, %v1698
  %v1701 = vpack.c.bf16 %v1700, %v1700
  %s1702 = smul.u32 15, 2
  %s1703 = smul.addr %s1702, 8
  %s1704 = scalar_lea.vmem [#allocation2], %s1703
  %v1705 = vld [vmem:[%s1704] sm:$0xff]
  %v1706 = vld [vmem:[%s1704 + $0x8] sm:$0xff]
  %v1708 = vsel %vm506, %v1701, 0
  %1710 = vmatprep.subr.bf16.mxu0 0
  %1711 = vmatpush1.bf16.msra.mxu0 0
  %1712 = vmatprep.subr.bf16.mxu0 0
  %1713 = vmatpush1.bf16.msra.mxu0 0
  %1714 = vmatprep.subr.bf16.mxu0 0
  %1715 = vmatpush1.bf16.msra.mxu0 0
  %1716 = vmatprep.subr.bf16.mxu0 0
  %1717 = vmatpush1.bf16.msra.mxu0 0
  %1718 = vmatprep.subr.bf16.mxu0 %v497
  %1719 = vmatpush1.bf16.msra.mxu0 %v496
  %1720 = vmatprep.subr.bf16.mxu0 %v495
  %1721 = vmatpush1.bf16.msra.mxu0 %v494
  %1722 = vmatprep.subr.bf16.mxu0 %v493
  %1723 = vmatpush1.bf16.msra.mxu0 %v492
  %1724 = vmatprep.subr.bf16.mxu0 %v491
  %1725 = vmatpush1.bf16.msra.mxu0 %v490
  %1726 = vmatprep.subr.bf16.mxu0 0
  %1727 = vmatpush2.bf16.msra.mxu0 0
  %1728 = vmatprep.subr.bf16.mxu0 0
  %1729 = vmatpush2.bf16.msra.mxu0 0
  %1730 = vmatprep.subr.bf16.mxu0 0
  %1731 = vmatpush2.bf16.msra.mxu0 0
  %1732 = vmatprep.subr.bf16.mxu0 0
  %1733 = vmatpush2.bf16.msra.mxu0 0
  %1734 = vmatprep.subr.bf16.mxu0 0
  %1735 = vmatpush2.bf16.msra.mxu0 0
  %1736 = vmatprep.subr.bf16.mxu0 0
  %1737 = vmatpush2.bf16.msra.mxu0 0
  %1738 = vmatprep.subr.bf16.mxu0 0
  %1739 = vmatpush2.bf16.msra.mxu0 0
  %1740 = vmatprep.subr.bf16.mxu0 0
  %1741 = vmatpush2.bf16.msra.mxu0 0
  %1742 = vmatprep.mubr.bf16.mxu0 0
  %1743 = vmatmul.mubr.bf16.gmra.mxu0 %v1708
  %v1744 = vpop.f32.mrf.mxu0
  %v1745 = vadd.f32 %v1705, %v1744
  %v1746 = vpop.f32.mrf.mxu0
  %v1747 = vadd.f32 %v1706, %v1746
  %v1748 = vpop.f32.mrf.mxu0
  %v1749 = vpop.f32.mrf.mxu0
  %1750 = vdwg.mxu0
  %v1751 = vxor.u32 %v1745, 2147483648
  %v1752 = vxor.u32 %v1747, 2147483648
  %v1753 = vmul.f32 %v1751, 1.442695
  %v1754 = vpow.pop %v1753
  %v1755 = vmul.f32 %v1752, 1.442695
  %v1756 = vpow.pop %v1755
  %v1757 = vadd.f32 %v1754, 1.0
  %v1758 = vadd.f32 %v1756, 1.0
  %v1759 = vrcp.pop %v1757
  %v1760 = vmul.f32 1.0, %v1759
  %v1761 = vrcp.pop %v1758
  %v1762 = vmul.f32 1.0, %v1761
  %v1763 = vtanh.pop %v1747
  %v1764 = vmul.f32 %v1760, %v1694
  %1766 = vrot.lane.b32.xlu0 %v1763, 64
  %v1767 = vpop.permute.xlu0 %1766
  %v1769 = vmul.f32 %v1760, %v1767
  %1771 = vrot.lane.b32.xlu0 %v1769, 64
  %v1772 = vpop.permute.xlu0 %1771
  %v1774 = vadd.f32 %v1764, %v1772
  %v1775 = vtanh.pop %v1774
  %1777 = vrot.lane.b32.xlu0 %v1775, 64
  %v1778 = vpop.permute.xlu0 %1777
  %v1780 = vmul.f32 %v1762, %v1778
  %v1781 = vpack.c.bf16 %v1780, %v1780
  %s1782 = smul.u32 16, 2
  %s1783 = smul.addr %s1782, 8
  %s1784 = scalar_lea.vmem [#allocation2], %s1783
  %v1785 = vld [vmem:[%s1784] sm:$0xff]
  %v1786 = vld [vmem:[%s1784 + $0x8] sm:$0xff]
  %v1788 = vsel %vm506, %v1781, 0
  %1790 = vmatprep.subr.bf16.mxu0 0
  %1791 = vmatpush1.bf16.msra.mxu0 0
  %1792 = vmatprep.subr.bf16.mxu0 0
  %1793 = vmatpush1.bf16.msra.mxu0 0
  %1794 = vmatprep.subr.bf16.mxu0 0
  %1795 = vmatpush1.bf16.msra.mxu0 0
  %1796 = vmatprep.subr.bf16.mxu0 0
  %1797 = vmatpush1.bf16.msra.mxu0 0
  %1798 = vmatprep.subr.bf16.mxu0 %v497
  %1799 = vmatpush1.bf16.msra.mxu0 %v496
  %1800 = vmatprep.subr.bf16.mxu0 %v495
  %1801 = vmatpush1.bf16.msra.mxu0 %v494
  %1802 = vmatprep.subr.bf16.mxu0 %v493
  %1803 = vmatpush1.bf16.msra.mxu0 %v492
  %1804 = vmatprep.subr.bf16.mxu0 %v491
  %1805 = vmatpush1.bf16.msra.mxu0 %v490
  %1806 = vmatprep.subr.bf16.mxu0 0
  %1807 = vmatpush2.bf16.msra.mxu0 0
  %1808 = vmatprep.subr.bf16.mxu0 0
  %1809 = vmatpush2.bf16.msra.mxu0 0
  %1810 = vmatprep.subr.bf16.mxu0 0
  %1811 = vmatpush2.bf16.msra.mxu0 0
  %1812 = vmatprep.subr.bf16.mxu0 0
  %1813 = vmatpush2.bf16.msra.mxu0 0
  %1814 = vmatprep.subr.bf16.mxu0 0
  %1815 = vmatpush2.bf16.msra.mxu0 0
  %1816 = vmatprep.subr.bf16.mxu0 0
  %1817 = vmatpush2.bf16.msra.mxu0 0
  %1818 = vmatprep.subr.bf16.mxu0 0
  %1819 = vmatpush2.bf16.msra.mxu0 0
  %1820 = vmatprep.subr.bf16.mxu0 0
  %1821 = vmatpush2.bf16.msra.mxu0 0
  %1822 = vmatprep.mubr.bf16.mxu0 0
  %1823 = vmatmul.mubr.bf16.gmra.mxu0 %v1788
  %v1824 = vpop.f32.mrf.mxu0
  %v1825 = vadd.f32 %v1785, %v1824
  %v1826 = vpop.f32.mrf.mxu0
  %v1827 = vadd.f32 %v1786, %v1826
  %v1828 = vpop.f32.mrf.mxu0
  %v1829 = vpop.f32.mrf.mxu0
  %1830 = vdwg.mxu0
  %v1831 = vxor.u32 %v1825, 2147483648
  %v1832 = vxor.u32 %v1827, 2147483648
  %v1833 = vmul.f32 %v1831, 1.442695
  %v1834 = vpow.pop %v1833
  %v1835 = vmul.f32 %v1832, 1.442695
  %v1836 = vpow.pop %v1835
  %v1837 = vadd.f32 %v1834, 1.0
  %v1838 = vadd.f32 %v1836, 1.0
  %v1839 = vrcp.pop %v1837
  %v1840 = vmul.f32 1.0, %v1839
  %v1841 = vrcp.pop %v1838
  %v1842 = vmul.f32 1.0, %v1841
  %v1843 = vtanh.pop %v1827
  %v1844 = vmul.f32 %v1840, %v1774
  %1846 = vrot.lane.b32.xlu0 %v1843, 64
  %v1847 = vpop.permute.xlu0 %1846
  %v1849 = vmul.f32 %v1840, %v1847
  %1851 = vrot.lane.b32.xlu0 %v1849, 64
  %v1852 = vpop.permute.xlu0 %1851
  %v1854 = vadd.f32 %v1844, %v1852
  %v1855 = vtanh.pop %v1854
  %1857 = vrot.lane.b32.xlu0 %v1855, 64
  %v1858 = vpop.permute.xlu0 %1857
  %v1860 = vmul.f32 %v1842, %v1858
  %v1861 = vpack.c.bf16 %v1860, %v1860
  %s1862 = smul.u32 17, 2
  %s1863 = smul.addr %s1862, 8
  %s1864 = scalar_lea.vmem [#allocation2], %s1863
  %v1865 = vld [vmem:[%s1864] sm:$0xff]
  %v1866 = vld [vmem:[%s1864 + $0x8] sm:$0xff]
  %v1868 = vsel %vm506, %v1861, 0
  %1870 = vmatprep.subr.bf16.mxu0 0
  %1871 = vmatpush1.bf16.msra.mxu0 0
  %1872 = vmatprep.subr.bf16.mxu0 0
  %1873 = vmatpush1.bf16.msra.mxu0 0
  %1874 = vmatprep.subr.bf16.mxu0 0
  %1875 = vmatpush1.bf16.msra.mxu0 0
  %1876 = vmatprep.subr.bf16.mxu0 0
  %1877 = vmatpush1.bf16.msra.mxu0 0
  %1878 = vmatprep.subr.bf16.mxu0 %v497
  %1879 = vmatpush1.bf16.msra.mxu0 %v496
  %1880 = vmatprep.subr.bf16.mxu0 %v495
  %1881 = vmatpush1.bf16.msra.mxu0 %v494
  %1882 = vmatprep.subr.bf16.mxu0 %v493
  %1883 = vmatpush1.bf16.msra.mxu0 %v492
  %1884 = vmatprep.subr.bf16.mxu0 %v491
  %1885 = vmatpush1.bf16.msra.mxu0 %v490
  %1886 = vmatprep.subr.bf16.mxu0 0
  %1887 = vmatpush2.bf16.msra.mxu0 0
  %1888 = vmatprep.subr.bf16.mxu0 0
  %1889 = vmatpush2.bf16.msra.mxu0 0
  %1890 = vmatprep.subr.bf16.mxu0 0
  %1891 = vmatpush2.bf16.msra.mxu0 0
  %1892 = vmatprep.subr.bf16.mxu0 0
  %1893 = vmatpush2.bf16.msra.mxu0 0
  %1894 = vmatprep.subr.bf16.mxu0 0
  %1895 = vmatpush2.bf16.msra.mxu0 0
  %1896 = vmatprep.subr.bf16.mxu0 0
  %1897 = vmatpush2.bf16.msra.mxu0 0
  %1898 = vmatprep.subr.bf16.mxu0 0
  %1899 = vmatpush2.bf16.msra.mxu0 0
  %1900 = vmatprep.subr.bf16.mxu0 0
  %1901 = vmatpush2.bf16.msra.mxu0 0
  %1902 = vmatprep.mubr.bf16.mxu0 0
  %1903 = vmatmul.mubr.bf16.gmra.mxu0 %v1868
  %v1904 = vpop.f32.mrf.mxu0
  %v1905 = vadd.f32 %v1865, %v1904
  %v1906 = vpop.f32.mrf.mxu0
  %v1907 = vadd.f32 %v1866, %v1906
  %v1908 = vpop.f32.mrf.mxu0
  %v1909 = vpop.f32.mrf.mxu0
  %1910 = vdwg.mxu0
  %v1911 = vxor.u32 %v1905, 2147483648
  %v1912 = vxor.u32 %v1907, 2147483648
  %v1913 = vmul.f32 %v1911, 1.442695
  %v1914 = vpow.pop %v1913
  %v1915 = vmul.f32 %v1912, 1.442695
  %v1916 = vpow.pop %v1915
  %v1917 = vadd.f32 %v1914, 1.0
  %v1918 = vadd.f32 %v1916, 1.0
  %v1919 = vrcp.pop %v1917
  %v1920 = vmul.f32 1.0, %v1919
  %v1921 = vrcp.pop %v1918
  %v1922 = vmul.f32 1.0, %v1921
  %v1923 = vtanh.pop %v1907
  %v1924 = vmul.f32 %v1920, %v1854
  %1926 = vrot.lane.b32.xlu0 %v1923, 64
  %v1927 = vpop.permute.xlu0 %1926
  %v1929 = vmul.f32 %v1920, %v1927
  %1931 = vrot.lane.b32.xlu0 %v1929, 64
  %v1932 = vpop.permute.xlu0 %1931
  %v1934 = vadd.f32 %v1924, %v1932
  %v1935 = vtanh.pop %v1934
  %1937 = vrot.lane.b32.xlu0 %v1935, 64
  %v1938 = vpop.permute.xlu0 %1937
  %v1940 = vmul.f32 %v1922, %v1938
  %v1941 = vpack.c.bf16 %v1940, %v1940
  %s1942 = smul.u32 18, 2
  %s1943 = smul.addr %s1942, 8
  %s1944 = scalar_lea.vmem [#allocation2], %s1943
  %v1945 = vld [vmem:[%s1944] sm:$0xff]
  %v1946 = vld [vmem:[%s1944 + $0x8] sm:$0xff]
  %v1948 = vsel %vm506, %v1941, 0
  %1950 = vmatprep.subr.bf16.mxu0 0
  %1951 = vmatpush1.bf16.msra.mxu0 0
  %1952 = vmatprep.subr.bf16.mxu0 0
  %1953 = vmatpush1.bf16.msra.mxu0 0
  %1954 = vmatprep.subr.bf16.mxu0 0
  %1955 = vmatpush1.bf16.msra.mxu0 0
  %1956 = vmatprep.subr.bf16.mxu0 0
  %1957 = vmatpush1.bf16.msra.mxu0 0
  %1958 = vmatprep.subr.bf16.mxu0 %v497
  %1959 = vmatpush1.bf16.msra.mxu0 %v496
  %1960 = vmatprep.subr.bf16.mxu0 %v495
  %1961 = vmatpush1.bf16.msra.mxu0 %v494
  %1962 = vmatprep.subr.bf16.mxu0 %v493
  %1963 = vmatpush1.bf16.msra.mxu0 %v492
  %1964 = vmatprep.subr.bf16.mxu0 %v491
  %1965 = vmatpush1.bf16.msra.mxu0 %v490
  %1966 = vmatprep.subr.bf16.mxu0 0
  %1967 = vmatpush2.bf16.msra.mxu0 0
  %1968 = vmatprep.subr.bf16.mxu0 0
  %1969 = vmatpush2.bf16.msra.mxu0 0
  %1970 = vmatprep.subr.bf16.mxu0 0
  %1971 = vmatpush2.bf16.msra.mxu0 0
  %1972 = vmatprep.subr.bf16.mxu0 0
  %1973 = vmatpush2.bf16.msra.mxu0 0
  %1974 = vmatprep.subr.bf16.mxu0 0
  %1975 = vmatpush2.bf16.msra.mxu0 0
  %1976 = vmatprep.subr.bf16.mxu0 0
  %1977 = vmatpush2.bf16.msra.mxu0 0
  %1978 = vmatprep.subr.bf16.mxu0 0
  %1979 = vmatpush2.bf16.msra.mxu0 0
  %1980 = vmatprep.subr.bf16.mxu0 0
  %1981 = vmatpush2.bf16.msra.mxu0 0
  %1982 = vmatprep.mubr.bf16.mxu0 0
  %1983 = vmatmul.mubr.bf16.gmra.mxu0 %v1948
  %v1984 = vpop.f32.mrf.mxu0
  %v1985 = vadd.f32 %v1945, %v1984
  %v1986 = vpop.f32.mrf.mxu0
  %v1987 = vadd.f32 %v1946, %v1986
  %v1988 = vpop.f32.mrf.mxu0
  %v1989 = vpop.f32.mrf.mxu0
  %1990 = vdwg.mxu0
  %v1991 = vxor.u32 %v1985, 2147483648
  %v1992 = vxor.u32 %v1987, 2147483648
  %v1993 = vmul.f32 %v1991, 1.442695
  %v1994 = vpow.pop %v1993
  %v1995 = vmul.f32 %v1992, 1.442695
  %v1996 = vpow.pop %v1995
  %v1997 = vadd.f32 %v1994, 1.0
  %v1998 = vadd.f32 %v1996, 1.0
  %v1999 = vrcp.pop %v1997
  %v2000 = vmul.f32 1.0, %v1999
  %v2001 = vrcp.pop %v1998
  %v2002 = vmul.f32 1.0, %v2001
  %v2003 = vtanh.pop %v1987
  %v2004 = vmul.f32 %v2000, %v1934
  %2006 = vrot.lane.b32.xlu0 %v2003, 64
  %v2007 = vpop.permute.xlu0 %2006
  %v2009 = vmul.f32 %v2000, %v2007
  %2011 = vrot.lane.b32.xlu0 %v2009, 64
  %v2012 = vpop.permute.xlu0 %2011
  %v2014 = vadd.f32 %v2004, %v2012
  %v2015 = vtanh.pop %v2014
  %2017 = vrot.lane.b32.xlu0 %v2015, 64
  %v2018 = vpop.permute.xlu0 %2017
  %v2020 = vmul.f32 %v2002, %v2018
  %v2021 = vpack.c.bf16 %v2020, %v2020
  %s2022 = smul.u32 19, 2
  %s2023 = smul.addr %s2022, 8
  %s2024 = scalar_lea.vmem [#allocation2], %s2023
  %v2025 = vld [vmem:[%s2024] sm:$0xff]
  %v2026 = vld [vmem:[%s2024 + $0x8] sm:$0xff]
  %v2028 = vsel %vm506, %v2021, 0
  %2030 = vmatprep.subr.bf16.mxu0 0
  %2031 = vmatpush1.bf16.msra.mxu0 0
  %2032 = vmatprep.subr.bf16.mxu0 0
  %2033 = vmatpush1.bf16.msra.mxu0 0
  %2034 = vmatprep.subr.bf16.mxu0 0
  %2035 = vmatpush1.bf16.msra.mxu0 0
  %2036 = vmatprep.subr.bf16.mxu0 0
  %2037 = vmatpush1.bf16.msra.mxu0 0
  %2038 = vmatprep.subr.bf16.mxu0 %v497
  %2039 = vmatpush1.bf16.msra.mxu0 %v496
  %2040 = vmatprep.subr.bf16.mxu0 %v495
  %2041 = vmatpush1.bf16.msra.mxu0 %v494
  %2042 = vmatprep.subr.bf16.mxu0 %v493
  %2043 = vmatpush1.bf16.msra.mxu0 %v492
  %2044 = vmatprep.subr.bf16.mxu0 %v491
  %2045 = vmatpush1.bf16.msra.mxu0 %v490
  %2046 = vmatprep.subr.bf16.mxu0 0
  %2047 = vmatpush2.bf16.msra.mxu0 0
  %2048 = vmatprep.subr.bf16.mxu0 0
  %2049 = vmatpush2.bf16.msra.mxu0 0
  %2050 = vmatprep.subr.bf16.mxu0 0
  %2051 = vmatpush2.bf16.msra.mxu0 0
  %2052 = vmatprep.subr.bf16.mxu0 0
  %2053 = vmatpush2.bf16.msra.mxu0 0
  %2054 = vmatprep.subr.bf16.mxu0 0
  %2055 = vmatpush2.bf16.msra.mxu0 0
  %2056 = vmatprep.subr.bf16.mxu0 0
  %2057 = vmatpush2.bf16.msra.mxu0 0
  %2058 = vmatprep.subr.bf16.mxu0 0
  %2059 = vmatpush2.bf16.msra.mxu0 0
  %2060 = vmatprep.subr.bf16.mxu0 0
  %2061 = vmatpush2.bf16.msra.mxu0 0
  %2062 = vmatprep.mubr.bf16.mxu0 0
  %2063 = vmatmul.mubr.bf16.gmra.mxu0 %v2028
  %v2064 = vpop.f32.mrf.mxu0
  %v2065 = vadd.f32 %v2025, %v2064
  %v2066 = vpop.f32.mrf.mxu0
  %v2067 = vadd.f32 %v2026, %v2066
  %v2068 = vpop.f32.mrf.mxu0
  %v2069 = vpop.f32.mrf.mxu0
  %2070 = vdwg.mxu0
  %v2071 = vxor.u32 %v2065, 2147483648
  %v2072 = vxor.u32 %v2067, 2147483648
  %v2073 = vmul.f32 %v2071, 1.442695
  %v2074 = vpow.pop %v2073
  %v2075 = vmul.f32 %v2072, 1.442695
  %v2076 = vpow.pop %v2075
  %v2077 = vadd.f32 %v2074, 1.0
  %v2078 = vadd.f32 %v2076, 1.0
  %v2079 = vrcp.pop %v2077
  %v2080 = vmul.f32 1.0, %v2079
  %v2081 = vrcp.pop %v2078
  %v2082 = vmul.f32 1.0, %v2081
  %v2083 = vtanh.pop %v2067
  %v2084 = vmul.f32 %v2080, %v2014
  %2086 = vrot.lane.b32.xlu0 %v2083, 64
  %v2087 = vpop.permute.xlu0 %2086
  %v2089 = vmul.f32 %v2080, %v2087
  %2091 = vrot.lane.b32.xlu0 %v2089, 64
  %v2092 = vpop.permute.xlu0 %2091
  %v2094 = vadd.f32 %v2084, %v2092
  %v2095 = vtanh.pop %v2094
  %2097 = vrot.lane.b32.xlu0 %v2095, 64
  %v2098 = vpop.permute.xlu0 %2097
  %v2100 = vmul.f32 %v2082, %v2098
  %v2101 = vpack.c.bf16 %v2100, %v2100
  %s2102 = smul.u32 20, 2
  %s2103 = smul.addr %s2102, 8
  %s2104 = scalar_lea.vmem [#allocation2], %s2103
  %v2105 = vld [vmem:[%s2104] sm:$0xff]
  %v2106 = vld [vmem:[%s2104 + $0x8] sm:$0xff]
  %v2108 = vsel %vm506, %v2101, 0
  %2110 = vmatprep.subr.bf16.mxu0 0
  %2111 = vmatpush1.bf16.msra.mxu0 0
  %2112 = vmatprep.subr.bf16.mxu0 0
  %2113 = vmatpush1.bf16.msra.mxu0 0
  %2114 = vmatprep.subr.bf16.mxu0 0
  %2115 = vmatpush1.bf16.msra.mxu0 0
  %2116 = vmatprep.subr.bf16.mxu0 0
  %2117 = vmatpush1.bf16.msra.mxu0 0
  %2118 = vmatprep.subr.bf16.mxu0 %v497
  %2119 = vmatpush1.bf16.msra.mxu0 %v496
  %2120 = vmatprep.subr.bf16.mxu0 %v495
  %2121 = vmatpush1.bf16.msra.mxu0 %v494
  %2122 = vmatprep.subr.bf16.mxu0 %v493
  %2123 = vmatpush1.bf16.msra.mxu0 %v492
  %2124 = vmatprep.subr.bf16.mxu0 %v491
  %2125 = vmatpush1.bf16.msra.mxu0 %v490
  %2126 = vmatprep.subr.bf16.mxu0 0
  %2127 = vmatpush2.bf16.msra.mxu0 0
  %2128 = vmatprep.subr.bf16.mxu0 0
  %2129 = vmatpush2.bf16.msra.mxu0 0
  %2130 = vmatprep.subr.bf16.mxu0 0
  %2131 = vmatpush2.bf16.msra.mxu0 0
  %2132 = vmatprep.subr.bf16.mxu0 0
  %2133 = vmatpush2.bf16.msra.mxu0 0
  %2134 = vmatprep.subr.bf16.mxu0 0
  %2135 = vmatpush2.bf16.msra.mxu0 0
  %2136 = vmatprep.subr.bf16.mxu0 0
  %2137 = vmatpush2.bf16.msra.mxu0 0
  %2138 = vmatprep.subr.bf16.mxu0 0
  %2139 = vmatpush2.bf16.msra.mxu0 0
  %2140 = vmatprep.subr.bf16.mxu0 0
  %2141 = vmatpush2.bf16.msra.mxu0 0
  %2142 = vmatprep.mubr.bf16.mxu0 0
  %2143 = vmatmul.mubr.bf16.gmra.mxu0 %v2108
  %v2144 = vpop.f32.mrf.mxu0
  %v2145 = vadd.f32 %v2105, %v2144
  %v2146 = vpop.f32.mrf.mxu0
  %v2147 = vadd.f32 %v2106, %v2146
  %v2148 = vpop.f32.mrf.mxu0
  %v2149 = vpop.f32.mrf.mxu0
  %2150 = vdwg.mxu0
  %v2151 = vxor.u32 %v2145, 2147483648
  %v2152 = vxor.u32 %v2147, 2147483648
  %v2153 = vmul.f32 %v2151, 1.442695
  %v2154 = vpow.pop %v2153
  %v2155 = vmul.f32 %v2152, 1.442695
  %v2156 = vpow.pop %v2155
  %v2157 = vadd.f32 %v2154, 1.0
  %v2158 = vadd.f32 %v2156, 1.0
  %v2159 = vrcp.pop %v2157
  %v2160 = vmul.f32 1.0, %v2159
  %v2161 = vrcp.pop %v2158
  %v2162 = vmul.f32 1.0, %v2161
  %v2163 = vtanh.pop %v2147
  %v2164 = vmul.f32 %v2160, %v2094
  %2166 = vrot.lane.b32.xlu0 %v2163, 64
  %v2167 = vpop.permute.xlu0 %2166
  %v2169 = vmul.f32 %v2160, %v2167
  %2171 = vrot.lane.b32.xlu0 %v2169, 64
  %v2172 = vpop.permute.xlu0 %2171
  %v2174 = vadd.f32 %v2164, %v2172
  %v2175 = vtanh.pop %v2174
  %2177 = vrot.lane.b32.xlu0 %v2175, 64
  %v2178 = vpop.permute.xlu0 %2177
  %v2180 = vmul.f32 %v2162, %v2178
  %v2181 = vpack.c.bf16 %v2180, %v2180
  %s2182 = smul.u32 21, 2
  %s2183 = smul.addr %s2182, 8
  %s2184 = scalar_lea.vmem [#allocation2], %s2183
  %v2185 = vld [vmem:[%s2184] sm:$0xff]
  %v2186 = vld [vmem:[%s2184 + $0x8] sm:$0xff]
  %v2188 = vsel %vm506, %v2181, 0
  %2190 = vmatprep.subr.bf16.mxu0 0
  %2191 = vmatpush1.bf16.msra.mxu0 0
  %2192 = vmatprep.subr.bf16.mxu0 0
  %2193 = vmatpush1.bf16.msra.mxu0 0
  %2194 = vmatprep.subr.bf16.mxu0 0
  %2195 = vmatpush1.bf16.msra.mxu0 0
  %2196 = vmatprep.subr.bf16.mxu0 0
  %2197 = vmatpush1.bf16.msra.mxu0 0
  %2198 = vmatprep.subr.bf16.mxu0 %v497
  %2199 = vmatpush1.bf16.msra.mxu0 %v496
  %2200 = vmatprep.subr.bf16.mxu0 %v495
  %2201 = vmatpush1.bf16.msra.mxu0 %v494
  %2202 = vmatprep.subr.bf16.mxu0 %v493
  %2203 = vmatpush1.bf16.msra.mxu0 %v492
  %2204 = vmatprep.subr.bf16.mxu0 %v491
  %2205 = vmatpush1.bf16.msra.mxu0 %v490
  %2206 = vmatprep.subr.bf16.mxu0 0
  %2207 = vmatpush2.bf16.msra.mxu0 0
  %2208 = vmatprep.subr.bf16.mxu0 0
  %2209 = vmatpush2.bf16.msra.mxu0 0
  %2210 = vmatprep.subr.bf16.mxu0 0
  %2211 = vmatpush2.bf16.msra.mxu0 0
  %2212 = vmatprep.subr.bf16.mxu0 0
  %2213 = vmatpush2.bf16.msra.mxu0 0
  %2214 = vmatprep.subr.bf16.mxu0 0
  %2215 = vmatpush2.bf16.msra.mxu0 0
  %2216 = vmatprep.subr.bf16.mxu0 0
  %2217 = vmatpush2.bf16.msra.mxu0 0
  %2218 = vmatprep.subr.bf16.mxu0 0
  %2219 = vmatpush2.bf16.msra.mxu0 0
  %2220 = vmatprep.subr.bf16.mxu0 0
  %2221 = vmatpush2.bf16.msra.mxu0 0
  %2222 = vmatprep.mubr.bf16.mxu0 0
  %2223 = vmatmul.mubr.bf16.gmra.mxu0 %v2188
  %v2224 = vpop.f32.mrf.mxu0
  %v2225 = vadd.f32 %v2185, %v2224
  %v2226 = vpop.f32.mrf.mxu0
  %v2227 = vadd.f32 %v2186, %v2226
  %v2228 = vpop.f32.mrf.mxu0
  %v2229 = vpop.f32.mrf.mxu0
  %2230 = vdwg.mxu0
  %v2231 = vxor.u32 %v2225, 2147483648
  %v2232 = vxor.u32 %v2227, 2147483648
  %v2233 = vmul.f32 %v2231, 1.442695
  %v2234 = vpow.pop %v2233
  %v2235 = vmul.f32 %v2232, 1.442695
  %v2236 = vpow.pop %v2235
  %v2237 = vadd.f32 %v2234, 1.0
  %v2238 = vadd.f32 %v2236, 1.0
  %v2239 = vrcp.pop %v2237
  %v2240 = vmul.f32 1.0, %v2239
  %v2241 = vrcp.pop %v2238
  %v2242 = vmul.f32 1.0, %v2241
  %v2243 = vtanh.pop %v2227
  %v2244 = vmul.f32 %v2240, %v2174
  %2246 = vrot.lane.b32.xlu0 %v2243, 64
  %v2247 = vpop.permute.xlu0 %2246
  %v2249 = vmul.f32 %v2240, %v2247
  %2251 = vrot.lane.b32.xlu0 %v2249, 64
  %v2252 = vpop.permute.xlu0 %2251
  %v2254 = vadd.f32 %v2244, %v2252
  %v2255 = vtanh.pop %v2254
  %2257 = vrot.lane.b32.xlu0 %v2255, 64
  %v2258 = vpop.permute.xlu0 %2257
  %v2260 = vmul.f32 %v2242, %v2258
  %v2261 = vpack.c.bf16 %v2260, %v2260
  %s2262 = smul.u32 22, 2
  %s2263 = smul.addr %s2262, 8
  %s2264 = scalar_lea.vmem [#allocation2], %s2263
  %v2265 = vld [vmem:[%s2264] sm:$0xff]
  %v2266 = vld [vmem:[%s2264 + $0x8] sm:$0xff]
  %v2268 = vsel %vm506, %v2261, 0
  %2270 = vmatprep.subr.bf16.mxu0 0
  %2271 = vmatpush1.bf16.msra.mxu0 0
  %2272 = vmatprep.subr.bf16.mxu0 0
  %2273 = vmatpush1.bf16.msra.mxu0 0
  %2274 = vmatprep.subr.bf16.mxu0 0
  %2275 = vmatpush1.bf16.msra.mxu0 0
  %2276 = vmatprep.subr.bf16.mxu0 0
  %2277 = vmatpush1.bf16.msra.mxu0 0
  %2278 = vmatprep.subr.bf16.mxu0 %v497
  %2279 = vmatpush1.bf16.msra.mxu0 %v496
  %2280 = vmatprep.subr.bf16.mxu0 %v495
  %2281 = vmatpush1.bf16.msra.mxu0 %v494
  %2282 = vmatprep.subr.bf16.mxu0 %v493
  %2283 = vmatpush1.bf16.msra.mxu0 %v492
  %2284 = vmatprep.subr.bf16.mxu0 %v491
  %2285 = vmatpush1.bf16.msra.mxu0 %v490
  %2286 = vmatprep.subr.bf16.mxu0 0
  %2287 = vmatpush2.bf16.msra.mxu0 0
  %2288 = vmatprep.subr.bf16.mxu0 0
  %2289 = vmatpush2.bf16.msra.mxu0 0
  %2290 = vmatprep.subr.bf16.mxu0 0
  %2291 = vmatpush2.bf16.msra.mxu0 0
  %2292 = vmatprep.subr.bf16.mxu0 0
  %2293 = vmatpush2.bf16.msra.mxu0 0
  %2294 = vmatprep.subr.bf16.mxu0 0
  %2295 = vmatpush2.bf16.msra.mxu0 0
  %2296 = vmatprep.subr.bf16.mxu0 0
  %2297 = vmatpush2.bf16.msra.mxu0 0
  %2298 = vmatprep.subr.bf16.mxu0 0
  %2299 = vmatpush2.bf16.msra.mxu0 0
  %2300 = vmatprep.subr.bf16.mxu0 0
  %2301 = vmatpush2.bf16.msra.mxu0 0
  %2302 = vmatprep.mubr.bf16.mxu0 0
  %2303 = vmatmul.mubr.bf16.gmra.mxu0 %v2268
  %v2304 = vpop.f32.mrf.mxu0
  %v2305 = vadd.f32 %v2265, %v2304
  %v2306 = vpop.f32.mrf.mxu0
  %v2307 = vadd.f32 %v2266, %v2306
  %v2308 = vpop.f32.mrf.mxu0
  %v2309 = vpop.f32.mrf.mxu0
  %2310 = vdwg.mxu0
  %v2311 = vxor.u32 %v2305, 2147483648
  %v2312 = vxor.u32 %v2307, 2147483648
  %v2313 = vmul.f32 %v2311, 1.442695
  %v2314 = vpow.pop %v2313
  %v2315 = vmul.f32 %v2312, 1.442695
  %v2316 = vpow.pop %v2315
  %v2317 = vadd.f32 %v2314, 1.0
  %v2318 = vadd.f32 %v2316, 1.0
  %v2319 = vrcp.pop %v2317
  %v2320 = vmul.f32 1.0, %v2319
  %v2321 = vrcp.pop %v2318
  %v2322 = vmul.f32 1.0, %v2321
  %v2323 = vtanh.pop %v2307
  %v2324 = vmul.f32 %v2320, %v2254
  %2326 = vrot.lane.b32.xlu0 %v2323, 64
  %v2327 = vpop.permute.xlu0 %2326
  %v2329 = vmul.f32 %v2320, %v2327
  %2331 = vrot.lane.b32.xlu0 %v2329, 64
  %v2332 = vpop.permute.xlu0 %2331
  %v2334 = vadd.f32 %v2324, %v2332
  %v2335 = vtanh.pop %v2334
  %2337 = vrot.lane.b32.xlu0 %v2335, 64
  %v2338 = vpop.permute.xlu0 %2337
  %v2340 = vmul.f32 %v2322, %v2338
  %v2341 = vpack.c.bf16 %v2340, %v2340
  %s2342 = smul.u32 23, 2
  %s2343 = smul.addr %s2342, 8
  %s2344 = scalar_lea.vmem [#allocation2], %s2343
  %v2345 = vld [vmem:[%s2344] sm:$0xff]
  %v2346 = vld [vmem:[%s2344 + $0x8] sm:$0xff]
  %v2348 = vsel %vm506, %v2341, 0
  %2350 = vmatprep.subr.bf16.mxu0 0
  %2351 = vmatpush1.bf16.msra.mxu0 0
  %2352 = vmatprep.subr.bf16.mxu0 0
  %2353 = vmatpush1.bf16.msra.mxu0 0
  %2354 = vmatprep.subr.bf16.mxu0 0
  %2355 = vmatpush1.bf16.msra.mxu0 0
  %2356 = vmatprep.subr.bf16.mxu0 0
  %2357 = vmatpush1.bf16.msra.mxu0 0
  %2358 = vmatprep.subr.bf16.mxu0 %v497
  %2359 = vmatpush1.bf16.msra.mxu0 %v496
  %2360 = vmatprep.subr.bf16.mxu0 %v495
  %2361 = vmatpush1.bf16.msra.mxu0 %v494
  %2362 = vmatprep.subr.bf16.mxu0 %v493
  %2363 = vmatpush1.bf16.msra.mxu0 %v492
  %2364 = vmatprep.subr.bf16.mxu0 %v491
  %2365 = vmatpush1.bf16.msra.mxu0 %v490
  %2366 = vmatprep.subr.bf16.mxu0 0
  %2367 = vmatpush2.bf16.msra.mxu0 0
  %2368 = vmatprep.subr.bf16.mxu0 0
  %2369 = vmatpush2.bf16.msra.mxu0 0
  %2370 = vmatprep.subr.bf16.mxu0 0
  %2371 = vmatpush2.bf16.msra.mxu0 0
  %2372 = vmatprep.subr.bf16.mxu0 0
  %2373 = vmatpush2.bf16.msra.mxu0 0
  %2374 = vmatprep.subr.bf16.mxu0 0
  %2375 = vmatpush2.bf16.msra.mxu0 0
  %2376 = vmatprep.subr.bf16.mxu0 0
  %2377 = vmatpush2.bf16.msra.mxu0 0
  %2378 = vmatprep.subr.bf16.mxu0 0
  %2379 = vmatpush2.bf16.msra.mxu0 0
  %2380 = vmatprep.subr.bf16.mxu0 0
  %2381 = vmatpush2.bf16.msra.mxu0 0
  %2382 = vmatprep.mubr.bf16.mxu0 0
  %2383 = vmatmul.mubr.bf16.gmra.mxu0 %v2348
  %v2384 = vpop.f32.mrf.mxu0
  %v2385 = vadd.f32 %v2345, %v2384
  %v2386 = vpop.f32.mrf.mxu0
  %v2387 = vadd.f32 %v2346, %v2386
  %v2388 = vpop.f32.mrf.mxu0
  %v2389 = vpop.f32.mrf.mxu0
  %2390 = vdwg.mxu0
  %v2391 = vxor.u32 %v2385, 2147483648
  %v2392 = vxor.u32 %v2387, 2147483648
  %v2393 = vmul.f32 %v2391, 1.442695
  %v2394 = vpow.pop %v2393
  %v2395 = vmul.f32 %v2392, 1.442695
  %v2396 = vpow.pop %v2395
  %v2397 = vadd.f32 %v2394, 1.0
  %v2398 = vadd.f32 %v2396, 1.0
  %v2399 = vrcp.pop %v2397
  %v2400 = vmul.f32 1.0, %v2399
  %v2401 = vrcp.pop %v2398
  %v2402 = vmul.f32 1.0, %v2401
  %v2403 = vtanh.pop %v2387
  %v2404 = vmul.f32 %v2400, %v2334
  %2406 = vrot.lane.b32.xlu0 %v2403, 64
  %v2407 = vpop.permute.xlu0 %2406
  %v2409 = vmul.f32 %v2400, %v2407
  %2411 = vrot.lane.b32.xlu0 %v2409, 64
  %v2412 = vpop.permute.xlu0 %2411
  %v2414 = vadd.f32 %v2404, %v2412
  %v2415 = vtanh.pop %v2414
  %2417 = vrot.lane.b32.xlu0 %v2415, 64
  %v2418 = vpop.permute.xlu0 %2417
  %v2420 = vmul.f32 %v2402, %v2418
  %v2421 = vpack.c.bf16 %v2420, %v2420
  %s2422 = smul.u32 24, 2
  %s2423 = smul.addr %s2422, 8
  %s2424 = scalar_lea.vmem [#allocation2], %s2423
  %v2425 = vld [vmem:[%s2424] sm:$0xff]
  %v2426 = vld [vmem:[%s2424 + $0x8] sm:$0xff]
  %v2428 = vsel %vm506, %v2421, 0
  %2430 = vmatprep.subr.bf16.mxu0 0
  %2431 = vmatpush1.bf16.msra.mxu0 0
  %2432 = vmatprep.subr.bf16.mxu0 0
  %2433 = vmatpush1.bf16.msra.mxu0 0
  %2434 = vmatprep.subr.bf16.mxu0 0
  %2435 = vmatpush1.bf16.msra.mxu0 0
  %2436 = vmatprep.subr.bf16.mxu0 0
  %2437 = vmatpush1.bf16.msra.mxu0 0
  %2438 = vmatprep.subr.bf16.mxu0 %v497
  %2439 = vmatpush1.bf16.msra.mxu0 %v496
  %2440 = vmatprep.subr.bf16.mxu0 %v495
  %2441 = vmatpush1.bf16.msra.mxu0 %v494
  %2442 = vmatprep.subr.bf16.mxu0 %v493
  %2443 = vmatpush1.bf16.msra.mxu0 %v492
  %2444 = vmatprep.subr.bf16.mxu0 %v491
  %2445 = vmatpush1.bf16.msra.mxu0 %v490
  %2446 = vmatprep.subr.bf16.mxu0 0
  %2447 = vmatpush2.bf16.msra.mxu0 0
  %2448 = vmatprep.subr.bf16.mxu0 0
  %2449 = vmatpush2.bf16.msra.mxu0 0
  %2450 = vmatprep.subr.bf16.mxu0 0
  %2451 = vmatpush2.bf16.msra.mxu0 0
  %2452 = vmatprep.subr.bf16.mxu0 0
  %2453 = vmatpush2.bf16.msra.mxu0 0
  %2454 = vmatprep.subr.bf16.mxu0 0
  %2455 = vmatpush2.bf16.msra.mxu0 0
  %2456 = vmatprep.subr.bf16.mxu0 0
  %2457 = vmatpush2.bf16.msra.mxu0 0
  %2458 = vmatprep.subr.bf16.mxu0 0
  %2459 = vmatpush2.bf16.msra.mxu0 0
  %2460 = vmatprep.subr.bf16.mxu0 0
  %2461 = vmatpush2.bf16.msra.mxu0 0
  %2462 = vmatprep.mubr.bf16.mxu0 0
  %2463 = vmatmul.mubr.bf16.gmra.mxu0 %v2428
  %v2464 = vpop.f32.mrf.mxu0
  %v2465 = vadd.f32 %v2425, %v2464
  %v2466 = vpop.f32.mrf.mxu0
  %v2467 = vadd.f32 %v2426, %v2466
  %v2468 = vpop.f32.mrf.mxu0
  %v2469 = vpop.f32.mrf.mxu0
  %2470 = vdwg.mxu0
  %v2471 = vxor.u32 %v2465, 2147483648
  %v2472 = vxor.u32 %v2467, 2147483648
  %v2473 = vmul.f32 %v2471, 1.442695
  %v2474 = vpow.pop %v2473
  %v2475 = vmul.f32 %v2472, 1.442695
  %v2476 = vpow.pop %v2475
  %v2477 = vadd.f32 %v2474, 1.0
  %v2478 = vadd.f32 %v2476, 1.0
  %v2479 = vrcp.pop %v2477
  %v2480 = vmul.f32 1.0, %v2479
  %v2481 = vrcp.pop %v2478
  %v2482 = vmul.f32 1.0, %v2481
  %v2483 = vtanh.pop %v2467
  %v2484 = vmul.f32 %v2480, %v2414
  %2486 = vrot.lane.b32.xlu0 %v2483, 64
  %v2487 = vpop.permute.xlu0 %2486
  %v2489 = vmul.f32 %v2480, %v2487
  %2491 = vrot.lane.b32.xlu0 %v2489, 64
  %v2492 = vpop.permute.xlu0 %2491
  %v2494 = vadd.f32 %v2484, %v2492
  %v2495 = vtanh.pop %v2494
  %2497 = vrot.lane.b32.xlu0 %v2495, 64
  %v2498 = vpop.permute.xlu0 %2497
  %v2500 = vmul.f32 %v2482, %v2498
  %v2501 = vpack.c.bf16 %v2500, %v2500
  %s2502 = smul.u32 25, 2
  %s2503 = smul.addr %s2502, 8
  %s2504 = scalar_lea.vmem [#allocation2], %s2503
  %v2505 = vld [vmem:[%s2504] sm:$0xff]
  %v2506 = vld [vmem:[%s2504 + $0x8] sm:$0xff]
  %v2508 = vsel %vm506, %v2501, 0
  %2510 = vmatprep.subr.bf16.mxu0 0
  %2511 = vmatpush1.bf16.msra.mxu0 0
  %2512 = vmatprep.subr.bf16.mxu0 0
  %2513 = vmatpush1.bf16.msra.mxu0 0
  %2514 = vmatprep.subr.bf16.mxu0 0
  %2515 = vmatpush1.bf16.msra.mxu0 0
  %2516 = vmatprep.subr.bf16.mxu0 0
  %2517 = vmatpush1.bf16.msra.mxu0 0
  %2518 = vmatprep.subr.bf16.mxu0 %v497
  %2519 = vmatpush1.bf16.msra.mxu0 %v496
  %2520 = vmatprep.subr.bf16.mxu0 %v495
  %2521 = vmatpush1.bf16.msra.mxu0 %v494
  %2522 = vmatprep.subr.bf16.mxu0 %v493
  %2523 = vmatpush1.bf16.msra.mxu0 %v492
  %2524 = vmatprep.subr.bf16.mxu0 %v491
  %2525 = vmatpush1.bf16.msra.mxu0 %v490
  %2526 = vmatprep.subr.bf16.mxu0 0
  %2527 = vmatpush2.bf16.msra.mxu0 0
  %2528 = vmatprep.subr.bf16.mxu0 0
  %2529 = vmatpush2.bf16.msra.mxu0 0
  %2530 = vmatprep.subr.bf16.mxu0 0
  %2531 = vmatpush2.bf16.msra.mxu0 0
  %2532 = vmatprep.subr.bf16.mxu0 0
  %2533 = vmatpush2.bf16.msra.mxu0 0
  %2534 = vmatprep.subr.bf16.mxu0 0
  %2535 = vmatpush2.bf16.msra.mxu0 0
  %2536 = vmatprep.subr.bf16.mxu0 0
  %2537 = vmatpush2.bf16.msra.mxu0 0
  %2538 = vmatprep.subr.bf16.mxu0 0
  %2539 = vmatpush2.bf16.msra.mxu0 0
  %2540 = vmatprep.subr.bf16.mxu0 0
  %2541 = vmatpush2.bf16.msra.mxu0 0
  %2542 = vmatprep.mubr.bf16.mxu0 0
  %2543 = vmatmul.mubr.bf16.gmra.mxu0 %v2508
  %v2544 = vpop.f32.mrf.mxu0
  %v2545 = vadd.f32 %v2505, %v2544
  %v2546 = vpop.f32.mrf.mxu0
  %v2547 = vadd.f32 %v2506, %v2546
  %v2548 = vpop.f32.mrf.mxu0
  %v2549 = vpop.f32.mrf.mxu0
  %2550 = vdwg.mxu0
  %v2551 = vxor.u32 %v2545, 2147483648
  %v2552 = vxor.u32 %v2547, 2147483648
  %v2553 = vmul.f32 %v2551, 1.442695
  %v2554 = vpow.pop %v2553
  %v2555 = vmul.f32 %v2552, 1.442695
  %v2556 = vpow.pop %v2555
  %v2557 = vadd.f32 %v2554, 1.0
  %v2558 = vadd.f32 %v2556, 1.0
  %v2559 = vrcp.pop %v2557
  %v2560 = vmul.f32 1.0, %v2559
  %v2561 = vrcp.pop %v2558
  %v2562 = vmul.f32 1.0, %v2561
  %v2563 = vtanh.pop %v2547
  %v2564 = vmul.f32 %v2560, %v2494
  %2566 = vrot.lane.b32.xlu0 %v2563, 64
  %v2567 = vpop.permute.xlu0 %2566
  %v2569 = vmul.f32 %v2560, %v2567
  %2571 = vrot.lane.b32.xlu0 %v2569, 64
  %v2572 = vpop.permute.xlu0 %2571
  %v2574 = vadd.f32 %v2564, %v2572
  %v2575 = vtanh.pop %v2574
  %2577 = vrot.lane.b32.xlu0 %v2575, 64
  %v2578 = vpop.permute.xlu0 %2577
  %v2580 = vmul.f32 %v2562, %v2578
  %v2581 = vpack.c.bf16 %v2580, %v2580
  %s2582 = smul.u32 26, 2
  %s2583 = smul.addr %s2582, 8
  %s2584 = scalar_lea.vmem [#allocation2], %s2583
  %v2585 = vld [vmem:[%s2584] sm:$0xff]
  %v2586 = vld [vmem:[%s2584 + $0x8] sm:$0xff]
  %v2588 = vsel %vm506, %v2581, 0
  %2590 = vmatprep.subr.bf16.mxu0 0
  %2591 = vmatpush1.bf16.msra.mxu0 0
  %2592 = vmatprep.subr.bf16.mxu0 0
  %2593 = vmatpush1.bf16.msra.mxu0 0
  %2594 = vmatprep.subr.bf16.mxu0 0
  %2595 = vmatpush1.bf16.msra.mxu0 0
  %2596 = vmatprep.subr.bf16.mxu0 0
  %2597 = vmatpush1.bf16.msra.mxu0 0
  %2598 = vmatprep.subr.bf16.mxu0 %v497
  %2599 = vmatpush1.bf16.msra.mxu0 %v496
  %2600 = vmatprep.subr.bf16.mxu0 %v495
  %2601 = vmatpush1.bf16.msra.mxu0 %v494
  %2602 = vmatprep.subr.bf16.mxu0 %v493
  %2603 = vmatpush1.bf16.msra.mxu0 %v492
  %2604 = vmatprep.subr.bf16.mxu0 %v491
  %2605 = vmatpush1.bf16.msra.mxu0 %v490
  %2606 = vmatprep.subr.bf16.mxu0 0
  %2607 = vmatpush2.bf16.msra.mxu0 0
  %2608 = vmatprep.subr.bf16.mxu0 0
  %2609 = vmatpush2.bf16.msra.mxu0 0
  %2610 = vmatprep.subr.bf16.mxu0 0
  %2611 = vmatpush2.bf16.msra.mxu0 0
  %2612 = vmatprep.subr.bf16.mxu0 0
  %2613 = vmatpush2.bf16.msra.mxu0 0
  %2614 = vmatprep.subr.bf16.mxu0 0
  %2615 = vmatpush2.bf16.msra.mxu0 0
  %2616 = vmatprep.subr.bf16.mxu0 0
  %2617 = vmatpush2.bf16.msra.mxu0 0
  %2618 = vmatprep.subr.bf16.mxu0 0
  %2619 = vmatpush2.bf16.msra.mxu0 0
  %2620 = vmatprep.subr.bf16.mxu0 0
  %2621 = vmatpush2.bf16.msra.mxu0 0
  %2622 = vmatprep.mubr.bf16.mxu0 0
  %2623 = vmatmul.mubr.bf16.gmra.mxu0 %v2588
  %v2624 = vpop.f32.mrf.mxu0
  %v2625 = vadd.f32 %v2585, %v2624
  %v2626 = vpop.f32.mrf.mxu0
  %v2627 = vadd.f32 %v2586, %v2626
  %v2628 = vpop.f32.mrf.mxu0
  %v2629 = vpop.f32.mrf.mxu0
  %2630 = vdwg.mxu0
  %v2631 = vxor.u32 %v2625, 2147483648
  %v2632 = vxor.u32 %v2627, 2147483648
  %v2633 = vmul.f32 %v2631, 1.442695
  %v2634 = vpow.pop %v2633
  %v2635 = vmul.f32 %v2632, 1.442695
  %v2636 = vpow.pop %v2635
  %v2637 = vadd.f32 %v2634, 1.0
  %v2638 = vadd.f32 %v2636, 1.0
  %v2639 = vrcp.pop %v2637
  %v2640 = vmul.f32 1.0, %v2639
  %v2641 = vrcp.pop %v2638
  %v2642 = vmul.f32 1.0, %v2641
  %v2643 = vtanh.pop %v2627
  %v2644 = vmul.f32 %v2640, %v2574
  %2646 = vrot.lane.b32.xlu0 %v2643, 64
  %v2647 = vpop.permute.xlu0 %2646
  %v2649 = vmul.f32 %v2640, %v2647
  %2651 = vrot.lane.b32.xlu0 %v2649, 64
  %v2652 = vpop.permute.xlu0 %2651
  %v2654 = vadd.f32 %v2644, %v2652
  %v2655 = vtanh.pop %v2654
  %2657 = vrot.lane.b32.xlu0 %v2655, 64
  %v2658 = vpop.permute.xlu0 %2657
  %v2660 = vmul.f32 %v2642, %v2658
  %v2661 = vpack.c.bf16 %v2660, %v2660
  %s2662 = smul.u32 27, 2
  %s2663 = smul.addr %s2662, 8
  %s2664 = scalar_lea.vmem [#allocation2], %s2663
  %v2665 = vld [vmem:[%s2664] sm:$0xff]
  %v2666 = vld [vmem:[%s2664 + $0x8] sm:$0xff]
  %v2668 = vsel %vm506, %v2661, 0
  %2670 = vmatprep.subr.bf16.mxu0 0
  %2671 = vmatpush1.bf16.msra.mxu0 0
  %2672 = vmatprep.subr.bf16.mxu0 0
  %2673 = vmatpush1.bf16.msra.mxu0 0
  %2674 = vmatprep.subr.bf16.mxu0 0
  %2675 = vmatpush1.bf16.msra.mxu0 0
  %2676 = vmatprep.subr.bf16.mxu0 0
  %2677 = vmatpush1.bf16.msra.mxu0 0
  %2678 = vmatprep.subr.bf16.mxu0 %v497
  %2679 = vmatpush1.bf16.msra.mxu0 %v496
  %2680 = vmatprep.subr.bf16.mxu0 %v495
  %2681 = vmatpush1.bf16.msra.mxu0 %v494
  %2682 = vmatprep.subr.bf16.mxu0 %v493
  %2683 = vmatpush1.bf16.msra.mxu0 %v492
  %2684 = vmatprep.subr.bf16.mxu0 %v491
  %2685 = vmatpush1.bf16.msra.mxu0 %v490
  %2686 = vmatprep.subr.bf16.mxu0 0
  %2687 = vmatpush2.bf16.msra.mxu0 0
  %2688 = vmatprep.subr.bf16.mxu0 0
  %2689 = vmatpush2.bf16.msra.mxu0 0
  %2690 = vmatprep.subr.bf16.mxu0 0
  %2691 = vmatpush2.bf16.msra.mxu0 0
  %2692 = vmatprep.subr.bf16.mxu0 0
  %2693 = vmatpush2.bf16.msra.mxu0 0
  %2694 = vmatprep.subr.bf16.mxu0 0
  %2695 = vmatpush2.bf16.msra.mxu0 0
  %2696 = vmatprep.subr.bf16.mxu0 0
  %2697 = vmatpush2.bf16.msra.mxu0 0
  %2698 = vmatprep.subr.bf16.mxu0 0
  %2699 = vmatpush2.bf16.msra.mxu0 0
  %2700 = vmatprep.subr.bf16.mxu0 0
  %2701 = vmatpush2.bf16.msra.mxu0 0
  %2702 = vmatprep.mubr.bf16.mxu0 0
  %2703 = vmatmul.mubr.bf16.gmra.mxu0 %v2668
  %v2704 = vpop.f32.mrf.mxu0
  %v2705 = vadd.f32 %v2665, %v2704
  %v2706 = vpop.f32.mrf.mxu0
  %v2707 = vadd.f32 %v2666, %v2706
  %v2708 = vpop.f32.mrf.mxu0
  %v2709 = vpop.f32.mrf.mxu0
  %2710 = vdwg.mxu0
  %v2711 = vxor.u32 %v2705, 2147483648
  %v2712 = vxor.u32 %v2707, 2147483648
  %v2713 = vmul.f32 %v2711, 1.442695
  %v2714 = vpow.pop %v2713
  %v2715 = vmul.f32 %v2712, 1.442695
  %v2716 = vpow.pop %v2715
  %v2717 = vadd.f32 %v2714, 1.0
  %v2718 = vadd.f32 %v2716, 1.0
  %v2719 = vrcp.pop %v2717
  %v2720 = vmul.f32 1.0, %v2719
  %v2721 = vrcp.pop %v2718
  %v2722 = vmul.f32 1.0, %v2721
  %v2723 = vtanh.pop %v2707
  %v2724 = vmul.f32 %v2720, %v2654
  %2726 = vrot.lane.b32.xlu0 %v2723, 64
  %v2727 = vpop.permute.xlu0 %2726
  %v2729 = vmul.f32 %v2720, %v2727
  %2731 = vrot.lane.b32.xlu0 %v2729, 64
  %v2732 = vpop.permute.xlu0 %2731
  %v2734 = vadd.f32 %v2724, %v2732
  %v2735 = vtanh.pop %v2734
  %2737 = vrot.lane.b32.xlu0 %v2735, 64
  %v2738 = vpop.permute.xlu0 %2737
  %v2740 = vmul.f32 %v2722, %v2738
  %v2741 = vld [vmem:[%s4] sm:$0xff]
  %v2742 = vld [vmem:[%s4 + $0x8] sm:$0xff]
  %v2743 = vld [vmem:[%s4 + $0x10] sm:$0xff]
  %v2744 = vld [vmem:[%s4 + $0x18] sm:$0xff]
  %v2745 = vld [vmem:[%s4 + $0x20] sm:$0xff]
  %v2746 = vld [vmem:[%s4 + $0x28] sm:$0xff]
  %v2747 = vld [vmem:[%s4 + $0x30] sm:$0xff]
  %v2748 = vld [vmem:[%s4 + $0x38] sm:$0xff]
  %v2749 = vld [vmem:[%s5] sm:$0x1]
  %v2751 = vlaneseq
  %v2752 = vshrl.u32 %v2751, 7
  %v2753 = vsub.s32 0, %v2752
  %v2754 = vrot.slane %v2749, %v2753
  %v2757 = vsel %vm506, %v2740, 0
  %2759 = vmatprep.subr.mxu0 0.0
  %2760 = vmatpush1.msra.mxu0 0.0
  %2761 = vmatprep.subr.mxu0 0.0
  %2762 = vmatpush1.msra.mxu0 0.0
  %2763 = vmatprep.subr.mxu0 0.0
  %2764 = vmatpush1.msra.mxu0 0.0
  %2765 = vmatprep.subr.mxu0 0.0
  %2766 = vmatpush1.msra.mxu0 0.0
  %2767 = vmatprep.subr.mxu0 0.0
  %2768 = vmatpush1.msra.mxu0 0.0
  %2769 = vmatprep.subr.mxu0 0.0
  %2770 = vmatpush1.msra.mxu0 0.0
  %2771 = vmatprep.subr.mxu0 0.0
  %2772 = vmatpush1.msra.mxu0 0.0
  %2773 = vmatprep.subr.mxu0 0.0
  %2774 = vmatpush1.msra.mxu0 0.0
  %2775 = vmatprep.subr.mxu0 0.0
  %2776 = vmatpush1.msra.mxu0 %v2748
  %2777 = vmatprep.subr.mxu0 0.0
  %2778 = vmatpush1.msra.mxu0 %v2747
  %2779 = vmatprep.subr.mxu0 0.0
  %2780 = vmatpush1.msra.mxu0 %v2746
  %2781 = vmatprep.subr.mxu0 0.0
  %2782 = vmatpush1.msra.mxu0 %v2745
  %2783 = vmatprep.subr.mxu0 0.0
  %2784 = vmatpush1.msra.mxu0 %v2744
  %2785 = vmatprep.subr.mxu0 0.0
  %2786 = vmatpush1.msra.mxu0 %v2743
  %2787 = vmatprep.subr.mxu0 0.0
  %2788 = vmatpush1.msra.mxu0 %v2742
  %2789 = vmatprep.subr.mxu0 0.0
  %2790 = vmatpush1.msra.mxu0 %v2741
  %2791 = vmatprep.subr.mxu0 0.0
  %2792 = vmatpush2.msra.mxu0 0.0
  %2793 = vmatprep.subr.mxu0 0.0
  %2794 = vmatpush2.msra.mxu0 0.0
  %2795 = vmatprep.subr.mxu0 0.0
  %2796 = vmatpush2.msra.mxu0 0.0
  %2797 = vmatprep.subr.mxu0 0.0
  %2798 = vmatpush2.msra.mxu0 0.0
  %2799 = vmatprep.subr.mxu0 0.0
  %2800 = vmatpush2.msra.mxu0 0.0
  %2801 = vmatprep.subr.mxu0 0.0
  %2802 = vmatpush2.msra.mxu0 0.0
  %2803 = vmatprep.subr.mxu0 0.0
  %2804 = vmatpush2.msra.mxu0 0.0
  %2805 = vmatprep.subr.mxu0 0.0
  %2806 = vmatpush2.msra.mxu0 0.0
  %2807 = vmatprep.subr.mxu0 0.0
  %2808 = vmatpush2.msra.mxu0 0.0
  %2809 = vmatprep.subr.mxu0 0.0
  %2810 = vmatpush2.msra.mxu0 0.0
  %2811 = vmatprep.subr.mxu0 0.0
  %2812 = vmatpush2.msra.mxu0 0.0
  %2813 = vmatprep.subr.mxu0 0.0
  %2814 = vmatpush2.msra.mxu0 0.0
  %2815 = vmatprep.subr.mxu0 0.0
  %2816 = vmatpush2.msra.mxu0 0.0
  %2817 = vmatprep.subr.mxu0 0.0
  %2818 = vmatpush2.msra.mxu0 0.0
  %2819 = vmatprep.subr.mxu0 0.0
  %2820 = vmatpush2.msra.mxu0 0.0
  %2821 = vmatprep.subr.mxu0 0.0
  %2822 = vmatpush2.msra.mxu0 0.0
  %2823 = vmatprep.mubr.f32.mxu0 0.0
  %2824 = vmatmul.mubr.f32.gmra.mxu0 %v2757
  %v2825 = vpop.f32.mrf.mxu0
  %v2826 = vadd.f32 %v2754, %v2825
  %v2827 = vpop.f32.mrf.mxu0
  %2828 = vdwg.mxu0
  %2829 = vmax.xlane.f32.xlu0 %v2826
  %v2830 = vpop.xlane.xlu0 %2829
  %v2831 = vsub.f32 %v2826, %v2830
  %v2832 = vmul.f32 %v2831, 1.442695
  %v2833 = vpow.pop %v2832
  %2834 = vadd.xlane.f32.xlu0 %v2833
  %v2835 = vpop.xlane.xlu0 %2834
  %v2836 = vrcp.pop %v2835
  %v2837 = vmul.f32 %v2833, %v2836
  %2838 = vst [vmem:[%s6] sm:$0xff] %v2837
  // Predicated region
  $region26: #{lstm_forward.1} parent=0 // pred_check
    _
  $region27: #{lstm_forward.1} parent=0 // pred_check_branch
    %2840 = sbr.rel (0) target = $region29
  $region28: #{lstm_forward.1} parent=0 // pred_region
    _
  $region29: #{lstm_forward.1} parent=0 // pred_fallthru
    _
  // Predicated region
  $region30: #{lstm_forward.1} parent=0 // pred_check
    _
  $region31: #{lstm_forward.1} parent=0 // pred_check_branch
    %2842 = sbr.rel (0) target = $region33
  $region32: #{lstm_forward.1} parent=0 // pred_region
    _
  $region33: #{lstm_forward.1} parent=0 // pred_fallthru
    _

</llo_original>
